<compile_context>
chip_gen: v7x
topology: tpu7x:2x2x1
jax: 0.10.0
libtpu: 0.0.40
codegen_flags: <defaults>
</compile_context>

<pallas_src>
import functools

import jax
import jax.numpy as jnp
from jax.experimental import pallas as pl
from jax.experimental.pallas import tpu as pltpu

BN_EPS = 1e-5  # PyTorch BatchNorm default eps


# --------------------------------------------------------------------------
# helpers
# --------------------------------------------------------------------------
def _vmem_limit_bytes():
    """Generation-aware scoped-VMEM budget (~3/4 of physical, capped at 96 MiB)."""
    try:
        cap = int(pltpu.get_tpu_info().vmem_capacity_bytes)
    except Exception:
        cap = 64 << 20  # conservative fallback (v7x-sized)
    return min((cap * 3) // 4, 96 << 20)


def _pick_tile(dim, preferred):
    for t in preferred:
        if dim % t == 0:
            return t
    raise ValueError(f"spatial size {dim} is not divisible by any of {preferred}")


# --------------------------------------------------------------------------
# pass 1: fused phi/g 1x1x1 projections (streaming matmul, channels-major input)
# --------------------------------------------------------------------------
def _phi_g_proj_kernel(x_ref, w_ref, b_ref, ph_ref, g_ref):
    # x_ref block: (C, TS) f32  (NCDHW flattened -> channels-major, no XLA transpose)
    xt = jnp.transpose(x_ref[...]).astype(jnp.bfloat16)                 # (TS, C) bf16
    pg = jnp.dot(xt, w_ref[...],
                 preferred_element_type=jnp.float32) + b_ref[...]       # (TS, 2*Ci) f32
    ci = ph_ref.shape[-1]
    ph_ref[...] = pg[:, :ci].astype(ph_ref.dtype)                       # bf16 staging
    g_ref[...] = pg[:, ci:].astype(g_ref.dtype)


# --------------------------------------------------------------------------
# pass 2: flash-style non-local attention + W_z/BN epilogue + residual
# --------------------------------------------------------------------------
def _flash_nl_kernel(x_ref, ph_ref, g_ref, wth_ref, bth_ref, wz_ref, bz_ref,
                     z_ref, th_sc, m_sc, l_sc, acc_sc, *, tkv, kv_resident):
    ki = pl.program_id(2)

    @pl.when(ki == 0)
    def _init():
        m_sc[...] = jnp.full(m_sc.shape, -jnp.inf, m_sc.dtype)
        l_sc[...] = jnp.zeros(l_sc.shape, l_sc.dtype)
        acc_sc[...] = jnp.zeros(acc_sc.shape, acc_sc.dtype)
        # theta projection fused here: the x tile is already resident (residual path),
        # so theta never round-trips through HBM.
        x_t = jnp.transpose(x_ref[...]).astype(jnp.bfloat16)            # (TQ, C) bf16
        th = jnp.dot(x_t, wth_ref[...],
                     preferred_element_type=jnp.float32) + bth_ref[...]  # (TQ, Ci) f32
        th_sc[...] = th.astype(th_sc.dtype)

    # phi/g tiles: either a slice of the per-batch VMEM-resident buffer, or the
    # streamed (tkv, Ci) block delivered by the BlockSpec pipeline.
    if kv_resident:
        off = pl.multiple_of(ki * tkv, tkv)
        ph = ph_ref[pl.ds(off, tkv), :]                                  # (TKV, Ci) bf16
        gv = g_ref[pl.ds(off, tkv), :]
    else:
        ph = ph_ref[...]
        gv = g_ref[...]

    th = th_sc[...]                                                      # (TQ, Ci) bf16
    # f[i, j] = <theta_i, phi_j>  (NT contraction, MXU-native)
    s = jax.lax.dot_general(th, ph, (((1,), (1,)), ((), ())),
                            preferred_element_type=jnp.float32)          # (TQ, TKV) f32

    # online softmax (running max m, running sum l); softmax math stays f32
    m_prev = m_sc[...]
    m_new = jnp.maximum(m_prev, jnp.max(s, axis=-1, keepdims=True))
    alpha = jnp.exp(m_prev - m_new)
    p = jnp.exp(s - m_new)
    l_sc[...] = alpha * l_sc[...] + jnp.sum(p, axis=-1, keepdims=True)
    acc_sc[...] = alpha * acc_sc[...] + jnp.dot(
        p.astype(jnp.bfloat16), gv, preferred_element_type=jnp.float32)
    m_sc[...] = m_new

    @pl.when(ki == pl.num_programs(2) - 1)
    def _finalize():
        # deferred normalization: one (TQ, Ci) multiply + EUP reciprocal
        y = acc_sc[...] * pl.reciprocal(l_sc[...], approx=True)          # (TQ, Ci) f32
        # W_z conv (eval-mode BN folded in), computed directly in (C, TQ) orientation
        # so the residual add and output store stay in the NC(S) layout (no transpose).
        wy_t = jax.lax.dot_general(wz_ref[...], y.astype(jnp.bfloat16),
                                   (((1,), (1,)), ((), ())),
                                   preferred_element_type=jnp.float32)   # (C, TQ) f32
        z_ref[...] = (wy_t + bz_ref[...]
                      + x_ref[...].astype(jnp.float32)).astype(z_ref.dtype)


# --------------------------------------------------------------------------
# wrappers
# --------------------------------------------------------------------------
def nl_block_nd_embedded_ncs(x_ncs, params, *, tq=None, tkv=None, ts=None,
                             kv_resident=None):
    """Channels-major forward: x (N, C, S) -> z (N, C, S)."""
    n, c, s = x_ncs.shape
    ci = params["w_theta"].shape[1]

    # ---- tile selection --------------------------------------------------
    if tq is None:
        tq = _pick_tile(s, (256, 512, 384, 128))
    if tkv is None:
        tkv = _pick_tile(s, (512, 256, 384, 128))
    if ts is None:
        ts = _pick_tile(s, (1024, 512, 256, 128))
    assert s % tq == 0 and s % tkv == 0 and s % ts == 0
    # keep >= 2 parallel q-work-units for the v7x dual TensorCore
    if n * (s // tq) < 2 and tq >= 256 and s % (tq // 2) == 0:
        tq //= 2

    vmem_limit = _vmem_limit_bytes()
    if kv_resident is None:
        # phi + g, bf16, double-buffered, must fit in ~1/3 of the VMEM budget
        kv_resident = (2 * 2 * s * ci * 2) <= vmem_limit // 3

    # ---- fold eval-mode BatchNorm (+ W_z bias) into the epilogue weights --
    bn_scale = params["bn_gamma"] * jax.lax.rsqrt(params["bn_var"] + BN_EPS)      # (1, C)
    wz_eff = (params["wz"] * bn_scale.T).astype(jnp.bfloat16)                     # (C, Ci)
    bz_eff = ((params["bz"] - params["bn_mean"]) * bn_scale
              + params["bn_beta"]).T.astype(jnp.float32)                          # (C, 1)

    w_pg = jnp.concatenate([params["w_phi"], params["w_g"]],
                           axis=1).astype(jnp.bfloat16)                           # (C, 2Ci)
    b_pg = jnp.concatenate([params["b_phi"], params["b_g"]], axis=1)              # (1, 2Ci)
    wth = params["w_theta"].astype(jnp.bfloat16)                                  # (C, Ci)
    bth = params["b_theta"].astype(jnp.float32)                                   # (1, Ci)

    # ---- pass 1: fused phi/g projections ----------------------------------
    proj = pl.pallas_call(
        _phi_g_proj_kernel,
        out_shape=(jax.ShapeDtypeStruct((n, s, ci), jnp.bfloat16),) * 2,
        grid=(n, s // ts),
        in_specs=[
            pl.BlockSpec((None, c, ts), lambda b, si: (b, 0, si)),   # x (C-major)
            pl.BlockSpec((c, 2 * ci), lambda b, si: (0, 0)),         # fused [W_phi|W_g]
            pl.BlockSpec((1, 2 * ci), lambda b, si: (0, 0)),         # fused bias
        ],
        out_specs=(pl.BlockSpec((None, ts, ci), lambda b, si: (b, si, 0)),) * 2,
        compiler_params=pltpu.CompilerParams(
            dimension_semantics=("parallel", "parallel"),
            vmem_limit_bytes=vmem_limit),
    )
    phi, g = proj(x_ncs, w_pg, b_pg)

    # ---- pass 2: flash attention + epilogue --------------------------------
    nq, nkv = s // tq, s // tkv
    kv_block = s if kv_resident else tkv
    if kv_resident:
        kv_index = lambda b, qi, ki: (b, 0, 0)     # resident per batch, fetched once
    else:
        kv_index = lambda b, qi, ki: (b, ki, 0)    # streamed per kv step

    attn = pl.pallas_call(
        functools.partial(_flash_nl_kernel, tkv=tkv, kv_resident=kv_resident),
        out_shape=jax.ShapeDtypeStruct((n, c, s), x_ncs.dtype),
        grid=(n, nq, nkv),
        in_specs=[
            pl.BlockSpec((None, c, tq), lambda b, qi, ki: (b, 0, qi)),   # x (residual+theta)
            pl.BlockSpec((None, kv_block, ci), kv_index),                # phi
            pl.BlockSpec((None, kv_block, ci), kv_index),                # g
            pl.BlockSpec((c, ci), lambda b, qi, ki: (0, 0)),             # W_theta (bf16)
            pl.BlockSpec((1, ci), lambda b, qi, ki: (0, 0)),             # b_theta
            pl.BlockSpec((c, ci), lambda b, qi, ki: (0, 0)),             # W_z (BN folded, bf16)
            pl.BlockSpec((c, 1), lambda b, qi, ki: (0, 0)),              # b_z (BN folded)
        ],
        out_specs=pl.BlockSpec((None, c, tq), lambda b, qi, ki: (b, 0, qi)),
        scratch_shapes=[
            pltpu.VMEM((tq, ci), jnp.bfloat16),   # theta tile
            pltpu.VMEM((tq, 1), jnp.float32),     # running max m
            pltpu.VMEM((tq, 1), jnp.float32),     # running sum l
            pltpu.VMEM((tq, ci), jnp.float32),    # unnormalized accumulator
        ],
        compiler_params=pltpu.CompilerParams(
            dimension_semantics=("parallel", "parallel", "arbitrary"),
            vmem_limit_bytes=vmem_limit),
    )
    return attn(x_ncs, phi, g, wth, bth, wz_eff, bz_eff)


def nl_block_nd_embedded(x_ncdhw, params, *, tq=None, tkv=None, ts=None,
                         kv_resident=None):
    """PyTorch-layout forward: x (N, C, T, H, W) -> z (N, C, T, H, W).

    No layout transposes at the XLA level: the kernels consume/produce the
    channels-major (N, C, S) layout directly (reshape only, which is free).
    """
    n, c, t, h, w = x_ncdhw.shape
    s = t * h * w
    x_ncs = x_ncdhw.reshape(n, c, s)
    z_ncs = nl_block_nd_embedded_ncs(x_ncs, params, tq=tq, tkv=tkv, ts=ts,
                                     kv_resident=kv_resident)
    return z_ncs.reshape(n, c, t, h, w)


# --------------------------------------------------------------------------
# parameters + pure-JAX reference
# --------------------------------------------------------------------------
def init_params(key, in_channels, inter_channels, *, scale=0.02,
                module_bn_init=True):
    """Parameters in channels-last matmul form.

    w_theta/w_phi/w_g are (C, Ci); wz is (C, Ci) (PyTorch (out, in) conv layout).
    module_bn_init=True reproduces NLBlockND.__init__ (BN weight/bias = 0, eval
    running stats mean=0, var=1); module_bn_init=False draws nonzero BN params
    so the attention math is exercised numerically.
    """
    c, ci = in_channels, inter_channels
    ks = jax.random.split(key, 12)
    p = {
        "w_theta": scale * jax.random.normal(ks[0], (c, ci), jnp.float32),
        "b_theta": scale * jax.random.normal(ks[1], (1, ci), jnp.float32),
        "w_phi": scale * jax.random.normal(ks[2], (c, ci), jnp.float32),
        "b_phi": scale * jax.random.normal(ks[3], (1, ci), jnp.float32),
        "w_g": scale * jax.random.normal(ks[4], (c, ci), jnp.float32),
        "b_g": scale * jax.random.normal(ks[5], (1, ci), jnp.float32),
        "wz": scale * jax.random.normal(ks[6], (c, ci), jnp.float32),
        "bz": scale * jax.random.normal(ks[7], (1, c), jnp.float32),
    }
    if module_bn_init:
        p["bn_gamma"] = jnp.zeros((1, c), jnp.float32)
        p["bn_beta"] = jnp.zeros((1, c), jnp.float32)
        p["bn_mean"] = jnp.zeros((1, c), jnp.float32)
        p["bn_var"] = jnp.ones((1, c), jnp.float32)
    else:
        p["bn_gamma"] = 1.0 + 0.1 * jax.random.normal(ks[8], (1, c), jnp.float32)
        p["bn_beta"] = 0.1 * jax.random.normal(ks[9], (1, c), jnp.float32)
        p["bn_mean"] = 0.1 * jax.random.normal(ks[10], (1, c), jnp.float32)
        p["bn_var"] = 1.0 + 0.5 * jax.random.uniform(ks[11], (1, c), jnp.float32)
    return p


def nl_block_reference(x_ncdhw, params):
    """Pure-JAX f32 reference of NLBlockND(mode='embedded', bn_layer=True, eval)."""
    n, c, t, h, w = x_ncdhw.shape
    s = t * h * w
    x = jnp.transpose(x_ncdhw.reshape(n, c, s), (0, 2, 1))              # (N, S, C)
    th = jnp.einsum("nsc,ck->nsk", x, params["w_theta"]) + params["b_theta"]
    ph = jnp.einsum("nsc,ck->nsk", x, params["w_phi"]) + params["b_phi"]
    g = jnp.einsum("nsc,ck->nsk", x, params["w_g"]) + params["b_g"]
    f = jnp.einsum("nqk,nvk->nqv", th, ph)
    p = jax.nn.softmax(f, axis=-1)
    y = jnp.einsum("nqv,nvk->nqk", p, g)
    w_y = jnp.einsum("nqk,ck->nqc", y, params["wz"]) + params["bz"]
    inv_std = jax.lax.rsqrt(params["bn_var"] + BN_EPS)
    bn = params["bn_gamma"] * (w_y - params["bn_mean"]) * inv_std + params["bn_beta"]
    z = bn + x
    return jnp.transpose(z, (0, 2, 1)).reshape(n, c, t, h, w)


if __name__ == "__main__":
    # lane-aligned channels, small spatiotemporal size: S = T*H*W = 512
    N, C, CI = 2, 128, 128               # NLBlockND(in_channels=128, inter_channels=128)
    T, H, W = 2, 16, 16

    key = jax.random.PRNGKey(0)
    k_x, k_p = jax.random.split(key)
    x = jax.random.normal(k_x, (N, C, T, H, W), jnp.float32)

    fwd = jax.jit(nl_block_nd_embedded)

    # --- check 1: full path (resident-KV) vs pure-JAX reference -------------
    params = init_params(k_p, C, CI, module_bn_init=False)
    z = jax.block_until_ready(fwd(x, params))
    z_ref = jax.block_until_ready(nl_block_reference(x, params))
    assert z.shape == x.shape
    assert bool(jnp.all(jnp.isfinite(z)))
    max_err = float(jnp.max(jnp.abs(z - z_ref)))
    assert max_err < 2e-2, f"mismatch vs reference: max abs err {max_err}"

    # --- check 2: module's default init (gamma=beta=0) => z == x exactly ----
    params0 = init_params(k_p, C, CI, module_bn_init=True)
    z0 = jax.block_until_ready(fwd(x, params0))
    assert bool(jnp.allclose(z0, x, atol=1e-5)), "residual path mismatch"

    # --- check 3: streaming-KV path (used when phi/g don't fit VMEM) --------
    fwd_stream = jax.jit(functools.partial(nl_block_nd_embedded,
                                           kv_resident=False, tkv=128))
    zs = jax.block_until_ready(fwd_stream(x, params))
    max_err_s = float(jnp.max(jnp.abs(zs - z_ref)))
    assert max_err_s < 2e-2, f"streaming-KV path mismatch: max abs err {max_err_s}"

    print("KERNEL_OK")
</pallas_src>

<mosaic_0001>
module attributes {stable_mosaic.version = 11 : i64} {
  func.func @_phi_g_proj_kernel(%arg0: i32, %arg1: i32, %arg2: memref<1x128x512xf32, #tpu.memory_space<vmem>>, %arg3: memref<128x256xbf16, #tpu.memory_space<vmem>>, %arg4: memref<1x256xf32, #tpu.memory_space<vmem>>, %arg5: memref<1x512x128xbf16, #tpu.memory_space<vmem>>, %arg6: memref<1x512x128xbf16, #tpu.memory_space<vmem>>) attributes {dimension_semantics = [#tpu.dimension_semantics<parallel>, #tpu.dimension_semantics<parallel>], iteration_bounds = array<i64: 2, 1>, scalar_prefetch = 0 : i64, scratch_operands = 0 : i64, tpu.core_type = #tpu.core_type<tc>, window_params = [{transform_indices = @transform_0, window_bounds = array<i64: 1, 128, 512>}, {pipeline_mode = #tpu.pipeline_mode<synchronous>, transform_indices = @transform_1, window_bounds = array<i64: 128, 256>}, {pipeline_mode = #tpu.pipeline_mode<synchronous>, transform_indices = @transform_2, window_bounds = array<i64: 1, 256>}, {transform_indices = @transform_3, window_bounds = array<i64: 1, 512, 128>}, {transform_indices = @transform_4, window_bounds = array<i64: 1, 512, 128>}]} {
    %c0 = arith.constant 0 : index
    %c0_0 = arith.constant 0 : index
    %c0_1 = arith.constant 0 : index
    %0 = vector.load %arg2[%c0, %c0_0, %c0_1] : memref<1x128x512xf32, #tpu.memory_space<vmem>>, vector<1x128x512xf32>
    %1 = vector.shape_cast %0 : vector<1x128x512xf32> to vector<128x512xf32>
    %2 = tpu.transpose %1, [1, 0] : vector<128x512xf32> -> vector<512x128xf32>
    %3 = arith.truncf %2 : vector<512x128xf32> to vector<512x128xbf16>
    %c0_2 = arith.constant 0 : index
    %c0_3 = arith.constant 0 : index
    %4 = vector.load %arg3[%c0_2, %c0_3] : memref<128x256xbf16, #tpu.memory_space<vmem>>, vector<128x256xbf16>
    %cst = arith.constant dense<0.000000e+00> : vector<512x256xf32>
    %5 = tpu.matmul %3, %4, %cst {dimension_numbers = #tpu.dot_dimension_numbers<[1], [0], [0], [1], [0, 0, 1, 1], [], []>} : vector<512x128xbf16>, vector<128x256xbf16>, vector<512x256xf32> -> vector<512x256xf32>
    %c0_4 = arith.constant 0 : index
    %c0_5 = arith.constant 0 : index
    %6 = vector.load %arg4[%c0_4, %c0_5] : memref<1x256xf32, #tpu.memory_space<vmem>>, vector<1x256xf32>
    %7 = vector.broadcast %6 : vector<1x256xf32> to vector<512x256xf32>
    %8 = arith.addf %5, %7 : vector<512x256xf32>
    %9 = vector.extract_strided_slice %8 {offsets = [0, 0], sizes = [512, 128], strides = [1, 1]} : vector<512x256xf32> to vector<512x128xf32>
    %10 = arith.truncf %9 : vector<512x128xf32> to vector<512x128xbf16>
    %c0_6 = arith.constant 0 : index
    %c0_7 = arith.constant 0 : index
    %c0_8 = arith.constant 0 : index
    %11 = vector.load %arg5[%c0_6, %c0_7, %c0_8] : memref<1x512x128xbf16, #tpu.memory_space<vmem>>, vector<1x512x128xbf16>
    %12 = vector.shape_cast %11 : vector<1x512x128xbf16> to vector<512x128xbf16>
    %13 = vector.shape_cast %10 : vector<512x128xbf16> to vector<1x512x128xbf16>
    tpu.vector_store %arg5[%c0_6, %c0_7, %c0_8], %13 {strides = array<i32>} : memref<1x512x128xbf16, #tpu.memory_space<vmem>>, vector<1x512x128xbf16>,
    %14 = vector.extract_strided_slice %8 {offsets = [0, 128], sizes = [512, 128], strides = [1, 1]} : vector<512x256xf32> to vector<512x128xf32>
    %15 = arith.truncf %14 : vector<512x128xf32> to vector<512x128xbf16>
    %c0_9 = arith.constant 0 : index
    %c0_10 = arith.constant 0 : index
    %c0_11 = arith.constant 0 : index
    %16 = vector.load %arg6[%c0_9, %c0_10, %c0_11] : memref<1x512x128xbf16, #tpu.memory_space<vmem>>, vector<1x512x128xbf16>
    %17 = vector.shape_cast %16 : vector<1x512x128xbf16> to vector<512x128xbf16>
    %18 = vector.shape_cast %15 : vector<512x128xbf16> to vector<1x512x128xbf16>
    tpu.vector_store %arg6[%c0_9, %c0_10, %c0_11], %18 {strides = array<i32>} : memref<1x512x128xbf16, #tpu.memory_space<vmem>>, vector<1x512x128xbf16>,
    return
  }
  func.func @transform_0(%arg0: i32, %arg1: i32) -> (i32, i32, i32) {
    %c0_i32 = arith.constant 0 : i32
    %c0_i32_0 = arith.constant 0 : i32
    return %arg0, %c0_i32, %arg1 : i32, i32, i32
  }
  func.func @transform_1(%arg0: i32, %arg1: i32) -> (i32, i32) {
    %c0_i32 = arith.constant 0 : i32
    %c0_i32_0 = arith.constant 0 : i32
    %c0_i32_1 = arith.constant 0 : i32
    return %c0_i32, %c0_i32_0 : i32, i32
  }
  func.func @transform_2(%arg0: i32, %arg1: i32) -> (i32, i32) {
    %c0_i32 = arith.constant 0 : i32
    %c0_i32_0 = arith.constant 0 : i32
    %c0_i32_1 = arith.constant 0 : i32
    return %c0_i32, %c0_i32_0 : i32, i32
  }
  func.func @transform_3(%arg0: i32, %arg1: i32) -> (i32, i32, i32) {
    %c0_i32 = arith.constant 0 : i32
    %c0_i32_0 = arith.constant 0 : i32
    return %arg0, %arg1, %c0_i32 : i32, i32, i32
  }
  func.func @transform_4(%arg0: i32, %arg1: i32) -> (i32, i32, i32) {
    %c0_i32 = arith.constant 0 : i32
    %c0_i32_0 = arith.constant 0 : i32
    return %arg0, %arg1, %c0_i32 : i32, i32, i32
  }
}

module attributes {stable_mosaic.version = 11 : i64} {
  func.func @_flash_nl_kernel(%arg0: i32, %arg1: i32, %arg2: i32, %arg3: memref<1x128x256xf32, #tpu.memory_space<vmem>>, %arg4: memref<1x512x128xbf16, #tpu.memory_space<vmem>>, %arg5: memref<1x512x128xbf16, #tpu.memory_space<vmem>>, %arg6: memref<128x128xbf16, #tpu.memory_space<vmem>>, %arg7: memref<1x128xf32, #tpu.memory_space<vmem>>, %arg8: memref<128x128xbf16, #tpu.memory_space<vmem>>, %arg9: memref<128x1xf32, #tpu.memory_space<vmem>>, %arg10: memref<1x128x256xf32, #tpu.memory_space<vmem>>, %arg11: memref<256x128xbf16, #tpu.memory_space<vmem>>, %arg12: memref<256x1xf32, #tpu.memory_space<vmem>>, %arg13: memref<256x1xf32, #tpu.memory_space<vmem>>, %arg14: memref<256x128xf32, #tpu.memory_space<vmem>>) attributes {dimension_semantics = [#tpu.dimension_semantics<parallel>, #tpu.dimension_semantics<parallel>, #tpu.dimension_semantics<arbitrary>], iteration_bounds = array<i64: 2, 2, 1>, scalar_prefetch = 0 : i64, scratch_operands = 4 : i64, tpu.core_type = #tpu.core_type<tc>, window_params = [{transform_indices = @transform_0, window_bounds = array<i64: 1, 128, 256>}, {transform_indices = @transform_1, window_bounds = array<i64: 1, 512, 128>}, {transform_indices = @transform_2, window_bounds = array<i64: 1, 512, 128>}, {pipeline_mode = #tpu.pipeline_mode<synchronous>, transform_indices = @transform_3, window_bounds = array<i64: 128, 128>}, {pipeline_mode = #tpu.pipeline_mode<synchronous>, transform_indices = @transform_4, window_bounds = array<i64: 1, 128>}, {pipeline_mode = #tpu.pipeline_mode<synchronous>, transform_indices = @transform_5, window_bounds = array<i64: 128, 128>}, {pipeline_mode = #tpu.pipeline_mode<synchronous>, transform_indices = @transform_6, window_bounds = array<i64: 128, 1>}, {transform_indices = @transform_7, window_bounds = array<i64: 1, 128, 256>}]} {
    %c0_i32 = arith.constant 0 : i32
    %0 = arith.cmpi eq, %arg2, %c0_i32 : i32
    %1 = arith.extui %0 : i1 to i32
    %c0_i32_0 = arith.constant 0 : i32
    %2 = arith.cmpi ne, %1, %c0_i32_0 : i32
    scf.if %2 {
      %cst_23 = arith.constant 0xFF800000 : f32
      %39 = vector.broadcast %cst_23 : f32 to vector<256x1xf32>
      %c0_24 = arith.constant 0 : index
      %c0_25 = arith.constant 0 : index
      %40 = vector.load %arg12[%c0_24, %c0_25] : memref<256x1xf32, #tpu.memory_space<vmem>>, vector<256x1xf32>
      tpu.vector_store %arg12[%c0_24, %c0_25], %39 {strides = array<i32>} : memref<256x1xf32, #tpu.memory_space<vmem>>, vector<256x1xf32>,
      %cst_26 = arith.constant 0.000000e+00 : f32
      %41 = vector.broadcast %cst_26 : f32 to vector<256x1xf32>
      %c0_27 = arith.constant 0 : index
      %c0_28 = arith.constant 0 : index
      %42 = vector.load %arg13[%c0_27, %c0_28] : memref<256x1xf32, #tpu.memory_space<vmem>>, vector<256x1xf32>
      tpu.vector_store %arg13[%c0_27, %c0_28], %41 {strides = array<i32>} : memref<256x1xf32, #tpu.memory_space<vmem>>, vector<256x1xf32>,
      %cst_29 = arith.constant 0.000000e+00 : f32
      %43 = vector.broadcast %cst_29 : f32 to vector<256x128xf32>
      %c0_30 = arith.constant 0 : index
      %c0_31 = arith.constant 0 : index
      %44 = vector.load %arg14[%c0_30, %c0_31] : memref<256x128xf32, #tpu.memory_space<vmem>>, vector<256x128xf32>
      tpu.vector_store %arg14[%c0_30, %c0_31], %43 {strides = array<i32>} : memref<256x128xf32, #tpu.memory_space<vmem>>, vector<256x128xf32>,
      %c0_32 = arith.constant 0 : index
      %c0_33 = arith.constant 0 : index
      %c0_34 = arith.constant 0 : index
      %45 = vector.load %arg3[%c0_32, %c0_33, %c0_34] : memref<1x128x256xf32, #tpu.memory_space<vmem>>, vector<1x128x256xf32>
      %46 = vector.shape_cast %45 : vector<1x128x256xf32> to vector<128x256xf32>
      %47 = tpu.transpose %46, [1, 0] : vector<128x256xf32> -> vector<256x128xf32>
      %48 = arith.truncf %47 : vector<256x128xf32> to vector<256x128xbf16>
      %c0_35 = arith.constant 0 : index
      %c0_36 = arith.constant 0 : index
      %49 = vector.load %arg6[%c0_35, %c0_36] : memref<128x128xbf16, #tpu.memory_space<vmem>>, vector<128x128xbf16>
      %cst_37 = arith.constant dense<0.000000e+00> : vector<256x128xf32>
      %50 = tpu.matmul %48, %49, %cst_37 {dimension_numbers = #tpu.dot_dimension_numbers<[1], [0], [0], [1], [0, 0, 1, 1], [], []>} : vector<256x128xbf16>, vector<128x128xbf16>, vector<256x128xf32> -> vector<256x128xf32>
      %c0_38 = arith.constant 0 : index
      %c0_39 = arith.constant 0 : index
      %51 = vector.load %arg7[%c0_38, %c0_39] : memref<1x128xf32, #tpu.memory_space<vmem>>, vector<1x128xf32>
      %52 = vector.broadcast %51 : vector<1x128xf32> to vector<256x128xf32>
      %53 = arith.addf %50, %52 : vector<256x128xf32>
      %54 = arith.truncf %53 : vector<256x128xf32> to vector<256x128xbf16>
      %c0_40 = arith.constant 0 : index
      %c0_41 = arith.constant 0 : index
      %55 = vector.load %arg11[%c0_40, %c0_41] : memref<256x128xbf16, #tpu.memory_space<vmem>>, vector<256x128xbf16>
      tpu.vector_store %arg11[%c0_40, %c0_41], %54 {strides = array<i32>} : memref<256x128xbf16, #tpu.memory_space<vmem>>, vector<256x128xbf16>,
    } else {
    }
    %c512_i32 = arith.constant 512 : i32
    %3 = arith.muli %arg2, %c512_i32 : i32
    %4 = tpu.assume_multiple %3, 512 : i32
    %c0 = arith.constant 0 : index
    %5 = arith.index_cast %4 : i32 to index
    %c0_1 = arith.constant 0 : index
    %6 = vector.load %arg4[%c0, %5, %c0_1] : memref<1x512x128xbf16, #tpu.memory_space<vmem>>, vector<1x512x128xbf16>
    %7 = vector.shape_cast %6 : vector<1x512x128xbf16> to vector<512x128xbf16>
    %c0_2 = arith.constant 0 : index
    %8 = arith.index_cast %4 : i32 to index
    %c0_3 = arith.constant 0 : index
    %9 = vector.load %arg5[%c0_2, %8, %c0_3] : memref<1x512x128xbf16, #tpu.memory_space<vmem>>, vector<1x512x128xbf16>
    %10 = vector.shape_cast %9 : vector<1x512x128xbf16> to vector<512x128xbf16>
    %c0_4 = arith.constant 0 : index
    %c0_5 = arith.constant 0 : index
    %11 = vector.load %arg11[%c0_4, %c0_5] : memref<256x128xbf16, #tpu.memory_space<vmem>>, vector<256x128xbf16>
    %cst = arith.constant dense<0.000000e+00> : vector<256x512xf32>
    %12 = tpu.matmul %11, %7, %cst {dimension_numbers = #tpu.dot_dimension_numbers<[1], [1], [0], [0], [0, 0, 1, 0], [], []>} : vector<256x128xbf16>, vector<512x128xbf16>, vector<256x512xf32> -> vector<256x512xf32>
    %c0_6 = arith.constant 0 : index
    %c0_7 = arith.constant 0 : index
    %13 = vector.load %arg12[%c0_6, %c0_7] : memref<256x1xf32, #tpu.memory_space<vmem>>, vector<256x1xf32>
    %cst_8 = arith.constant dense<0xFF800000> : vector<256xf32>
    %14 = vector.multi_reduction <maximumf>, %12, %cst_8 [1] : vector<256x512xf32> to vector<256xf32>
    %15 = vector.shape_cast %14 : vector<256xf32> to vector<256x1xf32>
    %16 = arith.maximumf %13, %15 : vector<256x1xf32>
    %17 = arith.subf %13, %16 : vector<256x1xf32>
    %18 = math.exp %17 : vector<256x1xf32>
    %19 = vector.broadcast %16 : vector<256x1xf32> to vector<256x512xf32>
    %20 = arith.subf %12, %19 : vector<256x512xf32>
    %21 = math.exp %20 : vector<256x512xf32>
    %c0_9 = arith.constant 0 : index
    %c0_10 = arith.constant 0 : index
    %22 = vector.load %arg13[%c0_9, %c0_10] : memref<256x1xf32, #tpu.memory_space<vmem>>, vector<256x1xf32>
    %23 = arith.mulf %18, %22 : vector<256x1xf32>
    %cst_11 = arith.constant dense<0.000000e+00> : vector<256xf32>
    %24 = vector.multi_reduction <add>, %21, %cst_11 [1] : vector<256x512xf32> to vector<256xf32>
    %25 = vector.shape_cast %24 : vector<256xf32> to vector<256x1xf32>
    %26 = arith.addf %23, %25 : vector<256x1xf32>
    %c0_12 = arith.constant 0 : index
    %c0_13 = arith.constant 0 : index
    %27 = vector.load %arg13[%c0_12, %c0_13] : memref<256x1xf32, #tpu.memory_space<vmem>>, vector<256x1xf32>
    tpu.vector_store %arg13[%c0_12, %c0_13], %26 {strides = array<i32>} : memref<256x1xf32, #tpu.memory_space<vmem>>, vector<256x1xf32>,
    %c0_14 = arith.constant 0 : index
    %c0_15 = arith.constant 0 : index
    %28 = vector.load %arg14[%c0_14, %c0_15] : memref<256x128xf32, #tpu.memory_space<vmem>>, vector<256x128xf32>
    %29 = vector.broadcast %18 : vector<256x1xf32> to vector<256x128xf32>
    %30 = arith.mulf %29, %28 : vector<256x128xf32>
    %31 = arith.truncf %21 : vector<256x512xf32> to vector<256x512xbf16>
    %cst_16 = arith.constant dense<0.000000e+00> : vector<256x128xf32>
    %32 = tpu.matmul %31, %10, %cst_16 {dimension_numbers = #tpu.dot_dimension_numbers<[1], [0], [0], [1], [0, 0, 1, 1], [], []>} : vector<256x512xbf16>, vector<512x128xbf16>, vector<256x128xf32> -> vector<256x128xf32>
    %33 = arith.addf %30, %32 : vector<256x128xf32>
    %c0_17 = arith.constant 0 : index
    %c0_18 = arith.constant 0 : index
    %34 = vector.load %arg14[%c0_17, %c0_18] : memref<256x128xf32, #tpu.memory_space<vmem>>, vector<256x128xf32>
    tpu.vector_store %arg14[%c0_17, %c0_18], %33 {strides = array<i32>} : memref<256x128xf32, #tpu.memory_space<vmem>>, vector<256x128xf32>,
    %c0_19 = arith.constant 0 : index
    %c0_20 = arith.constant 0 : index
    %35 = vector.load %arg12[%c0_19, %c0_20] : memref<256x1xf32, #tpu.memory_space<vmem>>, vector<256x1xf32>
    tpu.vector_store %arg12[%c0_19, %c0_20], %16 {strides = array<i32>} : memref<256x1xf32, #tpu.memory_space<vmem>>, vector<256x1xf32>,
    %c0_i32_21 = arith.constant 0 : i32
    %36 = arith.cmpi eq, %arg2, %c0_i32_21 : i32
    %37 = arith.extui %36 : i1 to i32
    %c0_i32_22 = arith.constant 0 : i32
    %38 = arith.cmpi ne, %37, %c0_i32_22 : i32
    scf.if %38 {
      %c0_23 = arith.constant 0 : index
      %c0_24 = arith.constant 0 : index
      %39 = vector.load %arg14[%c0_23, %c0_24] : memref<256x128xf32, #tpu.memory_space<vmem>>, vector<256x128xf32>
      %c0_25 = arith.constant 0 : index
      %c0_26 = arith.constant 0 : index
      %40 = vector.load %arg13[%c0_25, %c0_26] : memref<256x1xf32, #tpu.memory_space<vmem>>, vector<256x1xf32>
      %41 = tpu.reciprocal %40 {approx = true} : vector<256x1xf32> -> vector<256x1xf32>
      %42 = vector.broadcast %41 : vector<256x1xf32> to vector<256x128xf32>
      %43 = arith.mulf %39, %42 : vector<256x128xf32>
      %c0_27 = arith.constant 0 : index
      %c0_28 = arith.constant 0 : index
      %44 = vector.load %arg8[%c0_27, %c0_28] : memref<128x128xbf16, #tpu.memory_space<vmem>>, vector<128x128xbf16>
      %45 = arith.truncf %43 : vector<256x128xf32> to vector<256x128xbf16>
      %cst_29 = arith.constant dense<0.000000e+00> : vector<128x256xf32>
      %46 = tpu.matmul %44, %45, %cst_29 {dimension_numbers = #tpu.dot_dimension_numbers<[1], [1], [0], [0], [0, 0, 1, 0], [], []>} : vector<128x128xbf16>, vector<256x128xbf16>, vector<128x256xf32> -> vector<128x256xf32>
      %c0_30 = arith.constant 0 : index
      %c0_31 = arith.constant 0 : index
      %47 = vector.load %arg9[%c0_30, %c0_31] : memref<128x1xf32, #tpu.memory_space<vmem>>, vector<128x1xf32>
      %48 = vector.broadcast %47 : vector<128x1xf32> to vector<128x256xf32>
      %49 = arith.addf %46, %48 : vector<128x256xf32>
      %c0_32 = arith.constant 0 : index
      %c0_33 = arith.constant 0 : index
      %c0_34 = arith.constant 0 : index
      %50 = vector.load %arg3[%c0_32, %c0_33, %c0_34] : memref<1x128x256xf32, #tpu.memory_space<vmem>>, vector<1x128x256xf32>
      %51 = vector.shape_cast %50 : vector<1x128x256xf32> to vector<128x256xf32>
      %52 = arith.addf %49, %51 : vector<128x256xf32>
      %c0_35 = arith.constant 0 : index
      %c0_36 = arith.constant 0 : index
      %c0_37 = arith.constant 0 : index
      %53 = vector.load %arg10[%c0_35, %c0_36, %c0_37] : memref<1x128x256xf32, #tpu.memory_space<vmem>>, vector<1x128x256xf32>
      %54 = vector.shape_cast %53 : vector<1x128x256xf32> to vector<128x256xf32>
      %55 = vector.shape_cast %52 : vector<128x256xf32> to vector<1x128x256xf32>
      tpu.vector_store %arg10[%c0_35, %c0_36, %c0_37], %55 {strides = array<i32>} : memref<1x128x256xf32, #tpu.memory_space<vmem>>, vector<1x128x256xf32>,
    } else {
    }
    return
  }
  func.func @transform_0(%arg0: i32, %arg1: i32, %arg2: i32) -> (i32, i32, i32) {
    %c0_i32 = arith.constant 0 : i32
    %c0_i32_0 = arith.constant 0 : i32
    return %arg0, %c0_i32, %arg1 : i32, i32, i32
  }
  func.func @transform_1(%arg0: i32, %arg1: i32, %arg2: i32) -> (i32, i32, i32) {
    %c0_i32 = arith.constant 0 : i32
    %c0_i32_0 = arith.constant 0 : i32
    %c0_i32_1 = arith.constant 0 : i32
    return %arg0, %c0_i32, %c0_i32_0 : i32, i32, i32
  }
  func.func @transform_2(%arg0: i32, %arg1: i32, %arg2: i32) -> (i32, i32, i32) {
    %c0_i32 = arith.constant 0 : i32
    %c0_i32_0 = arith.constant 0 : i32
    %c0_i32_1 = arith.constant 0 : i32
    return %arg0, %c0_i32, %c0_i32_0 : i32, i32, i32
  }
  func.func @transform_3(%arg0: i32, %arg1: i32, %arg2: i32) -> (i32, i32) {
    %c0_i32 = arith.constant 0 : i32
    %c0_i32_0 = arith.constant 0 : i32
    %c0_i32_1 = arith.constant 0 : i32
    return %c0_i32, %c0_i32_0 : i32, i32
  }
  func.func @transform_4(%arg0: i32, %arg1: i32, %arg2: i32) -> (i32, i32) {
    %c0_i32 = arith.constant 0 : i32
    %c0_i32_0 = arith.constant 0 : i32
    %c0_i32_1 = arith.constant 0 : i32
    return %c0_i32, %c0_i32_0 : i32, i32
  }
  func.func @transform_5(%arg0: i32, %arg1: i32, %arg2: i32) -> (i32, i32) {
    %c0_i32 = arith.constant 0 : i32
    %c0_i32_0 = arith.constant 0 : i32
    %c0_i32_1 = arith.constant 0 : i32
    return %c0_i32, %c0_i32_0 : i32, i32
  }
  func.func @transform_6(%arg0: i32, %arg1: i32, %arg2: i32) -> (i32, i32) {
    %c0_i32 = arith.constant 0 : i32
    %c0_i32_0 = arith.constant 0 : i32
    %c0_i32_1 = arith.constant 0 : i32
    return %c0_i32, %c0_i32_0 : i32, i32
  }
  func.func @transform_7(%arg0: i32, %arg1: i32, %arg2: i32) -> (i32, i32, i32) {
    %c0_i32 = arith.constant 0 : i32
    %c0_i32_0 = arith.constant 0 : i32
    return %arg0, %c0_i32, %arg1 : i32, i32, i32
  }
}

</mosaic_0001>

<llo_original>
// kernel: nl_block_nd_embedded.2
$region0: #{nl_block_nd_embedded.2}
  #allocation0 [shape = 'u32[]', space=smem, size = 0x4, offset = 0x4, fixed_abs, tag = 'smem constant byte address 0x4 - core index']
  #allocation1 [shape = 'u32[144,128]{1,0:T(1,128)}', space=vmem, size = 0x12000, scoped, tag = 'internal scratch']
  %s0 = inlined_call_operand.vmem [shape: f32[2,128,512], index: 0, kind: input, shape index: {}]
  %s1 = inlined_call_operand.vmem [shape: bf16[128,256], index: 1, kind: input, shape index: {}]
  %s2 = inlined_call_operand.vmem [shape: f32[1,256], index: 2, kind: input, shape index: {}]
  %s3 = inlined_call_operand.vmem [shape: bf16[2,512,128], index: 3, kind: output, shape index: {0}]
  %s4 = inlined_call_operand.vmem [shape: bf16[2,512,128], index: 4, kind: output, shape index: {1}]
  %5 = xla_tuple %s3, %s4
  %s6 = sld [smem:[#allocation0]]
  $region53: #{nl_block_nd_embedded.2} parent=0
    _
  %s8 = ssub.s32 1, %s6
  %s9 = scalar_select 0, %s8, %s6
  loop: start=0, step=1, limit=4
  $region2: #{nl_block_nd_embedded.2} parent=0 // loop_pre_header
    _
  $region3: #{nl_block_nd_embedded.2} parent=0 // loop_header
    %s11 = sphi 0, %s15
    %p12 = scmp.ge.s32.totalorder %s11, 4
    %s18 = sphi 0, %s30
    %s19 = sphi 0, %s26
    %s20 = sphi 0, %s18
    %s21 = sphi 0, %s19
    %s22 = sphi 0, %s20
    %s23 = sphi 0, %s21
    %s35 = sphi 0, %s37
    %s38 = sphi 0, %s35
    %s39 = sphi 0, %s38
    %s55 = sphi 0, %s39
    %s59 = sphi 0, %s59
    %s61 = sphi 0, %s59
    %s62 = sphi 0, %s61
    %s76 = sphi 0, %s62
    %s80 = sphi 0, %s80
    %s82 = sphi 0, %s80
    %s83 = sphi 0, %s82
    %s97 = sphi 0, %s83
    %s105 = sphi 0, %s107
    %s108 = sphi 0, %s105
    %s109 = sphi 0, %s108
    %s125 = sphi 0, %s109
    %s133 = sphi 0, %s135
    %s136 = sphi 0, %s133
    %s137 = sphi 0, %s136
    %s153 = sphi 0, %s137
  $region4: #{nl_block_nd_embedded.2} parent=0 // loop_header_branch
    %14 = sbr.rel (%p12) target = $region8
  $region5: #{nl_block_nd_embedded.2} parent=0 // loop_body
    %s16 = ssub.s32 %s11, 1
    %s17 = ssub.s32 %s11, 2
    %s24 = sadd.s32 1, %s19
    %p25 = scmp.ge.s32.totalorder %s24, 1
    %s26 = scalar_select %p25, 0, %s24
    %s27 = sadd.s32 1, %s18
    %s28 = scalar_select %p25, %s27, %s18
    %p29 = scmp.ge.s32.totalorder %s28, 2
    %s30 = scalar_select %p29, 0, %s28
    %s31 = ssub.s32 %s18, %s30
    %s32 = ssub.s32 %s19, %s26
    %s33 = sor.u32 %s31, %s32
    %p34 = scmp.eq.s32.totalorder %s33, 0
    %s36 = sadd.s32 %s35, 1
    %s37 = scalar_select %p34, %s35, %s36
    %p40 = pneg %p34
    %p41 = scmp.eq.s32.totalorder %s11, 1
    %p42 = por %p40, %p41
    %p43 = scmp.ne.s32.totalorder %s35, %s38
    %p44 = scmp.eq.s32.totalorder %s11, 0
    %p45 = por %p43, %p44
    %p46 = scmp.ne.s32.totalorder %s35, %s38
    %p47 = scmp.eq.s32.totalorder %s16, 1
    %p48 = por %p46, %p47
    %p49 = scmp.ne.s32.totalorder %s38, %s39
    %p50 = scmp.eq.s32.totalorder %s16, 0
    %p51 = por %p49, %p50
    %p52 = scmp.ne.s32.totalorder %s38, %s39
    %p53 = scmp.eq.s32.totalorder %s17, 1
    %p54 = por %p52, %p53
    %p56 = scmp.ne.s32.totalorder %s39, %s55
    %p57 = scmp.eq.s32.totalorder %s17, 0
    %p58 = por %p56, %p57
    %s60 = sadd.s32 %s59, 1
    %p63 = scmp.eq.s32.totalorder %s11, 1
    %p64 = scmp.ne.s32.totalorder %s59, %s61
    %p65 = scmp.eq.s32.totalorder %s11, 0
    %p66 = por %p64, %p65
    %p67 = scmp.ne.s32.totalorder %s59, %s61
    %p68 = scmp.eq.s32.totalorder %s16, 1
    %p69 = por %p67, %p68
    %p70 = scmp.ne.s32.totalorder %s61, %s62
    %p71 = scmp.eq.s32.totalorder %s16, 0
    %p72 = por %p70, %p71
    %p73 = scmp.ne.s32.totalorder %s61, %s62
    %p74 = scmp.eq.s32.totalorder %s17, 1
    %p75 = por %p73, %p74
    %p77 = scmp.ne.s32.totalorder %s62, %s76
    %p78 = scmp.eq.s32.totalorder %s17, 0
    %p79 = por %p77, %p78
    %s81 = sadd.s32 %s80, 1
    %p84 = scmp.eq.s32.totalorder %s11, 1
    %p85 = scmp.ne.s32.totalorder %s80, %s82
    %p86 = scmp.eq.s32.totalorder %s11, 0
    %p87 = por %p85, %p86
    %p88 = scmp.ne.s32.totalorder %s80, %s82
    %p89 = scmp.eq.s32.totalorder %s16, 1
    %p90 = por %p88, %p89
    %p91 = scmp.ne.s32.totalorder %s82, %s83
    %p92 = scmp.eq.s32.totalorder %s16, 0
    %p93 = por %p91, %p92
    %p94 = scmp.ne.s32.totalorder %s82, %s83
    %p95 = scmp.eq.s32.totalorder %s17, 1
    %p96 = por %p94, %p95
    %p98 = scmp.ne.s32.totalorder %s83, %s97
    %p99 = scmp.eq.s32.totalorder %s17, 0
    %p100 = por %p98, %p99
    %s101 = ssub.s32 %s18, %s30
    %s102 = ssub.s32 %s19, %s26
    %s103 = sor.u32 %s101, %s102
    %p104 = scmp.eq.s32.totalorder %s103, 0
    %s106 = sadd.s32 %s105, 1
    %s107 = scalar_select %p104, %s105, %s106
    %p110 = pneg %p104
    %p111 = scmp.eq.s32.totalorder %s11, 1
    %p112 = por %p110, %p111
    %p113 = scmp.ne.s32.totalorder %s105, %s108
    %p114 = scmp.eq.s32.totalorder %s11, 0
    %p115 = por %p113, %p114
    %p116 = scmp.ne.s32.totalorder %s105, %s108
    %p117 = scmp.eq.s32.totalorder %s16, 1
    %p118 = por %p116, %p117
    %p119 = scmp.ne.s32.totalorder %s108, %s109
    %p120 = scmp.eq.s32.totalorder %s16, 0
    %p121 = por %p119, %p120
    %p122 = scmp.ne.s32.totalorder %s108, %s109
    %p123 = scmp.eq.s32.totalorder %s17, 1
    %p124 = por %p122, %p123
    %p126 = scmp.ne.s32.totalorder %s109, %s125
    %p127 = scmp.eq.s32.totalorder %s17, 0
    %p128 = por %p126, %p127
    %s129 = ssub.s32 %s18, %s30
    %s130 = ssub.s32 %s19, %s26
    %s131 = sor.u32 %s129, %s130
    %p132 = scmp.eq.s32.totalorder %s131, 0
    %s134 = sadd.s32 %s133, 1
    %s135 = scalar_select %p132, %s133, %s134
    %p138 = pneg %p132
    %p139 = scmp.eq.s32.totalorder %s11, 1
    %p140 = por %p138, %p139
    %p141 = scmp.ne.s32.totalorder %s133, %s136
    %p142 = scmp.eq.s32.totalorder %s11, 0
    %p143 = por %p141, %p142
    %p144 = scmp.ne.s32.totalorder %s133, %s136
    %p145 = scmp.eq.s32.totalorder %s16, 1
    %p146 = por %p144, %p145
    %p147 = scmp.ne.s32.totalorder %s136, %s137
    %p148 = scmp.eq.s32.totalorder %s16, 0
    %p149 = por %p147, %p148
    %p150 = scmp.ne.s32.totalorder %s136, %s137
    %p151 = scmp.eq.s32.totalorder %s17, 1
    %p152 = por %p150, %p151
    %p154 = scmp.ne.s32.totalorder %s137, %s153
    %p155 = scmp.eq.s32.totalorder %s17, 0
    %p156 = por %p154, %p155
    %p157 = scmp.le.s32.totalorder 1, %s11
    %p158 = scmp.lt.s32.totalorder %s11, 3
    %p159 = pnand %p157, %p158
    %p160 = pneg %p159
    // Predicated region
    $region9: #{nl_block_nd_embedded.2} parent=5 // pred_check
      _
    $region10: #{nl_block_nd_embedded.2} parent=5 // pred_check_branch
      %162 = sbr.rel (%p159) target = $region12
    $region11: #{nl_block_nd_embedded.2} parent=5 // pred_region
      %s163 = ssub.s32 %s11, 1
      // Predicated region
      $region13: #{nl_block_nd_embedded.2} parent=11 // pred_check
        %p164 = pneg %p72
      $region14: #{nl_block_nd_embedded.2} parent=11 // pred_check_branch
        %166 = sbr.rel (%p164) target = $region16
      $region15: #{nl_block_nd_embedded.2} parent=11 // pred_region
        _
      $region16: #{nl_block_nd_embedded.2} parent=11 // pred_fallthru
        _
      // Predicated region
      $region17: #{nl_block_nd_embedded.2} parent=11 // pred_check
        %p167 = pneg %p93
      $region18: #{nl_block_nd_embedded.2} parent=11 // pred_check_branch
        %169 = sbr.rel (%p167) target = $region20
      $region19: #{nl_block_nd_embedded.2} parent=11 // pred_region
        _
      $region20: #{nl_block_nd_embedded.2} parent=11 // pred_fallthru
        _
    $region12: #{nl_block_nd_embedded.2} parent=5 // pred_fallthru
      _
    %p170 = scmp.lt.s32.totalorder %s11, 2
    // Predicated region
    $region21: #{nl_block_nd_embedded.2} parent=5 // pred_check
      %p171 = pneg %p170
    $region22: #{nl_block_nd_embedded.2} parent=5 // pred_check_branch
      %173 = sbr.rel (%p171) target = $region24
    $region23: #{nl_block_nd_embedded.2} parent=5 // pred_region
      // Predicated region
      $region25: #{nl_block_nd_embedded.2} parent=23 // pred_check
        %p174 = pneg %p45
      $region26: #{nl_block_nd_embedded.2} parent=23 // pred_check_branch
        %176 = sbr.rel (%p174) target = $region28
      $region27: #{nl_block_nd_embedded.2} parent=23 // pred_region
        %s177 = smul.u32 4, %s19
        %p178 = scmp.lt.s32.totalorder %s18, 1
        %s179 = scalar_select %p178, %s18, 1
        %p180 = scmp.lt.s32.totalorder %s177, 3
        %s181 = scalar_select %p180, %s177, 3
        %s182 = smul.addr %s179, 64
        %s183 = sadd.s32 %s181, %s182
        %s184 = smul.addr %s183, 8
        %s185 = scalar_lea.vmem %s0, %s184
        %s186 = smul.u32 4, %s19
      $region28: #{nl_block_nd_embedded.2} parent=23 // pred_fallthru
        _
    $region24: #{nl_block_nd_embedded.2} parent=5 // pred_fallthru
      _
    %p187 = scmp.le.s32.totalorder 1, %s11
    %p188 = scmp.lt.s32.totalorder %s11, 3
    %p189 = pnand %p187, %p188
    %p190 = pneg %p189
    // Predicated region
    $region29: #{nl_block_nd_embedded.2} parent=5 // pred_check
      _
    $region30: #{nl_block_nd_embedded.2} parent=5 // pred_check_branch
      %192 = sbr.rel (%p189) target = $region32
    $region31: #{nl_block_nd_embedded.2} parent=5 // pred_region
      %s193 = ssub.s32 %s11, 1
      %s194 = smul.u32 4, %s21
      %p195 = scmp.lt.s32.totalorder %s20, 1
      %s196 = scalar_select %p195, %s20, 1
      %p197 = scmp.lt.s32.totalorder %s194, 3
      %s198 = scalar_select %p197, %s194, 3
      %s199 = smul.addr %s196, 64
      %s200 = sadd.s32 %s198, %s199
      %s201 = smul.addr %s200, 8
      %s202 = scalar_lea.vmem %s0, %s201
      %p203 = pneg %p51
      %p204 = pneg %p48
      %p205 = pneg %p72
      %p206 = pneg %p69
      %p207 = pneg %p93
      %p208 = pneg %p90
      %p209 = pneg %p121
      %p210 = pneg %p118
      %s211 = smul.u32 64, %s21
      %p212 = scmp.lt.s32.totalorder %s20, 1
      %s213 = scalar_select %p212, %s20, 1
      %p214 = scmp.lt.s32.totalorder %s211, 63
      %s215 = scalar_select %p214, %s211, 63
      %s216 = smul.addr %s213, 64
      %s217 = sadd.s32 %s215, %s216
      %s218 = smul.addr %s217, 4
      %s219 = scalar_lea.vmem %s3, %s218
      %p220 = pneg %p149
      %p221 = pneg %p146
      %s222 = smul.u32 64, %s21
      %p223 = scmp.lt.s32.totalorder %s20, 1
      %s224 = scalar_select %p223, %s20, 1
      %p225 = scmp.lt.s32.totalorder %s222, 63
      %s226 = scalar_select %p225, %s222, 63
      %s227 = smul.addr %s224, 64
      %s228 = sadd.s32 %s226, %s227
      %s229 = smul.addr %s228, 4
      %s230 = scalar_lea.vmem %s4, %s229
      %s231 = smul.u32 4, %s21
      %p232 = scmp.lt.s32.totalorder %s20, 1
      %s233 = scalar_select %p232, %s20, 1
      %p234 = scmp.lt.s32.totalorder %s231, 3
      %s235 = scalar_select %p234, %s231, 3
      %s236 = smul.addr %s233, 64
      %s237 = sadd.s32 %s235, %s236
      %s238 = smul.addr %s237, 8
      %s239 = scalar_lea.vmem %s0, %s238
      %s240 = smul.u32 4, %s21
      %s241 = smul.u32 64, %s21
      %p242 = scmp.lt.s32.totalorder %s20, 1
      %s243 = scalar_select %p242, %s20, 1
      %p244 = scmp.lt.s32.totalorder %s241, 63
      %s245 = scalar_select %p244, %s241, 63
      %s246 = smul.addr %s243, 64
      %s247 = sadd.s32 %s245, %s246
      %s248 = smul.addr %s247, 4
      %s249 = scalar_lea.vmem %s3, %s248
      %s250 = smul.u32 64, %s21
      %s251 = smul.u32 64, %s21
      %p252 = scmp.lt.s32.totalorder %s20, 1
      %s253 = scalar_select %p252, %s20, 1
      %p254 = scmp.lt.s32.totalorder %s251, 63
      %s255 = scalar_select %p254, %s251, 63
      %s256 = smul.addr %s253, 64
      %s257 = sadd.s32 %s255, %s256
      %s258 = smul.addr %s257, 4
      %s259 = scalar_lea.vmem %s4, %s258
      %s260 = smul.u32 64, %s21
      %v262 = vld [vmem:[%s239] sm:$0xff]
      %v263 = vld [vmem:[%s239 + $0x8] sm:$0xff]
      %v264 = vld [vmem:[%s239 + $0x10] sm:$0xff]
      %v265 = vld [vmem:[%s239 + $0x18] sm:$0xff]
      %v266 = vld [vmem:[%s239 + $0x20] sm:$0xff]
      %v267 = vld [vmem:[%s239 + $0x28] sm:$0xff]
      %v268 = vld [vmem:[%s239 + $0x30] sm:$0xff]
      %v269 = vld [vmem:[%s239 + $0x38] sm:$0xff]
      %v270 = vld [vmem:[%s239 + $0x40] sm:$0xff]
      %v271 = vld [vmem:[%s239 + $0x48] sm:$0xff]
      %v272 = vld [vmem:[%s239 + $0x50] sm:$0xff]
      %v273 = vld [vmem:[%s239 + $0x58] sm:$0xff]
      %v274 = vld [vmem:[%s239 + $0x60] sm:$0xff]
      %v275 = vld [vmem:[%s239 + $0x68] sm:$0xff]
      %v276 = vld [vmem:[%s239 + $0x70] sm:$0xff]
      %v277 = vld [vmem:[%s239 + $0x78] sm:$0xff]
      %v278 = vld [vmem:[%s239 + $0x80] sm:$0xff]
      %v279 = vld [vmem:[%s239 + $0x88] sm:$0xff]
      %v280 = vld [vmem:[%s239 + $0x90] sm:$0xff]
      %v281 = vld [vmem:[%s239 + $0x98] sm:$0xff]
      %v282 = vld [vmem:[%s239 + $0xa0] sm:$0xff]
      %v283 = vld [vmem:[%s239 + $0xa8] sm:$0xff]
      %v284 = vld [vmem:[%s239 + $0xb0] sm:$0xff]
      %v285 = vld [vmem:[%s239 + $0xb8] sm:$0xff]
      %v286 = vld [vmem:[%s239 + $0xc0] sm:$0xff]
      %v287 = vld [vmem:[%s239 + $0xc8] sm:$0xff]
      %v288 = vld [vmem:[%s239 + $0xd0] sm:$0xff]
      %v289 = vld [vmem:[%s239 + $0xd8] sm:$0xff]
      %v290 = vld [vmem:[%s239 + $0xe0] sm:$0xff]
      %v291 = vld [vmem:[%s239 + $0xe8] sm:$0xff]
      %v292 = vld [vmem:[%s239 + $0xf0] sm:$0xff]
      %v293 = vld [vmem:[%s239 + $0xf8] sm:$0xff]
      %v294 = vld [vmem:[%s239 + $0x100] sm:$0xff]
      %v295 = vld [vmem:[%s239 + $0x108] sm:$0xff]
      %v296 = vld [vmem:[%s239 + $0x110] sm:$0xff]
      %v297 = vld [vmem:[%s239 + $0x118] sm:$0xff]
      %v298 = vld [vmem:[%s239 + $0x120] sm:$0xff]
      %v299 = vld [vmem:[%s239 + $0x128] sm:$0xff]
      %v300 = vld [vmem:[%s239 + $0x130] sm:$0xff]
      %v301 = vld [vmem:[%s239 + $0x138] sm:$0xff]
      %v302 = vld [vmem:[%s239 + $0x140] sm:$0xff]
      %v303 = vld [vmem:[%s239 + $0x148] sm:$0xff]
      %v304 = vld [vmem:[%s239 + $0x150] sm:$0xff]
      %v305 = vld [vmem:[%s239 + $0x158] sm:$0xff]
      %v306 = vld [vmem:[%s239 + $0x160] sm:$0xff]
      %v307 = vld [vmem:[%s239 + $0x168] sm:$0xff]
      %v308 = vld [vmem:[%s239 + $0x170] sm:$0xff]
      %v309 = vld [vmem:[%s239 + $0x178] sm:$0xff]
      %v310 = vld [vmem:[%s239 + $0x180] sm:$0xff]
      %v311 = vld [vmem:[%s239 + $0x188] sm:$0xff]
      %v312 = vld [vmem:[%s239 + $0x190] sm:$0xff]
      %v313 = vld [vmem:[%s239 + $0x198] sm:$0xff]
      %v314 = vld [vmem:[%s239 + $0x1a0] sm:$0xff]
      %v315 = vld [vmem:[%s239 + $0x1a8] sm:$0xff]
      %v316 = vld [vmem:[%s239 + $0x1b0] sm:$0xff]
      %v317 = vld [vmem:[%s239 + $0x1b8] sm:$0xff]
      %v318 = vld [vmem:[%s239 + $0x1c0] sm:$0xff]
      %v319 = vld [vmem:[%s239 + $0x1c8] sm:$0xff]
      %v320 = vld [vmem:[%s239 + $0x1d0] sm:$0xff]
      %v321 = vld [vmem:[%s239 + $0x1d8] sm:$0xff]
      %v322 = vld [vmem:[%s239 + $0x1e0] sm:$0xff]
      %v323 = vld [vmem:[%s239 + $0x1e8] sm:$0xff]
      %v324 = vld [vmem:[%s239 + $0x1f0] sm:$0xff]
      %v325 = vld [vmem:[%s239 + $0x1f8] sm:$0xff]
      %326 = vxpose.xlu0.b32.start [1/16] %v262, 128
      %327 = vxpose.xlu0.b32.cont [2/16] %v266, 128
      %328 = vxpose.xlu0.b32.cont [3/16] %v270, 128
      %329 = vxpose.xlu0.b32.cont [4/16] %v274, 128
      %330 = vxpose.xlu0.b32.cont [5/16] %v278, 128
      %331 = vxpose.xlu0.b32.cont [6/16] %v282, 128
      %332 = vxpose.xlu0.b32.cont [7/16] %v286, 128
      %333 = vxpose.xlu0.b32.cont [8/16] %v290, 128
      %334 = vxpose.xlu0.b32.cont [9/16] %v294, 128
      %335 = vxpose.xlu0.b32.cont [10/16] %v298, 128
      %336 = vxpose.xlu0.b32.cont [11/16] %v302, 128
      %337 = vxpose.xlu0.b32.cont [12/16] %v306, 128
      %338 = vxpose.xlu0.b32.cont [13/16] %v310, 128
      %339 = vxpose.xlu0.b32.cont [14/16] %v314, 128
      %340 = vxpose.xlu0.b32.cont [15/16] %v318, 128
      %341 = vxpose.xlu0.b32.end [16/16] %v322, 128
      %v342 = vpop.trf.xlu0
      %v343 = vpop.trf.xlu0
      %v344 = vpop.trf.xlu0
      %v345 = vpop.trf.xlu0
      %v346 = vpop.trf.xlu0
      %v347 = vpop.trf.xlu0
      %v348 = vpop.trf.xlu0
      %v349 = vpop.trf.xlu0
      %v350 = vpop.trf.xlu0
      %v351 = vpop.trf.xlu0
      %v352 = vpop.trf.xlu0
      %v353 = vpop.trf.xlu0
      %v354 = vpop.trf.xlu0
      %v355 = vpop.trf.xlu0
      %v356 = vpop.trf.xlu0
      %v357 = vpop.trf.xlu0
      %358 = vxpose.xlu0.b32.start [1/16] %v263, 128
      %359 = vxpose.xlu0.b32.cont [2/16] %v267, 128
      %360 = vxpose.xlu0.b32.cont [3/16] %v271, 128
      %361 = vxpose.xlu0.b32.cont [4/16] %v275, 128
      %362 = vxpose.xlu0.b32.cont [5/16] %v279, 128
      %363 = vxpose.xlu0.b32.cont [6/16] %v283, 128
      %364 = vxpose.xlu0.b32.cont [7/16] %v287, 128
      %365 = vxpose.xlu0.b32.cont [8/16] %v291, 128
      %366 = vxpose.xlu0.b32.cont [9/16] %v295, 128
      %367 = vxpose.xlu0.b32.cont [10/16] %v299, 128
      %368 = vxpose.xlu0.b32.cont [11/16] %v303, 128
      %369 = vxpose.xlu0.b32.cont [12/16] %v307, 128
      %370 = vxpose.xlu0.b32.cont [13/16] %v311, 128
      %371 = vxpose.xlu0.b32.cont [14/16] %v315, 128
      %372 = vxpose.xlu0.b32.cont [15/16] %v319, 128
      %373 = vxpose.xlu0.b32.end [16/16] %v323, 128
      %v374 = vpop.trf.xlu0
      %v375 = vpop.trf.xlu0
      %v376 = vpop.trf.xlu0
      %v377 = vpop.trf.xlu0
      %v378 = vpop.trf.xlu0
      %v379 = vpop.trf.xlu0
      %v380 = vpop.trf.xlu0
      %v381 = vpop.trf.xlu0
      %v382 = vpop.trf.xlu0
      %v383 = vpop.trf.xlu0
      %v384 = vpop.trf.xlu0
      %v385 = vpop.trf.xlu0
      %v386 = vpop.trf.xlu0
      %v387 = vpop.trf.xlu0
      %v388 = vpop.trf.xlu0
      %v389 = vpop.trf.xlu0
      %390 = vxpose.xlu0.b32.start [1/16] %v264, 128
      %391 = vxpose.xlu0.b32.cont [2/16] %v268, 128
      %392 = vxpose.xlu0.b32.cont [3/16] %v272, 128
      %393 = vxpose.xlu0.b32.cont [4/16] %v276, 128
      %394 = vxpose.xlu0.b32.cont [5/16] %v280, 128
      %395 = vxpose.xlu0.b32.cont [6/16] %v284, 128
      %396 = vxpose.xlu0.b32.cont [7/16] %v288, 128
      %397 = vxpose.xlu0.b32.cont [8/16] %v292, 128
      %398 = vxpose.xlu0.b32.cont [9/16] %v296, 128
      %399 = vxpose.xlu0.b32.cont [10/16] %v300, 128
      %400 = vxpose.xlu0.b32.cont [11/16] %v304, 128
      %401 = vxpose.xlu0.b32.cont [12/16] %v308, 128
      %402 = vxpose.xlu0.b32.cont [13/16] %v312, 128
      %403 = vxpose.xlu0.b32.cont [14/16] %v316, 128
      %404 = vxpose.xlu0.b32.cont [15/16] %v320, 128
      %405 = vxpose.xlu0.b32.end [16/16] %v324, 128
      %v406 = vpop.trf.xlu0
      %v407 = vpop.trf.xlu0
      %v408 = vpop.trf.xlu0
      %v409 = vpop.trf.xlu0
      %v410 = vpop.trf.xlu0
      %v411 = vpop.trf.xlu0
      %v412 = vpop.trf.xlu0
      %v413 = vpop.trf.xlu0
      %v414 = vpop.trf.xlu0
      %v415 = vpop.trf.xlu0
      %v416 = vpop.trf.xlu0
      %v417 = vpop.trf.xlu0
      %v418 = vpop.trf.xlu0
      %v419 = vpop.trf.xlu0
      %v420 = vpop.trf.xlu0
      %v421 = vpop.trf.xlu0
      %422 = vxpose.xlu0.b32.start [1/16] %v265, 128
      %423 = vxpose.xlu0.b32.cont [2/16] %v269, 128
      %424 = vxpose.xlu0.b32.cont [3/16] %v273, 128
      %425 = vxpose.xlu0.b32.cont [4/16] %v277, 128
      %426 = vxpose.xlu0.b32.cont [5/16] %v281, 128
      %427 = vxpose.xlu0.b32.cont [6/16] %v285, 128
      %428 = vxpose.xlu0.b32.cont [7/16] %v289, 128
      %429 = vxpose.xlu0.b32.cont [8/16] %v293, 128
      %430 = vxpose.xlu0.b32.cont [9/16] %v297, 128
      %431 = vxpose.xlu0.b32.cont [10/16] %v301, 128
      %432 = vxpose.xlu0.b32.cont [11/16] %v305, 128
      %433 = vxpose.xlu0.b32.cont [12/16] %v309, 128
      %434 = vxpose.xlu0.b32.cont [13/16] %v313, 128
      %435 = vxpose.xlu0.b32.cont [14/16] %v317, 128
      %436 = vxpose.xlu0.b32.cont [15/16] %v321, 128
      %437 = vxpose.xlu0.b32.end [16/16] %v325, 128
      %v438 = vpop.trf.xlu0
      %v439 = vpop.trf.xlu0
      %v440 = vpop.trf.xlu0
      %v441 = vpop.trf.xlu0
      %v442 = vpop.trf.xlu0
      %v443 = vpop.trf.xlu0
      %v444 = vpop.trf.xlu0
      %v445 = vpop.trf.xlu0
      %v446 = vpop.trf.xlu0
      %v447 = vpop.trf.xlu0
      %v448 = vpop.trf.xlu0
      %v449 = vpop.trf.xlu0
      %v450 = vpop.trf.xlu0
      %v451 = vpop.trf.xlu0
      %v452 = vpop.trf.xlu0
      %v453 = vpop.trf.xlu0
      %v454 = vpack.c.bf16 %v343, %v342
      %v455 = vpack.c.bf16 %v345, %v344
      %v456 = vpack.c.bf16 %v347, %v346
      %v457 = vpack.c.bf16 %v349, %v348
      %v458 = vpack.c.bf16 %v351, %v350
      %v459 = vpack.c.bf16 %v353, %v352
      %v460 = vpack.c.bf16 %v355, %v354
      %v461 = vpack.c.bf16 %v357, %v356
      %v462 = vpack.c.bf16 %v375, %v374
      %v463 = vpack.c.bf16 %v377, %v376
      %v464 = vpack.c.bf16 %v379, %v378
      %v465 = vpack.c.bf16 %v381, %v380
      %v466 = vpack.c.bf16 %v383, %v382
      %v467 = vpack.c.bf16 %v385, %v384
      %v468 = vpack.c.bf16 %v387, %v386
      %v469 = vpack.c.bf16 %v389, %v388
      %v470 = vpack.c.bf16 %v407, %v406
      %v471 = vpack.c.bf16 %v409, %v408
      %v472 = vpack.c.bf16 %v411, %v410
      %v473 = vpack.c.bf16 %v413, %v412
      %v474 = vpack.c.bf16 %v415, %v414
      %v475 = vpack.c.bf16 %v417, %v416
      %v476 = vpack.c.bf16 %v419, %v418
      %v477 = vpack.c.bf16 %v421, %v420
      %v478 = vpack.c.bf16 %v439, %v438
      %v479 = vpack.c.bf16 %v441, %v440
      %v480 = vpack.c.bf16 %v443, %v442
      %v481 = vpack.c.bf16 %v445, %v444
      %v482 = vpack.c.bf16 %v447, %v446
      %v483 = vpack.c.bf16 %v449, %v448
      %v484 = vpack.c.bf16 %v451, %v450
      %v485 = vpack.c.bf16 %v453, %v452
      %v486 = vld [vmem:[%s1] sm:$0xff]
      %v487 = vld [vmem:[%s1 + $0x8] sm:$0xff]
      %v488 = vld [vmem:[%s1 + $0x10] sm:$0xff]
      %v489 = vld [vmem:[%s1 + $0x18] sm:$0xff]
      %v490 = vld [vmem:[%s1 + $0x20] sm:$0xff]
      %v491 = vld [vmem:[%s1 + $0x28] sm:$0xff]
      %v492 = vld [vmem:[%s1 + $0x30] sm:$0xff]
      %v493 = vld [vmem:[%s1 + $0x38] sm:$0xff]
      %v494 = vld [vmem:[%s1 + $0x40] sm:$0xff]
      %v495 = vld [vmem:[%s1 + $0x48] sm:$0xff]
      %v496 = vld [vmem:[%s1 + $0x50] sm:$0xff]
      %v497 = vld [vmem:[%s1 + $0x58] sm:$0xff]
      %v498 = vld [vmem:[%s1 + $0x60] sm:$0xff]
      %v499 = vld [vmem:[%s1 + $0x68] sm:$0xff]
      %v500 = vld [vmem:[%s1 + $0x70] sm:$0xff]
      %v501 = vld [vmem:[%s1 + $0x78] sm:$0xff]
      %v502 = vld [vmem:[%s2] sm:$0x3]
      %v504 = vlaneseq
      %v505 = vshrl.u32 %v504, 7
      %v506 = vsub.s32 0, %v505
      %v507 = vrot.slane %v502, %v506
      %v508 = vlaneseq
      %v509 = vshrl.u32 %v508, 7
      %v510 = vsub.s32 1, %v509
      %v511 = vrot.slane %v502, %v510
      %v530 = vunpack.c.l.b16 %v486
      %v531 = vunpack.c.h.b16 %v486
      %v532 = vunpack.c.l.b16 %v487
      %v533 = vunpack.c.h.b16 %v487
      %v534 = vunpack.c.l.b16 %v488
      %v535 = vunpack.c.h.b16 %v488
      %v536 = vunpack.c.l.b16 %v489
      %v537 = vunpack.c.h.b16 %v489
      %v538 = vunpack.c.l.b16 %v490
      %v539 = vunpack.c.h.b16 %v490
      %v540 = vunpack.c.l.b16 %v491
      %v541 = vunpack.c.h.b16 %v491
      %v542 = vunpack.c.l.b16 %v492
      %v543 = vunpack.c.h.b16 %v492
      %v544 = vunpack.c.l.b16 %v493
      %v545 = vunpack.c.h.b16 %v493
      %v546 = vunpack.c.l.b16 %v494
      %v547 = vunpack.c.h.b16 %v494
      %v548 = vunpack.c.l.b16 %v495
      %v549 = vunpack.c.h.b16 %v495
      %v550 = vunpack.c.l.b16 %v496
      %v551 = vunpack.c.h.b16 %v496
      %v552 = vunpack.c.l.b16 %v497
      %v553 = vunpack.c.h.b16 %v497
      %v554 = vunpack.c.l.b16 %v498
      %v555 = vunpack.c.h.b16 %v498
      %v556 = vunpack.c.l.b16 %v499
      %v557 = vunpack.c.h.b16 %v499
      %v558 = vunpack.c.l.b16 %v500
      %v559 = vunpack.c.h.b16 %v500
      %v560 = vunpack.c.l.b16 %v501
      %v561 = vunpack.c.h.b16 %v501
      %v562 = vpack.c.b16 %v532, %v530
      %v563 = vpack.c.b16 %v533, %v531
      %v564 = vpack.c.b16 %v536, %v534
      %v565 = vpack.c.b16 %v537, %v535
      %v566 = vpack.c.b16 %v540, %v538
      %v567 = vpack.c.b16 %v541, %v539
      %v568 = vpack.c.b16 %v544, %v542
      %v569 = vpack.c.b16 %v545, %v543
      %v570 = vpack.c.b16 %v548, %v546
      %v571 = vpack.c.b16 %v549, %v547
      %v572 = vpack.c.b16 %v552, %v550
      %v573 = vpack.c.b16 %v553, %v551
      %v574 = vpack.c.b16 %v556, %v554
      %v575 = vpack.c.b16 %v557, %v555
      %v576 = vpack.c.b16 %v560, %v558
      %v577 = vpack.c.b16 %v561, %v559
      %594 = vmatprep.subr.bf16.mxu0 %v563
      %595 = vmatpush1.bf16.msra.mxu0 %v562
      %596 = vmatprep.subr.bf16.mxu0 %v565
      %597 = vmatpush1.bf16.msra.mxu0 %v564
      %598 = vmatprep.subr.bf16.mxu0 %v567
      %599 = vmatpush1.bf16.msra.mxu0 %v566
      %600 = vmatprep.subr.bf16.mxu0 %v569
      %601 = vmatpush1.bf16.msra.mxu0 %v568
      %602 = vmatprep.subr.bf16.mxu0 %v571
      %603 = vmatpush1.bf16.msra.mxu0 %v570
      %604 = vmatprep.subr.bf16.mxu0 %v573
      %605 = vmatpush1.bf16.msra.mxu0 %v572
      %606 = vmatprep.subr.bf16.mxu0 %v575
      %607 = vmatpush1.bf16.msra.mxu0 %v574
      %608 = vmatprep.subr.bf16.mxu0 %v577
      %609 = vmatpush1.bf16.msra.mxu0 %v576
      %610 = vmatprep.subr.bf16.mxu0 0
      %611 = vmatpush1.bf16.msra.mxu0 0
      %612 = vmatprep.subr.bf16.mxu0 0
      %613 = vmatpush1.bf16.msra.mxu0 0
      %614 = vmatprep.subr.bf16.mxu0 0
      %615 = vmatpush1.bf16.msra.mxu0 0
      %616 = vmatprep.subr.bf16.mxu0 0
      %617 = vmatpush1.bf16.msra.mxu0 0
      %618 = vmatprep.subr.bf16.mxu0 0
      %619 = vmatpush1.bf16.msra.mxu0 0
      %620 = vmatprep.subr.bf16.mxu0 0
      %621 = vmatpush1.bf16.msra.mxu0 0
      %622 = vmatprep.subr.bf16.mxu0 0
      %623 = vmatpush1.bf16.msra.mxu0 0
      %624 = vmatprep.subr.bf16.mxu0 0
      %625 = vmatpush1.bf16.msra.mxu0 0
      %626 = vmatprep.mubr.bf16.mxu0 0
      %627 = vmatmul.mubr.bf16.gmra.mrb[0].mxu0 %v454
      %v628 = vpop.f32.mrb[0].mxu0
      %v629 = vadd.f32 %v507, %v628
      %v630 = vpop.f32.mrb[0].mxu0
      %v631 = vadd.f32 %v511, %v630
      %v632 = vpop.f32.mrb[0].mxu0
      %v633 = vadd.f32 %v507, %v632
      %v634 = vpop.f32.mrb[0].mxu0
      %v635 = vadd.f32 %v511, %v634
      %636 = vmatprep.mubr.bf16.mxu0 0
      %637 = vmatmul.mubr.bf16.gmra.mrb[0].mxu0 %v455
      %v638 = vpop.f32.mrb[0].mxu0
      %v639 = vadd.f32 %v507, %v638
      %v640 = vpop.f32.mrb[0].mxu0
      %v641 = vadd.f32 %v511, %v640
      %v642 = vpop.f32.mrb[0].mxu0
      %v643 = vadd.f32 %v507, %v642
      %v644 = vpop.f32.mrb[0].mxu0
      %v645 = vadd.f32 %v511, %v644
      %646 = vmatprep.mubr.bf16.mxu0 0
      %647 = vmatmul.mubr.bf16.gmra.mrb[0].mxu0 %v456
      %v648 = vpop.f32.mrb[0].mxu0
      %v649 = vadd.f32 %v507, %v648
      %v650 = vpop.f32.mrb[0].mxu0
      %v651 = vadd.f32 %v511, %v650
      %v652 = vpop.f32.mrb[0].mxu0
      %v653 = vadd.f32 %v507, %v652
      %v654 = vpop.f32.mrb[0].mxu0
      %v655 = vadd.f32 %v511, %v654
      %656 = vmatprep.mubr.bf16.mxu0 0
      %657 = vmatmul.mubr.bf16.gmra.mrb[0].mxu0 %v457
      %v658 = vpop.f32.mrb[0].mxu0
      %v659 = vadd.f32 %v507, %v658
      %v660 = vpop.f32.mrb[0].mxu0
      %v661 = vadd.f32 %v511, %v660
      %v662 = vpop.f32.mrb[0].mxu0
      %v663 = vadd.f32 %v507, %v662
      %v664 = vpop.f32.mrb[0].mxu0
      %v665 = vadd.f32 %v511, %v664
      %666 = vmatprep.mubr.bf16.mxu0 0
      %667 = vmatmul.mubr.bf16.gmra.mrb[0].mxu0 %v458
      %v668 = vpop.f32.mrb[0].mxu0
      %v669 = vadd.f32 %v507, %v668
      %v670 = vpop.f32.mrb[0].mxu0
      %v671 = vadd.f32 %v511, %v670
      %v672 = vpop.f32.mrb[0].mxu0
      %v673 = vadd.f32 %v507, %v672
      %v674 = vpop.f32.mrb[0].mxu0
      %v675 = vadd.f32 %v511, %v674
      %676 = vmatprep.mubr.bf16.mxu0 0
      %677 = vmatmul.mubr.bf16.gmra.mrb[0].mxu0 %v459
      %v678 = vpop.f32.mrb[0].mxu0
      %v679 = vadd.f32 %v507, %v678
      %v680 = vpop.f32.mrb[0].mxu0
      %v681 = vadd.f32 %v511, %v680
      %v682 = vpop.f32.mrb[0].mxu0
      %v683 = vadd.f32 %v507, %v682
      %v684 = vpop.f32.mrb[0].mxu0
      %v685 = vadd.f32 %v511, %v684
      %686 = vmatprep.mubr.bf16.mxu0 0
      %687 = vmatmul.mubr.bf16.gmra.mrb[0].mxu0 %v460
      %v688 = vpop.f32.mrb[0].mxu0
      %v689 = vadd.f32 %v507, %v688
      %v690 = vpop.f32.mrb[0].mxu0
      %v691 = vadd.f32 %v511, %v690
      %v692 = vpop.f32.mrb[0].mxu0
      %v693 = vadd.f32 %v507, %v692
      %v694 = vpop.f32.mrb[0].mxu0
      %v695 = vadd.f32 %v511, %v694
      %696 = vmatprep.mubr.bf16.mxu0 0
      %697 = vmatmul.mubr.bf16.gmra.mrb[0].mxu0 %v461
      %v698 = vpop.f32.mrb[0].mxu0
      %v699 = vadd.f32 %v507, %v698
      %v700 = vpop.f32.mrb[0].mxu0
      %v701 = vadd.f32 %v511, %v700
      %v702 = vpop.f32.mrb[0].mxu0
      %v703 = vadd.f32 %v507, %v702
      %v704 = vpop.f32.mrb[0].mxu0
      %v705 = vadd.f32 %v511, %v704
      %706 = vmatprep.mubr.bf16.mxu0 0
      %707 = vmatmul.mubr.bf16.gmra.mrb[0].mxu0 %v462
      %v708 = vpop.f32.mrb[0].mxu0
      %v709 = vadd.f32 %v507, %v708
      %v710 = vpop.f32.mrb[0].mxu0
      %v711 = vadd.f32 %v511, %v710
      %v712 = vpop.f32.mrb[0].mxu0
      %v713 = vadd.f32 %v507, %v712
      %v714 = vpop.f32.mrb[0].mxu0
      %v715 = vadd.f32 %v511, %v714
      %716 = vmatprep.mubr.bf16.mxu0 0
      %717 = vmatmul.mubr.bf16.gmra.mrb[0].mxu0 %v463
      %v718 = vpop.f32.mrb[0].mxu0
      %v719 = vadd.f32 %v507, %v718
      %v720 = vpop.f32.mrb[0].mxu0
      %v721 = vadd.f32 %v511, %v720
      %v722 = vpop.f32.mrb[0].mxu0
      %v723 = vadd.f32 %v507, %v722
      %v724 = vpop.f32.mrb[0].mxu0
      %v725 = vadd.f32 %v511, %v724
      %726 = vmatprep.mubr.bf16.mxu0 0
      %727 = vmatmul.mubr.bf16.gmra.mrb[0].mxu0 %v464
      %v728 = vpop.f32.mrb[0].mxu0
      %v729 = vadd.f32 %v507, %v728
      %v730 = vpop.f32.mrb[0].mxu0
      %v731 = vadd.f32 %v511, %v730
      %v732 = vpop.f32.mrb[0].mxu0
      %v733 = vadd.f32 %v507, %v732
      %v734 = vpop.f32.mrb[0].mxu0
      %v735 = vadd.f32 %v511, %v734
      %736 = vmatprep.mubr.bf16.mxu0 0
      %737 = vmatmul.mubr.bf16.gmra.mrb[0].mxu0 %v465
      %v738 = vpop.f32.mrb[0].mxu0
      %v739 = vadd.f32 %v507, %v738
      %v740 = vpop.f32.mrb[0].mxu0
      %v741 = vadd.f32 %v511, %v740
      %v742 = vpop.f32.mrb[0].mxu0
      %v743 = vadd.f32 %v507, %v742
      %v744 = vpop.f32.mrb[0].mxu0
      %v745 = vadd.f32 %v511, %v744
      %746 = vmatprep.mubr.bf16.mxu0 0
      %747 = vmatmul.mubr.bf16.gmra.mrb[0].mxu0 %v466
      %v748 = vpop.f32.mrb[0].mxu0
      %v749 = vadd.f32 %v507, %v748
      %v750 = vpop.f32.mrb[0].mxu0
      %v751 = vadd.f32 %v511, %v750
      %v752 = vpop.f32.mrb[0].mxu0
      %v753 = vadd.f32 %v507, %v752
      %v754 = vpop.f32.mrb[0].mxu0
      %v755 = vadd.f32 %v511, %v754
      %756 = vmatprep.mubr.bf16.mxu0 0
      %757 = vmatmul.mubr.bf16.gmra.mrb[0].mxu0 %v467
      %v758 = vpop.f32.mrb[0].mxu0
      %v759 = vadd.f32 %v507, %v758
      %v760 = vpop.f32.mrb[0].mxu0
      %v761 = vadd.f32 %v511, %v760
      %v762 = vpop.f32.mrb[0].mxu0
      %v763 = vadd.f32 %v507, %v762
      %v764 = vpop.f32.mrb[0].mxu0
      %v765 = vadd.f32 %v511, %v764
      %766 = vmatprep.mubr.bf16.mxu0 0
      %767 = vmatmul.mubr.bf16.gmra.mrb[0].mxu0 %v468
      %v768 = vpop.f32.mrb[0].mxu0
      %v769 = vadd.f32 %v507, %v768
      %v770 = vpop.f32.mrb[0].mxu0
      %v771 = vadd.f32 %v511, %v770
      %v772 = vpop.f32.mrb[0].mxu0
      %v773 = vadd.f32 %v507, %v772
      %v774 = vpop.f32.mrb[0].mxu0
      %v775 = vadd.f32 %v511, %v774
      %776 = vmatprep.mubr.bf16.mxu0 0
      %777 = vmatmul.mubr.bf16.gmra.mrb[0].mxu0 %v469
      %v778 = vpop.f32.mrb[0].mxu0
      %v779 = vadd.f32 %v507, %v778
      %v780 = vpop.f32.mrb[0].mxu0
      %v781 = vadd.f32 %v511, %v780
      %v782 = vpop.f32.mrb[0].mxu0
      %v783 = vadd.f32 %v507, %v782
      %v784 = vpop.f32.mrb[0].mxu0
      %v785 = vadd.f32 %v511, %v784
      %786 = vmatprep.mubr.bf16.mxu0 0
      %787 = vmatmul.mubr.bf16.gmra.mrb[0].mxu0 %v470
      %v788 = vpop.f32.mrb[0].mxu0
      %v789 = vadd.f32 %v507, %v788
      %v790 = vpop.f32.mrb[0].mxu0
      %v791 = vadd.f32 %v511, %v790
      %v792 = vpop.f32.mrb[0].mxu0
      %v793 = vadd.f32 %v507, %v792
      %v794 = vpop.f32.mrb[0].mxu0
      %v795 = vadd.f32 %v511, %v794
      %796 = vmatprep.mubr.bf16.mxu0 0
      %797 = vmatmul.mubr.bf16.gmra.mrb[0].mxu0 %v471
      %v798 = vpop.f32.mrb[0].mxu0
      %v799 = vadd.f32 %v507, %v798
      %v800 = vpop.f32.mrb[0].mxu0
      %v801 = vadd.f32 %v511, %v800
      %v802 = vpop.f32.mrb[0].mxu0
      %v803 = vadd.f32 %v507, %v802
      %v804 = vpop.f32.mrb[0].mxu0
      %v805 = vadd.f32 %v511, %v804
      %806 = vmatprep.mubr.bf16.mxu0 0
      %807 = vmatmul.mubr.bf16.gmra.mrb[0].mxu0 %v472
      %v808 = vpop.f32.mrb[0].mxu0
      %v809 = vadd.f32 %v507, %v808
      %v810 = vpop.f32.mrb[0].mxu0
      %v811 = vadd.f32 %v511, %v810
      %v812 = vpop.f32.mrb[0].mxu0
      %v813 = vadd.f32 %v507, %v812
      %v814 = vpop.f32.mrb[0].mxu0
      %v815 = vadd.f32 %v511, %v814
      %816 = vmatprep.mubr.bf16.mxu0 0
      %817 = vmatmul.mubr.bf16.gmra.mrb[0].mxu0 %v473
      %v818 = vpop.f32.mrb[0].mxu0
      %v819 = vadd.f32 %v507, %v818
      %v820 = vpop.f32.mrb[0].mxu0
      %v821 = vadd.f32 %v511, %v820
      %v822 = vpop.f32.mrb[0].mxu0
      %v823 = vadd.f32 %v507, %v822
      %v824 = vpop.f32.mrb[0].mxu0
      %v825 = vadd.f32 %v511, %v824
      %826 = vmatprep.mubr.bf16.mxu0 0
      %827 = vmatmul.mubr.bf16.gmra.mrb[0].mxu0 %v474
      %v828 = vpop.f32.mrb[0].mxu0
      %v829 = vadd.f32 %v507, %v828
      %v830 = vpop.f32.mrb[0].mxu0
      %v831 = vadd.f32 %v511, %v830
      %v832 = vpop.f32.mrb[0].mxu0
      %v833 = vadd.f32 %v507, %v832
      %v834 = vpop.f32.mrb[0].mxu0
      %v835 = vadd.f32 %v511, %v834
      %836 = vmatprep.mubr.bf16.mxu0 0
      %837 = vmatmul.mubr.bf16.gmra.mrb[0].mxu0 %v475
      %v838 = vpop.f32.mrb[0].mxu0
      %v839 = vadd.f32 %v507, %v838
      %v840 = vpop.f32.mrb[0].mxu0
      %v841 = vadd.f32 %v511, %v840
      %v842 = vpop.f32.mrb[0].mxu0
      %v843 = vadd.f32 %v507, %v842
      %v844 = vpop.f32.mrb[0].mxu0
      %v845 = vadd.f32 %v511, %v844
      %846 = vmatprep.mubr.bf16.mxu0 0
      %847 = vmatmul.mubr.bf16.gmra.mrb[0].mxu0 %v476
      %v848 = vpop.f32.mrb[0].mxu0
      %v849 = vadd.f32 %v507, %v848
      %v850 = vpop.f32.mrb[0].mxu0
      %v851 = vadd.f32 %v511, %v850
      %v852 = vpop.f32.mrb[0].mxu0
      %v853 = vadd.f32 %v507, %v852
      %v854 = vpop.f32.mrb[0].mxu0
      %v855 = vadd.f32 %v511, %v854
      %856 = vmatprep.mubr.bf16.mxu0 0
      %857 = vmatmul.mubr.bf16.gmra.mrb[0].mxu0 %v477
      %v858 = vpop.f32.mrb[0].mxu0
      %v859 = vadd.f32 %v507, %v858
      %v860 = vpop.f32.mrb[0].mxu0
      %v861 = vadd.f32 %v511, %v860
      %v862 = vpop.f32.mrb[0].mxu0
      %v863 = vadd.f32 %v507, %v862
      %v864 = vpop.f32.mrb[0].mxu0
      %v865 = vadd.f32 %v511, %v864
      %866 = vmatprep.mubr.bf16.mxu0 0
      %867 = vmatmul.mubr.bf16.gmra.mrb[0].mxu0 %v478
      %v868 = vpop.f32.mrb[0].mxu0
      %v869 = vadd.f32 %v507, %v868
      %v870 = vpop.f32.mrb[0].mxu0
      %v871 = vadd.f32 %v511, %v870
      %v872 = vpop.f32.mrb[0].mxu0
      %v873 = vadd.f32 %v507, %v872
      %v874 = vpop.f32.mrb[0].mxu0
      %v875 = vadd.f32 %v511, %v874
      %876 = vmatprep.mubr.bf16.mxu0 0
      %877 = vmatmul.mubr.bf16.gmra.mrb[0].mxu0 %v479
      %v878 = vpop.f32.mrb[0].mxu0
      %v879 = vadd.f32 %v507, %v878
      %v880 = vpop.f32.mrb[0].mxu0
      %v881 = vadd.f32 %v511, %v880
      %v882 = vpop.f32.mrb[0].mxu0
      %v883 = vadd.f32 %v507, %v882
      %v884 = vpop.f32.mrb[0].mxu0
      %v885 = vadd.f32 %v511, %v884
      %886 = vmatprep.mubr.bf16.mxu0 0
      %887 = vmatmul.mubr.bf16.gmra.mrb[0].mxu0 %v480
      %v888 = vpop.f32.mrb[0].mxu0
      %v889 = vadd.f32 %v507, %v888
      %v890 = vpop.f32.mrb[0].mxu0
      %v891 = vadd.f32 %v511, %v890
      %v892 = vpop.f32.mrb[0].mxu0
      %v893 = vadd.f32 %v507, %v892
      %v894 = vpop.f32.mrb[0].mxu0
      %v895 = vadd.f32 %v511, %v894
      %896 = vmatprep.mubr.bf16.mxu0 0
      %897 = vmatmul.mubr.bf16.gmra.mrb[0].mxu0 %v481
      %v898 = vpop.f32.mrb[0].mxu0
      %v899 = vadd.f32 %v507, %v898
      %v900 = vpop.f32.mrb[0].mxu0
      %v901 = vadd.f32 %v511, %v900
      %v902 = vpop.f32.mrb[0].mxu0
      %v903 = vadd.f32 %v507, %v902
      %v904 = vpop.f32.mrb[0].mxu0
      %v905 = vadd.f32 %v511, %v904
      %906 = vmatprep.mubr.bf16.mxu0 0
      %907 = vmatmul.mubr.bf16.gmra.mrb[0].mxu0 %v482
      %v908 = vpop.f32.mrb[0].mxu0
      %v909 = vadd.f32 %v507, %v908
      %v910 = vpop.f32.mrb[0].mxu0
      %v911 = vadd.f32 %v511, %v910
      %v912 = vpop.f32.mrb[0].mxu0
      %v913 = vadd.f32 %v507, %v912
      %v914 = vpop.f32.mrb[0].mxu0
      %v915 = vadd.f32 %v511, %v914
      %916 = vmatprep.mubr.bf16.mxu0 0
      %917 = vmatmul.mubr.bf16.gmra.mrb[0].mxu0 %v483
      %v918 = vpop.f32.mrb[0].mxu0
      %v919 = vadd.f32 %v507, %v918
      %v920 = vpop.f32.mrb[0].mxu0
      %v921 = vadd.f32 %v511, %v920
      %v922 = vpop.f32.mrb[0].mxu0
      %v923 = vadd.f32 %v507, %v922
      %v924 = vpop.f32.mrb[0].mxu0
      %v925 = vadd.f32 %v511, %v924
      %926 = vmatprep.mubr.bf16.mxu0 0
      %927 = vmatmul.mubr.bf16.gmra.mrb[0].mxu0 %v484
      %v928 = vpop.f32.mrb[0].mxu0
      %v929 = vadd.f32 %v507, %v928
      %v930 = vpop.f32.mrb[0].mxu0
      %v931 = vadd.f32 %v511, %v930
      %v932 = vpop.f32.mrb[0].mxu0
      %v933 = vadd.f32 %v507, %v932
      %v934 = vpop.f32.mrb[0].mxu0
      %v935 = vadd.f32 %v511, %v934
      %936 = vmatprep.mubr.bf16.mxu0 0
      %937 = vmatmul.mubr.bf16.gmra.mrb[0].mxu0 %v485
      %v938 = vpop.f32.mrb[0].mxu0
      %v939 = vadd.f32 %v507, %v938
      %v940 = vpop.f32.mrb[0].mxu0
      %v941 = vadd.f32 %v511, %v940
      %v942 = vpop.f32.mrb[0].mxu0
      %v943 = vadd.f32 %v507, %v942
      %v944 = vpop.f32.mrb[0].mxu0
      %v945 = vadd.f32 %v511, %v944
      %946 = vdwg.mxu0
      %v947 = vpack.c.bf16 %v633, %v629
      %v948 = vpack.c.bf16 %v643, %v639
      %v949 = vpack.c.bf16 %v653, %v649
      %v950 = vpack.c.bf16 %v663, %v659
      %v951 = vpack.c.bf16 %v673, %v669
      %v952 = vpack.c.bf16 %v683, %v679
      %v953 = vpack.c.bf16 %v693, %v689
      %v954 = vpack.c.bf16 %v703, %v699
      %v955 = vpack.c.bf16 %v713, %v709
      %v956 = vpack.c.bf16 %v723, %v719
      %v957 = vpack.c.bf16 %v733, %v729
      %v958 = vpack.c.bf16 %v743, %v739
      %v959 = vpack.c.bf16 %v753, %v749
      %v960 = vpack.c.bf16 %v763, %v759
      %v961 = vpack.c.bf16 %v773, %v769
      %v962 = vpack.c.bf16 %v783, %v779
      %v963 = vpack.c.bf16 %v793, %v789
      %v964 = vpack.c.bf16 %v803, %v799
      %v965 = vpack.c.bf16 %v813, %v809
      %v966 = vpack.c.bf16 %v823, %v819
      %v967 = vpack.c.bf16 %v833, %v829
      %v968 = vpack.c.bf16 %v843, %v839
      %v969 = vpack.c.bf16 %v853, %v849
      %v970 = vpack.c.bf16 %v863, %v859
      %v971 = vpack.c.bf16 %v873, %v869
      %v972 = vpack.c.bf16 %v883, %v879
      %v973 = vpack.c.bf16 %v893, %v889
      %v974 = vpack.c.bf16 %v903, %v899
      %v975 = vpack.c.bf16 %v913, %v909
      %v976 = vpack.c.bf16 %v923, %v919
      %v977 = vpack.c.bf16 %v933, %v929
      %v978 = vpack.c.bf16 %v943, %v939
      %v1011 = vunpack.c.l.b16 %v947
      %v1012 = vunpack.c.h.b16 %v947
      %v1013 = vunpack.c.l.b16 %v948
      %v1014 = vunpack.c.h.b16 %v948
      %v1015 = vunpack.c.l.b16 %v949
      %v1016 = vunpack.c.h.b16 %v949
      %v1017 = vunpack.c.l.b16 %v950
      %v1018 = vunpack.c.h.b16 %v950
      %v1019 = vunpack.c.l.b16 %v951
      %v1020 = vunpack.c.h.b16 %v951
      %v1021 = vunpack.c.l.b16 %v952
      %v1022 = vunpack.c.h.b16 %v952
      %v1023 = vunpack.c.l.b16 %v953
      %v1024 = vunpack.c.h.b16 %v953
      %v1025 = vunpack.c.l.b16 %v954
      %v1026 = vunpack.c.h.b16 %v954
      %v1027 = vunpack.c.l.b16 %v955
      %v1028 = vunpack.c.h.b16 %v955
      %v1029 = vunpack.c.l.b16 %v956
      %v1030 = vunpack.c.h.b16 %v956
      %v1031 = vunpack.c.l.b16 %v957
      %v1032 = vunpack.c.h.b16 %v957
      %v1033 = vunpack.c.l.b16 %v958
      %v1034 = vunpack.c.h.b16 %v958
      %v1035 = vunpack.c.l.b16 %v959
      %v1036 = vunpack.c.h.b16 %v959
      %v1037 = vunpack.c.l.b16 %v960
      %v1038 = vunpack.c.h.b16 %v960
      %v1039 = vunpack.c.l.b16 %v961
      %v1040 = vunpack.c.h.b16 %v961
      %v1041 = vunpack.c.l.b16 %v962
      %v1042 = vunpack.c.h.b16 %v962
      %v1043 = vunpack.c.l.b16 %v963
      %v1044 = vunpack.c.h.b16 %v963
      %v1045 = vunpack.c.l.b16 %v964
      %v1046 = vunpack.c.h.b16 %v964
      %v1047 = vunpack.c.l.b16 %v965
      %v1048 = vunpack.c.h.b16 %v965
      %v1049 = vunpack.c.l.b16 %v966
      %v1050 = vunpack.c.h.b16 %v966
      %v1051 = vunpack.c.l.b16 %v967
      %v1052 = vunpack.c.h.b16 %v967
      %v1053 = vunpack.c.l.b16 %v968
      %v1054 = vunpack.c.h.b16 %v968
      %v1055 = vunpack.c.l.b16 %v969
      %v1056 = vunpack.c.h.b16 %v969
      %v1057 = vunpack.c.l.b16 %v970
      %v1058 = vunpack.c.h.b16 %v970
      %v1059 = vunpack.c.l.b16 %v971
      %v1060 = vunpack.c.h.b16 %v971
      %v1061 = vunpack.c.l.b16 %v972
      %v1062 = vunpack.c.h.b16 %v972
      %v1063 = vunpack.c.l.b16 %v973
      %v1064 = vunpack.c.h.b16 %v973
      %v1065 = vunpack.c.l.b16 %v974
      %v1066 = vunpack.c.h.b16 %v974
      %v1067 = vunpack.c.l.b16 %v975
      %v1068 = vunpack.c.h.b16 %v975
      %v1069 = vunpack.c.l.b16 %v976
      %v1070 = vunpack.c.h.b16 %v976
      %v1071 = vunpack.c.l.b16 %v977
      %v1072 = vunpack.c.h.b16 %v977
      %v1073 = vunpack.c.l.b16 %v978
      %v1074 = vunpack.c.h.b16 %v978
      %v1075 = vpack.c.b16 %v1011, %v1011
      %v1076 = vpack.c.b16 %v1012, %v1012
      %v1077 = vpack.c.b16 %v1013, %v1013
      %v1078 = vpack.c.b16 %v1014, %v1014
      %v1079 = vpack.c.b16 %v1015, %v1015
      %v1080 = vpack.c.b16 %v1016, %v1016
      %v1081 = vpack.c.b16 %v1017, %v1017
      %v1082 = vpack.c.b16 %v1018, %v1018
      %v1083 = vpack.c.b16 %v1019, %v1019
      %v1084 = vpack.c.b16 %v1020, %v1020
      %v1085 = vpack.c.b16 %v1021, %v1021
      %v1086 = vpack.c.b16 %v1022, %v1022
      %v1087 = vpack.c.b16 %v1023, %v1023
      %v1088 = vpack.c.b16 %v1024, %v1024
      %v1089 = vpack.c.b16 %v1025, %v1025
      %v1090 = vpack.c.b16 %v1026, %v1026
      %v1091 = vpack.c.b16 %v1027, %v1027
      %v1092 = vpack.c.b16 %v1028, %v1028
      %v1093 = vpack.c.b16 %v1029, %v1029
      %v1094 = vpack.c.b16 %v1030, %v1030
      %v1095 = vpack.c.b16 %v1031, %v1031
      %v1096 = vpack.c.b16 %v1032, %v1032
      %v1097 = vpack.c.b16 %v1033, %v1033
      %v1098 = vpack.c.b16 %v1034, %v1034
      %v1099 = vpack.c.b16 %v1035, %v1035
      %v1100 = vpack.c.b16 %v1036, %v1036
      %v1101 = vpack.c.b16 %v1037, %v1037
      %v1102 = vpack.c.b16 %v1038, %v1038
      %v1103 = vpack.c.b16 %v1039, %v1039
      %v1104 = vpack.c.b16 %v1040, %v1040
      %v1105 = vpack.c.b16 %v1041, %v1041
      %v1106 = vpack.c.b16 %v1042, %v1042
      %v1107 = vpack.c.b16 %v1043, %v1043
      %v1108 = vpack.c.b16 %v1044, %v1044
      %v1109 = vpack.c.b16 %v1045, %v1045
      %v1110 = vpack.c.b16 %v1046, %v1046
      %v1111 = vpack.c.b16 %v1047, %v1047
      %v1112 = vpack.c.b16 %v1048, %v1048
      %v1113 = vpack.c.b16 %v1049, %v1049
      %v1114 = vpack.c.b16 %v1050, %v1050
      %v1115 = vpack.c.b16 %v1051, %v1051
      %v1116 = vpack.c.b16 %v1052, %v1052
      %v1117 = vpack.c.b16 %v1053, %v1053
      %v1118 = vpack.c.b16 %v1054, %v1054
      %v1119 = vpack.c.b16 %v1055, %v1055
      %v1120 = vpack.c.b16 %v1056, %v1056
      %v1121 = vpack.c.b16 %v1057, %v1057
      %v1122 = vpack.c.b16 %v1058, %v1058
      %v1123 = vpack.c.b16 %v1059, %v1059
      %v1124 = vpack.c.b16 %v1060, %v1060
      %v1125 = vpack.c.b16 %v1061, %v1061
      %v1126 = vpack.c.b16 %v1062, %v1062
      %v1127 = vpack.c.b16 %v1063, %v1063
      %v1128 = vpack.c.b16 %v1064, %v1064
      %v1129 = vpack.c.b16 %v1065, %v1065
      %v1130 = vpack.c.b16 %v1066, %v1066
      %v1131 = vpack.c.b16 %v1067, %v1067
      %v1132 = vpack.c.b16 %v1068, %v1068
      %v1133 = vpack.c.b16 %v1069, %v1069
      %v1134 = vpack.c.b16 %v1070, %v1070
      %v1135 = vpack.c.b16 %v1071, %v1071
      %v1136 = vpack.c.b16 %v1072, %v1072
      %v1137 = vpack.c.b16 %v1073, %v1073
      %v1138 = vpack.c.b16 %v1074, %v1074
      %1203 = vst [vmem:[%s249] sm:$0xf] %v1075
      %1204 = vst [vmem:[%s249 + $0x4] sm:$0xf] %v1076
      %1205 = vst [vmem:[%s249 + $0x8] sm:$0xf] %v1077
      %1206 = vst [vmem:[%s249 + $0xc] sm:$0xf] %v1078
      %1207 = vst [vmem:[%s249 + $0x10] sm:$0xf] %v1079
      %1208 = vst [vmem:[%s249 + $0x14] sm:$0xf] %v1080
      %1209 = vst [vmem:[%s249 + $0x18] sm:$0xf] %v1081
      %1210 = vst [vmem:[%s249 + $0x1c] sm:$0xf] %v1082
      %1211 = vst [vmem:[%s249 + $0x20] sm:$0xf] %v1083
      %1212 = vst [vmem:[%s249 + $0x24] sm:$0xf] %v1084
      %1213 = vst [vmem:[%s249 + $0x28] sm:$0xf] %v1085
      %1214 = vst [vmem:[%s249 + $0x2c] sm:$0xf] %v1086
      %1215 = vst [vmem:[%s249 + $0x30] sm:$0xf] %v1087
      %1216 = vst [vmem:[%s249 + $0x34] sm:$0xf] %v1088
      %1217 = vst [vmem:[%s249 + $0x38] sm:$0xf] %v1089
      %1218 = vst [vmem:[%s249 + $0x3c] sm:$0xf] %v1090
      %1219 = vst [vmem:[%s249 + $0x40] sm:$0xf] %v1091
      %1220 = vst [vmem:[%s249 + $0x44] sm:$0xf] %v1092
      %1221 = vst [vmem:[%s249 + $0x48] sm:$0xf] %v1093
      %1222 = vst [vmem:[%s249 + $0x4c] sm:$0xf] %v1094
      %1223 = vst [vmem:[%s249 + $0x50] sm:$0xf] %v1095
      %1224 = vst [vmem:[%s249 + $0x54] sm:$0xf] %v1096
      %1225 = vst [vmem:[%s249 + $0x58] sm:$0xf] %v1097
      %1226 = vst [vmem:[%s249 + $0x5c] sm:$0xf] %v1098
      %1227 = vst [vmem:[%s249 + $0x60] sm:$0xf] %v1099
      %1228 = vst [vmem:[%s249 + $0x64] sm:$0xf] %v1100
      %1229 = vst [vmem:[%s249 + $0x68] sm:$0xf] %v1101
      %1230 = vst [vmem:[%s249 + $0x6c] sm:$0xf] %v1102
      %1231 = vst [vmem:[%s249 + $0x70] sm:$0xf] %v1103
      %1232 = vst [vmem:[%s249 + $0x74] sm:$0xf] %v1104
      %1233 = vst [vmem:[%s249 + $0x78] sm:$0xf] %v1105
      %1234 = vst [vmem:[%s249 + $0x7c] sm:$0xf] %v1106
      %1235 = vst [vmem:[%s249 + $0x80] sm:$0xf] %v1107
      %1236 = vst [vmem:[%s249 + $0x84] sm:$0xf] %v1108
      %1237 = vst [vmem:[%s249 + $0x88] sm:$0xf] %v1109
      %1238 = vst [vmem:[%s249 + $0x8c] sm:$0xf] %v1110
      %1239 = vst [vmem:[%s249 + $0x90] sm:$0xf] %v1111
      %1240 = vst [vmem:[%s249 + $0x94] sm:$0xf] %v1112
      %1241 = vst [vmem:[%s249 + $0x98] sm:$0xf] %v1113
      %1242 = vst [vmem:[%s249 + $0x9c] sm:$0xf] %v1114
      %1243 = vst [vmem:[%s249 + $0xa0] sm:$0xf] %v1115
      %1244 = vst [vmem:[%s249 + $0xa4] sm:$0xf] %v1116
      %1245 = vst [vmem:[%s249 + $0xa8] sm:$0xf] %v1117
      %1246 = vst [vmem:[%s249 + $0xac] sm:$0xf] %v1118
      %1247 = vst [vmem:[%s249 + $0xb0] sm:$0xf] %v1119
      %1248 = vst [vmem:[%s249 + $0xb4] sm:$0xf] %v1120
      %1249 = vst [vmem:[%s249 + $0xb8] sm:$0xf] %v1121
      %1250 = vst [vmem:[%s249 + $0xbc] sm:$0xf] %v1122
      %1251 = vst [vmem:[%s249 + $0xc0] sm:$0xf] %v1123
      %1252 = vst [vmem:[%s249 + $0xc4] sm:$0xf] %v1124
      %1253 = vst [vmem:[%s249 + $0xc8] sm:$0xf] %v1125
      %1254 = vst [vmem:[%s249 + $0xcc] sm:$0xf] %v1126
      %1255 = vst [vmem:[%s249 + $0xd0] sm:$0xf] %v1127
      %1256 = vst [vmem:[%s249 + $0xd4] sm:$0xf] %v1128
      %1257 = vst [vmem:[%s249 + $0xd8] sm:$0xf] %v1129
      %1258 = vst [vmem:[%s249 + $0xdc] sm:$0xf] %v1130
      %1259 = vst [vmem:[%s249 + $0xe0] sm:$0xf] %v1131
      %1260 = vst [vmem:[%s249 + $0xe4] sm:$0xf] %v1132
      %1261 = vst [vmem:[%s249 + $0xe8] sm:$0xf] %v1133
      %1262 = vst [vmem:[%s249 + $0xec] sm:$0xf] %v1134
      %1263 = vst [vmem:[%s249 + $0xf0] sm:$0xf] %v1135
      %1264 = vst [vmem:[%s249 + $0xf4] sm:$0xf] %v1136
      %1265 = vst [vmem:[%s249 + $0xf8] sm:$0xf] %v1137
      %1266 = vst [vmem:[%s249 + $0xfc] sm:$0xf] %v1138
      %v1267 = vpack.c.bf16 %v635, %v631
      %v1268 = vpack.c.bf16 %v645, %v641
      %v1269 = vpack.c.bf16 %v655, %v651
      %v1270 = vpack.c.bf16 %v665, %v661
      %v1271 = vpack.c.bf16 %v675, %v671
      %v1272 = vpack.c.bf16 %v685, %v681
      %v1273 = vpack.c.bf16 %v695, %v691
      %v1274 = vpack.c.bf16 %v705, %v701
      %v1275 = vpack.c.bf16 %v715, %v711
      %v1276 = vpack.c.bf16 %v725, %v721
      %v1277 = vpack.c.bf16 %v735, %v731
      %v1278 = vpack.c.bf16 %v745, %v741
      %v1279 = vpack.c.bf16 %v755, %v751
      %v1280 = vpack.c.bf16 %v765, %v761
      %v1281 = vpack.c.bf16 %v775, %v771
      %v1282 = vpack.c.bf16 %v785, %v781
      %v1283 = vpack.c.bf16 %v795, %v791
      %v1284 = vpack.c.bf16 %v805, %v801
      %v1285 = vpack.c.bf16 %v815, %v811
      %v1286 = vpack.c.bf16 %v825, %v821
      %v1287 = vpack.c.bf16 %v835, %v831
      %v1288 = vpack.c.bf16 %v845, %v841
      %v1289 = vpack.c.bf16 %v855, %v851
      %v1290 = vpack.c.bf16 %v865, %v861
      %v1291 = vpack.c.bf16 %v875, %v871
      %v1292 = vpack.c.bf16 %v885, %v881
      %v1293 = vpack.c.bf16 %v895, %v891
      %v1294 = vpack.c.bf16 %v905, %v901
      %v1295 = vpack.c.bf16 %v915, %v911
      %v1296 = vpack.c.bf16 %v925, %v921
      %v1297 = vpack.c.bf16 %v935, %v931
      %v1298 = vpack.c.bf16 %v945, %v941
      %v1331 = vunpack.c.l.b16 %v1267
      %v1332 = vunpack.c.h.b16 %v1267
      %v1333 = vunpack.c.l.b16 %v1268
      %v1334 = vunpack.c.h.b16 %v1268
      %v1335 = vunpack.c.l.b16 %v1269
      %v1336 = vunpack.c.h.b16 %v1269
      %v1337 = vunpack.c.l.b16 %v1270
      %v1338 = vunpack.c.h.b16 %v1270
      %v1339 = vunpack.c.l.b16 %v1271
      %v1340 = vunpack.c.h.b16 %v1271
      %v1341 = vunpack.c.l.b16 %v1272
      %v1342 = vunpack.c.h.b16 %v1272
      %v1343 = vunpack.c.l.b16 %v1273
      %v1344 = vunpack.c.h.b16 %v1273
      %v1345 = vunpack.c.l.b16 %v1274
      %v1346 = vunpack.c.h.b16 %v1274
      %v1347 = vunpack.c.l.b16 %v1275
      %v1348 = vunpack.c.h.b16 %v1275
      %v1349 = vunpack.c.l.b16 %v1276
      %v1350 = vunpack.c.h.b16 %v1276
      %v1351 = vunpack.c.l.b16 %v1277
      %v1352 = vunpack.c.h.b16 %v1277
      %v1353 = vunpack.c.l.b16 %v1278
      %v1354 = vunpack.c.h.b16 %v1278
      %v1355 = vunpack.c.l.b16 %v1279
      %v1356 = vunpack.c.h.b16 %v1279
      %v1357 = vunpack.c.l.b16 %v1280
      %v1358 = vunpack.c.h.b16 %v1280
      %v1359 = vunpack.c.l.b16 %v1281
      %v1360 = vunpack.c.h.b16 %v1281
      %v1361 = vunpack.c.l.b16 %v1282
      %v1362 = vunpack.c.h.b16 %v1282
      %v1363 = vunpack.c.l.b16 %v1283
      %v1364 = vunpack.c.h.b16 %v1283
      %v1365 = vunpack.c.l.b16 %v1284
      %v1366 = vunpack.c.h.b16 %v1284
      %v1367 = vunpack.c.l.b16 %v1285
      %v1368 = vunpack.c.h.b16 %v1285
      %v1369 = vunpack.c.l.b16 %v1286
      %v1370 = vunpack.c.h.b16 %v1286
      %v1371 = vunpack.c.l.b16 %v1287
      %v1372 = vunpack.c.h.b16 %v1287
      %v1373 = vunpack.c.l.b16 %v1288
      %v1374 = vunpack.c.h.b16 %v1288
      %v1375 = vunpack.c.l.b16 %v1289
      %v1376 = vunpack.c.h.b16 %v1289
      %v1377 = vunpack.c.l.b16 %v1290
      %v1378 = vunpack.c.h.b16 %v1290
      %v1379 = vunpack.c.l.b16 %v1291
      %v1380 = vunpack.c.h.b16 %v1291
      %v1381 = vunpack.c.l.b16 %v1292
      %v1382 = vunpack.c.h.b16 %v1292
      %v1383 = vunpack.c.l.b16 %v1293
      %v1384 = vunpack.c.h.b16 %v1293
      %v1385 = vunpack.c.l.b16 %v1294
      %v1386 = vunpack.c.h.b16 %v1294
      %v1387 = vunpack.c.l.b16 %v1295
      %v1388 = vunpack.c.h.b16 %v1295
      %v1389 = vunpack.c.l.b16 %v1296
      %v1390 = vunpack.c.h.b16 %v1296
      %v1391 = vunpack.c.l.b16 %v1297
      %v1392 = vunpack.c.h.b16 %v1297
      %v1393 = vunpack.c.l.b16 %v1298
      %v1394 = vunpack.c.h.b16 %v1298
      %v1395 = vpack.c.b16 %v1331, %v1331
      %v1396 = vpack.c.b16 %v1332, %v1332
      %v1397 = vpack.c.b16 %v1333, %v1333
      %v1398 = vpack.c.b16 %v1334, %v1334
      %v1399 = vpack.c.b16 %v1335, %v1335
      %v1400 = vpack.c.b16 %v1336, %v1336
      %v1401 = vpack.c.b16 %v1337, %v1337
      %v1402 = vpack.c.b16 %v1338, %v1338
      %v1403 = vpack.c.b16 %v1339, %v1339
      %v1404 = vpack.c.b16 %v1340, %v1340
      %v1405 = vpack.c.b16 %v1341, %v1341
      %v1406 = vpack.c.b16 %v1342, %v1342
      %v1407 = vpack.c.b16 %v1343, %v1343
      %v1408 = vpack.c.b16 %v1344, %v1344
      %v1409 = vpack.c.b16 %v1345, %v1345
      %v1410 = vpack.c.b16 %v1346, %v1346
      %v1411 = vpack.c.b16 %v1347, %v1347
      %v1412 = vpack.c.b16 %v1348, %v1348
      %v1413 = vpack.c.b16 %v1349, %v1349
      %v1414 = vpack.c.b16 %v1350, %v1350
      %v1415 = vpack.c.b16 %v1351, %v1351
      %v1416 = vpack.c.b16 %v1352, %v1352
      %v1417 = vpack.c.b16 %v1353, %v1353
      %v1418 = vpack.c.b16 %v1354, %v1354
      %v1419 = vpack.c.b16 %v1355, %v1355
      %v1420 = vpack.c.b16 %v1356, %v1356
      %v1421 = vpack.c.b16 %v1357, %v1357
      %v1422 = vpack.c.b16 %v1358, %v1358
      %v1423 = vpack.c.b16 %v1359, %v1359
      %v1424 = vpack.c.b16 %v1360, %v1360
      %v1425 = vpack.c.b16 %v1361, %v1361
      %v1426 = vpack.c.b16 %v1362, %v1362
      %v1427 = vpack.c.b16 %v1363, %v1363
      %v1428 = vpack.c.b16 %v1364, %v1364
      %v1429 = vpack.c.b16 %v1365, %v1365
      %v1430 = vpack.c.b16 %v1366, %v1366
      %v1431 = vpack.c.b16 %v1367, %v1367
      %v1432 = vpack.c.b16 %v1368, %v1368
      %v1433 = vpack.c.b16 %v1369, %v1369
      %v1434 = vpack.c.b16 %v1370, %v1370
      %v1435 = vpack.c.b16 %v1371, %v1371
      %v1436 = vpack.c.b16 %v1372, %v1372
      %v1437 = vpack.c.b16 %v1373, %v1373
      %v1438 = vpack.c.b16 %v1374, %v1374
      %v1439 = vpack.c.b16 %v1375, %v1375
      %v1440 = vpack.c.b16 %v1376, %v1376
      %v1441 = vpack.c.b16 %v1377, %v1377
      %v1442 = vpack.c.b16 %v1378, %v1378
      %v1443 = vpack.c.b16 %v1379, %v1379
      %v1444 = vpack.c.b16 %v1380, %v1380
      %v1445 = vpack.c.b16 %v1381, %v1381
      %v1446 = vpack.c.b16 %v1382, %v1382
      %v1447 = vpack.c.b16 %v1383, %v1383
      %v1448 = vpack.c.b16 %v1384, %v1384
      %v1449 = vpack.c.b16 %v1385, %v1385
      %v1450 = vpack.c.b16 %v1386, %v1386
      %v1451 = vpack.c.b16 %v1387, %v1387
      %v1452 = vpack.c.b16 %v1388, %v1388
      %v1453 = vpack.c.b16 %v1389, %v1389
      %v1454 = vpack.c.b16 %v1390, %v1390
      %v1455 = vpack.c.b16 %v1391, %v1391
      %v1456 = vpack.c.b16 %v1392, %v1392
      %v1457 = vpack.c.b16 %v1393, %v1393
      %v1458 = vpack.c.b16 %v1394, %v1394
      %1523 = vst [vmem:[%s259] sm:$0xf] %v1395
      %1524 = vst [vmem:[%s259 + $0x4] sm:$0xf] %v1396
      %1525 = vst [vmem:[%s259 + $0x8] sm:$0xf] %v1397
      %1526 = vst [vmem:[%s259 + $0xc] sm:$0xf] %v1398
      %1527 = vst [vmem:[%s259 + $0x10] sm:$0xf] %v1399
      %1528 = vst [vmem:[%s259 + $0x14] sm:$0xf] %v1400
      %1529 = vst [vmem:[%s259 + $0x18] sm:$0xf] %v1401
      %1530 = vst [vmem:[%s259 + $0x1c] sm:$0xf] %v1402
      %1531 = vst [vmem:[%s259 + $0x20] sm:$0xf] %v1403
      %1532 = vst [vmem:[%s259 + $0x24] sm:$0xf] %v1404
      %1533 = vst [vmem:[%s259 + $0x28] sm:$0xf] %v1405
      %1534 = vst [vmem:[%s259 + $0x2c] sm:$0xf] %v1406
      %1535 = vst [vmem:[%s259 + $0x30] sm:$0xf] %v1407
      %1536 = vst [vmem:[%s259 + $0x34] sm:$0xf] %v1408
      %1537 = vst [vmem:[%s259 + $0x38] sm:$0xf] %v1409
      %1538 = vst [vmem:[%s259 + $0x3c] sm:$0xf] %v1410
      %1539 = vst [vmem:[%s259 + $0x40] sm:$0xf] %v1411
      %1540 = vst [vmem:[%s259 + $0x44] sm:$0xf] %v1412
      %1541 = vst [vmem:[%s259 + $0x48] sm:$0xf] %v1413
      %1542 = vst [vmem:[%s259 + $0x4c] sm:$0xf] %v1414
      %1543 = vst [vmem:[%s259 + $0x50] sm:$0xf] %v1415
      %1544 = vst [vmem:[%s259 + $0x54] sm:$0xf] %v1416
      %1545 = vst [vmem:[%s259 + $0x58] sm:$0xf] %v1417
      %1546 = vst [vmem:[%s259 + $0x5c] sm:$0xf] %v1418
      %1547 = vst [vmem:[%s259 + $0x60] sm:$0xf] %v1419
      %1548 = vst [vmem:[%s259 + $0x64] sm:$0xf] %v1420
      %1549 = vst [vmem:[%s259 + $0x68] sm:$0xf] %v1421
      %1550 = vst [vmem:[%s259 + $0x6c] sm:$0xf] %v1422
      %1551 = vst [vmem:[%s259 + $0x70] sm:$0xf] %v1423
      %1552 = vst [vmem:[%s259 + $0x74] sm:$0xf] %v1424
      %1553 = vst [vmem:[%s259 + $0x78] sm:$0xf] %v1425
      %1554 = vst [vmem:[%s259 + $0x7c] sm:$0xf] %v1426
      %1555 = vst [vmem:[%s259 + $0x80] sm:$0xf] %v1427
      %1556 = vst [vmem:[%s259 + $0x84] sm:$0xf] %v1428
      %1557 = vst [vmem:[%s259 + $0x88] sm:$0xf] %v1429
      %1558 = vst [vmem:[%s259 + $0x8c] sm:$0xf] %v1430
      %1559 = vst [vmem:[%s259 + $0x90] sm:$0xf] %v1431
      %1560 = vst [vmem:[%s259 + $0x94] sm:$0xf] %v1432
      %1561 = vst [vmem:[%s259 + $0x98] sm:$0xf] %v1433
      %1562 = vst [vmem:[%s259 + $0x9c] sm:$0xf] %v1434
      %1563 = vst [vmem:[%s259 + $0xa0] sm:$0xf] %v1435
      %1564 = vst [vmem:[%s259 + $0xa4] sm:$0xf] %v1436
      %1565 = vst [vmem:[%s259 + $0xa8] sm:$0xf] %v1437
      %1566 = vst [vmem:[%s259 + $0xac] sm:$0xf] %v1438
      %1567 = vst [vmem:[%s259 + $0xb0] sm:$0xf] %v1439
      %1568 = vst [vmem:[%s259 + $0xb4] sm:$0xf] %v1440
      %1569 = vst [vmem:[%s259 + $0xb8] sm:$0xf] %v1441
      %1570 = vst [vmem:[%s259 + $0xbc] sm:$0xf] %v1442
      %1571 = vst [vmem:[%s259 + $0xc0] sm:$0xf] %v1443
      %1572 = vst [vmem:[%s259 + $0xc4] sm:$0xf] %v1444
      %1573 = vst [vmem:[%s259 + $0xc8] sm:$0xf] %v1445
      %1574 = vst [vmem:[%s259 + $0xcc] sm:$0xf] %v1446
      %1575 = vst [vmem:[%s259 + $0xd0] sm:$0xf] %v1447
      %1576 = vst [vmem:[%s259 + $0xd4] sm:$0xf] %v1448
      %1577 = vst [vmem:[%s259 + $0xd8] sm:$0xf] %v1449
      %1578 = vst [vmem:[%s259 + $0xdc] sm:$0xf] %v1450
      %1579 = vst [vmem:[%s259 + $0xe0] sm:$0xf] %v1451
      %1580 = vst [vmem:[%s259 + $0xe4] sm:$0xf] %v1452
      %1581 = vst [vmem:[%s259 + $0xe8] sm:$0xf] %v1453
      %1582 = vst [vmem:[%s259 + $0xec] sm:$0xf] %v1454
      %1583 = vst [vmem:[%s259 + $0xf0] sm:$0xf] %v1455
      %1584 = vst [vmem:[%s259 + $0xf4] sm:$0xf] %v1456
      %1585 = vst [vmem:[%s259 + $0xf8] sm:$0xf] %v1457
      %1586 = vst [vmem:[%s259 + $0xfc] sm:$0xf] %v1458
      %s1587 = smul.u32 64, %s21
      %p1588 = scmp.lt.s32.totalorder %s20, 1
      %s1589 = scalar_select %p1588, %s20, 1
      %p1590 = scmp.lt.s32.totalorder %s1587, 63
      %s1591 = scalar_select %p1590, %s1587, 63
      %s1592 = smul.addr %s1589, 64
      %s1593 = sadd.s32 %s1591, %s1592
      %s1594 = smul.addr %s1593, 4
      %s1595 = scalar_lea.vmem %s3, %s1594
      %s1596 = smul.u32 64, %s21
      %p1597 = scmp.lt.s32.totalorder %s20, 1
      %s1598 = scalar_select %p1597, %s20, 1
      %p1599 = scmp.lt.s32.totalorder %s1596, 63
      %s1600 = scalar_select %p1599, %s1596, 63
      %s1601 = smul.addr %s1598, 64
      %s1602 = sadd.s32 %s1600, %s1601
      %s1603 = smul.addr %s1602, 4
      %s1604 = scalar_lea.vmem %s4, %s1603
      // Predicated region
      $region33: #{nl_block_nd_embedded.2} parent=31 // pred_check
        %p1605 = pneg %p118
      $region34: #{nl_block_nd_embedded.2} parent=31 // pred_check_branch
        %1607 = sbr.rel (%p1605) target = $region36
      $region35: #{nl_block_nd_embedded.2} parent=31 // pred_region
        %s1608 = smul.u32 64, %s21
      $region36: #{nl_block_nd_embedded.2} parent=31 // pred_fallthru
        _
      // Predicated region
      $region37: #{nl_block_nd_embedded.2} parent=31 // pred_check
        %p1609 = pneg %p146
      $region38: #{nl_block_nd_embedded.2} parent=31 // pred_check_branch
        %1611 = sbr.rel (%p1609) target = $region40
      $region39: #{nl_block_nd_embedded.2} parent=31 // pred_region
        %s1612 = smul.u32 64, %s21
      $region40: #{nl_block_nd_embedded.2} parent=31 // pred_fallthru
        _
    $region32: #{nl_block_nd_embedded.2} parent=5 // pred_fallthru
      _
    %p1613 = scmp.le.s32.totalorder 2, %s11
    // Predicated region
    $region41: #{nl_block_nd_embedded.2} parent=5 // pred_check
      %p1614 = pneg %p1613
    $region42: #{nl_block_nd_embedded.2} parent=5 // pred_check_branch
      %1616 = sbr.rel (%p1614) target = $region44
    $region43: #{nl_block_nd_embedded.2} parent=5 // pred_region
      %s1617 = ssub.s32 %s11, 2
      // Predicated region
      $region45: #{nl_block_nd_embedded.2} parent=43 // pred_check
        %p1618 = pneg %p124
      $region46: #{nl_block_nd_embedded.2} parent=43 // pred_check_branch
        %1620 = sbr.rel (%p1618) target = $region48
      $region47: #{nl_block_nd_embedded.2} parent=43 // pred_region
        %s1621 = smul.u32 64, %s23
        %p1622 = scmp.lt.s32.totalorder %s22, 1
        %s1623 = scalar_select %p1622, %s22, 1
        %p1624 = scmp.lt.s32.totalorder %s1621, 63
        %s1625 = scalar_select %p1624, %s1621, 63
        %s1626 = smul.addr %s1623, 64
        %s1627 = sadd.s32 %s1625, %s1626
        %s1628 = smul.addr %s1627, 4
        %s1629 = scalar_lea.vmem %s3, %s1628
      $region48: #{nl_block_nd_embedded.2} parent=43 // pred_fallthru
        _
      // Predicated region
      $region49: #{nl_block_nd_embedded.2} parent=43 // pred_check
        %p1630 = pneg %p152
      $region50: #{nl_block_nd_embedded.2} parent=43 // pred_check_branch
        %1632 = sbr.rel (%p1630) target = $region52
      $region51: #{nl_block_nd_embedded.2} parent=43 // pred_region
        %s1633 = smul.u32 64, %s23
        %p1634 = scmp.lt.s32.totalorder %s22, 1
        %s1635 = scalar_select %p1634, %s22, 1
        %p1636 = scmp.lt.s32.totalorder %s1633, 63
        %s1637 = scalar_select %p1636, %s1633, 63
        %s1638 = smul.addr %s1635, 64
        %s1639 = sadd.s32 %s1637, %s1638
        %s1640 = smul.addr %s1639, 4
        %s1641 = scalar_lea.vmem %s4, %s1640
      $region52: #{nl_block_nd_embedded.2} parent=43 // pred_fallthru
        _
    $region44: #{nl_block_nd_embedded.2} parent=5 // pred_fallthru
      _
  $region6: #{nl_block_nd_embedded.2} parent=0 // loop_footer
    %s15 = sadd.s32 1, %s11
  $region7: #{nl_block_nd_embedded.2} parent=0 // loop_footer_branch
    %10 = sbr.rel target = $region3
  $region8: #{nl_block_nd_embedded.2} parent=0 // loop_exit
    _

// kernel: nl_block_nd_embedded.3
$region0: #{nl_block_nd_embedded.3}
  #allocation0 [shape = 'u32[]', space=smem, size = 0x4, offset = 0x4, fixed_abs, tag = 'smem constant byte address 0x4 - core index']
  #allocation1 [shape = 'u32[144,128]{1,0:T(1,128)}', space=vmem, size = 0x12000, scoped, tag = 'internal scratch']
  #allocation2 [shape = 'bf16[256,128]{1,0:T(16,128)(2,1)}', space=vmem, size = 0x10000, scoped, tag = 'scratch operand']
  #allocation3 [shape = 'f32[256,1]{1,0:T(8,128)}', space=vmem, size = 0x20000, scoped, tag = 'scratch operand']
  #allocation4 [shape = 'f32[256,1]{1,0:T(8,128)}', space=vmem, size = 0x20000, scoped, tag = 'scratch operand']
  #allocation5 [shape = 'f32[256,128]{1,0:T(8,128)}', space=vmem, size = 0x20000, scoped, tag = 'scratch operand']
  %s0 = inlined_call_operand.vmem [shape: f32[2,128,512], index: 0, kind: input, shape index: {}]
  %s1 = inlined_call_operand.vmem [shape: bf16[2,512,128], index: 1, kind: input, shape index: {}]
  %s2 = inlined_call_operand.vmem [shape: bf16[2,512,128], index: 2, kind: input, shape index: {}]
  %s3 = inlined_call_operand.vmem [shape: bf16[128,128], index: 3, kind: input, shape index: {}]
  %s4 = inlined_call_operand.vmem [shape: f32[1,128], index: 4, kind: input, shape index: {}]
  %s5 = inlined_call_operand.vmem [shape: bf16[128,128], index: 5, kind: input, shape index: {}]
  %s6 = inlined_call_operand.vmem [shape: f32[128,1], index: 6, kind: input, shape index: {}]
  %s7 = inlined_call_operand.vmem [shape: f32[2,128,512], index: 7, kind: output, shape index: {}]
  %s8 = sld [smem:[#allocation0]]
  $region111: #{nl_block_nd_embedded.3} parent=0
    _
  %s10 = ssub.s32 1, %s8
  %s11 = scalar_select 0, %s10, %s8
  $region1: #{nl_block_nd_embedded.3} parent=0
    #allocation6 [shape = 'u8[262144]{0}', space=vmem, size = 0x40000, scoped, tag = 'input window, operand 0']
    #allocation7 [shape = 'u8[262144]{0}', space=vmem, size = 0x40000, scoped, tag = 'output window, operand 0']
    loop: start=0, step=1, limit=6
    $region2: #{nl_block_nd_embedded.3} parent=1 // loop_pre_header
      _
    $region3: #{nl_block_nd_embedded.3} parent=1 // loop_header
      %s13 = sphi 0, %s17
      %p14 = scmp.ge.s32.totalorder %s13, 6
      %s20 = sphi 0, %s39
      %s21 = sphi 0, %s35
      %s22 = sphi 0, %s31
      %s23 = sphi 0, %s20
      %s24 = sphi 0, %s21
      %s25 = sphi 0, %s22
      %s26 = sphi 0, %s23
      %s27 = sphi 0, %s24
      %s28 = sphi 0, %s25
      %s44 = sphi 0, %s46
      %s47 = sphi 0, %s44
      %s48 = sphi 0, %s47
      %s64 = sphi 0, %s48
      %s70 = sphi 0, %s72
      %s73 = sphi 0, %s70
      %s74 = sphi 0, %s73
      %s90 = sphi 0, %s74
      %s96 = sphi 0, %s98
      %s99 = sphi 0, %s96
      %s100 = sphi 0, %s99
      %s116 = sphi 0, %s100
      %s120 = sphi 0, %s120
      %s122 = sphi 0, %s120
      %s123 = sphi 0, %s122
      %s137 = sphi 0, %s123
      %s141 = sphi 0, %s141
      %s143 = sphi 0, %s141
      %s144 = sphi 0, %s143
      %s158 = sphi 0, %s144
      %s162 = sphi 0, %s162
      %s164 = sphi 0, %s162
      %s165 = sphi 0, %s164
      %s179 = sphi 0, %s165
      %s183 = sphi 0, %s183
      %s185 = sphi 0, %s183
      %s186 = sphi 0, %s185
      %s200 = sphi 0, %s186
      %s208 = sphi 0, %s210
      %s211 = sphi 0, %s208
      %s212 = sphi 0, %s211
      %s228 = sphi 0, %s212
    $region4: #{nl_block_nd_embedded.3} parent=1 // loop_header_branch
      %16 = sbr.rel (%p14) target = $region8
    $region5: #{nl_block_nd_embedded.3} parent=1 // loop_body
      %s18 = ssub.s32 %s13, 1
      %s19 = ssub.s32 %s13, 2
      %s29 = sadd.s32 1, %s22
      %p30 = scmp.ge.s32.totalorder %s29, 1
      %s31 = scalar_select %p30, 0, %s29
      %s32 = sadd.s32 1, %s21
      %s33 = scalar_select %p30, %s32, %s21
      %p34 = scmp.ge.s32.totalorder %s33, 2
      %s35 = scalar_select %p34, 0, %s33
      %s36 = sadd.s32 1, %s20
      %s37 = scalar_select %p34, %s36, %s20
      %p38 = scmp.ge.s32.totalorder %s37, 2
      %s39 = scalar_select %p38, 0, %s37
      %s40 = ssub.s32 %s20, %s39
      %s41 = ssub.s32 %s21, %s35
      %s42 = sor.u32 %s40, %s41
      %p43 = scmp.eq.s32.totalorder %s42, 0
      %s45 = sadd.s32 %s44, 1
      %s46 = scalar_select %p43, %s44, %s45
      %p49 = pneg %p43
      %p50 = scmp.eq.s32.totalorder %s13, 3
      %p51 = por %p49, %p50
      %p52 = scmp.ne.s32.totalorder %s44, %s47
      %p53 = scmp.eq.s32.totalorder %s13, 0
      %p54 = por %p52, %p53
      %p55 = scmp.ne.s32.totalorder %s44, %s47
      %p56 = scmp.eq.s32.totalorder %s18, 3
      %p57 = por %p55, %p56
      %p58 = scmp.ne.s32.totalorder %s47, %s48
      %p59 = scmp.eq.s32.totalorder %s18, 0
      %p60 = por %p58, %p59
      %p61 = scmp.ne.s32.totalorder %s47, %s48
      %p62 = scmp.eq.s32.totalorder %s19, 3
      %p63 = por %p61, %p62
      %p65 = scmp.ne.s32.totalorder %s48, %s64
      %p66 = scmp.eq.s32.totalorder %s19, 0
      %p67 = por %p65, %p66
      %s68 = ssub.s32 %s20, %s39
      %p69 = scmp.eq.s32.totalorder %s68, 0
      %s71 = sadd.s32 %s70, 1
      %s72 = scalar_select %p69, %s70, %s71
      %p75 = pneg %p69
      %p76 = scmp.eq.s32.totalorder %s13, 3
      %p77 = por %p75, %p76
      %p78 = scmp.ne.s32.totalorder %s70, %s73
      %p79 = scmp.eq.s32.totalorder %s13, 0
      %p80 = por %p78, %p79
      %p81 = scmp.ne.s32.totalorder %s70, %s73
      %p82 = scmp.eq.s32.totalorder %s18, 3
      %p83 = por %p81, %p82
      %p84 = scmp.ne.s32.totalorder %s73, %s74
      %p85 = scmp.eq.s32.totalorder %s18, 0
      %p86 = por %p84, %p85
      %p87 = scmp.ne.s32.totalorder %s73, %s74
      %p88 = scmp.eq.s32.totalorder %s19, 3
      %p89 = por %p87, %p88
      %p91 = scmp.ne.s32.totalorder %s74, %s90
      %p92 = scmp.eq.s32.totalorder %s19, 0
      %p93 = por %p91, %p92
      %s94 = ssub.s32 %s20, %s39
      %p95 = scmp.eq.s32.totalorder %s94, 0
      %s97 = sadd.s32 %s96, 1
      %s98 = scalar_select %p95, %s96, %s97
      %p101 = pneg %p95
      %p102 = scmp.eq.s32.totalorder %s13, 3
      %p103 = por %p101, %p102
      %p104 = scmp.ne.s32.totalorder %s96, %s99
      %p105 = scmp.eq.s32.totalorder %s13, 0
      %p106 = por %p104, %p105
      %p107 = scmp.ne.s32.totalorder %s96, %s99
      %p108 = scmp.eq.s32.totalorder %s18, 3
      %p109 = por %p107, %p108
      %p110 = scmp.ne.s32.totalorder %s99, %s100
      %p111 = scmp.eq.s32.totalorder %s18, 0
      %p112 = por %p110, %p111
      %p113 = scmp.ne.s32.totalorder %s99, %s100
      %p114 = scmp.eq.s32.totalorder %s19, 3
      %p115 = por %p113, %p114
      %p117 = scmp.ne.s32.totalorder %s100, %s116
      %p118 = scmp.eq.s32.totalorder %s19, 0
      %p119 = por %p117, %p118
      %s121 = sadd.s32 %s120, 1
      %p124 = scmp.eq.s32.totalorder %s13, 3
      %p125 = scmp.ne.s32.totalorder %s120, %s122
      %p126 = scmp.eq.s32.totalorder %s13, 0
      %p127 = por %p125, %p126
      %p128 = scmp.ne.s32.totalorder %s120, %s122
      %p129 = scmp.eq.s32.totalorder %s18, 3
      %p130 = por %p128, %p129
      %p131 = scmp.ne.s32.totalorder %s122, %s123
      %p132 = scmp.eq.s32.totalorder %s18, 0
      %p133 = por %p131, %p132
      %p134 = scmp.ne.s32.totalorder %s122, %s123
      %p135 = scmp.eq.s32.totalorder %s19, 3
      %p136 = por %p134, %p135
      %p138 = scmp.ne.s32.totalorder %s123, %s137
      %p139 = scmp.eq.s32.totalorder %s19, 0
      %p140 = por %p138, %p139
      %s142 = sadd.s32 %s141, 1
      %p145 = scmp.eq.s32.totalorder %s13, 3
      %p146 = scmp.ne.s32.totalorder %s141, %s143
      %p147 = scmp.eq.s32.totalorder %s13, 0
      %p148 = por %p146, %p147
      %p149 = scmp.ne.s32.totalorder %s141, %s143
      %p150 = scmp.eq.s32.totalorder %s18, 3
      %p151 = por %p149, %p150
      %p152 = scmp.ne.s32.totalorder %s143, %s144
      %p153 = scmp.eq.s32.totalorder %s18, 0
      %p154 = por %p152, %p153
      %p155 = scmp.ne.s32.totalorder %s143, %s144
      %p156 = scmp.eq.s32.totalorder %s19, 3
      %p157 = por %p155, %p156
      %p159 = scmp.ne.s32.totalorder %s144, %s158
      %p160 = scmp.eq.s32.totalorder %s19, 0
      %p161 = por %p159, %p160
      %s163 = sadd.s32 %s162, 1
      %p166 = scmp.eq.s32.totalorder %s13, 3
      %p167 = scmp.ne.s32.totalorder %s162, %s164
      %p168 = scmp.eq.s32.totalorder %s13, 0
      %p169 = por %p167, %p168
      %p170 = scmp.ne.s32.totalorder %s162, %s164
      %p171 = scmp.eq.s32.totalorder %s18, 3
      %p172 = por %p170, %p171
      %p173 = scmp.ne.s32.totalorder %s164, %s165
      %p174 = scmp.eq.s32.totalorder %s18, 0
      %p175 = por %p173, %p174
      %p176 = scmp.ne.s32.totalorder %s164, %s165
      %p177 = scmp.eq.s32.totalorder %s19, 3
      %p178 = por %p176, %p177
      %p180 = scmp.ne.s32.totalorder %s165, %s179
      %p181 = scmp.eq.s32.totalorder %s19, 0
      %p182 = por %p180, %p181
      %s184 = sadd.s32 %s183, 1
      %p187 = scmp.eq.s32.totalorder %s13, 3
      %p188 = scmp.ne.s32.totalorder %s183, %s185
      %p189 = scmp.eq.s32.totalorder %s13, 0
      %p190 = por %p188, %p189
      %p191 = scmp.ne.s32.totalorder %s183, %s185
      %p192 = scmp.eq.s32.totalorder %s18, 3
      %p193 = por %p191, %p192
      %p194 = scmp.ne.s32.totalorder %s185, %s186
      %p195 = scmp.eq.s32.totalorder %s18, 0
      %p196 = por %p194, %p195
      %p197 = scmp.ne.s32.totalorder %s185, %s186
      %p198 = scmp.eq.s32.totalorder %s19, 3
      %p199 = por %p197, %p198
      %p201 = scmp.ne.s32.totalorder %s186, %s200
      %p202 = scmp.eq.s32.totalorder %s19, 0
      %p203 = por %p201, %p202
      %s204 = ssub.s32 %s20, %s39
      %s205 = ssub.s32 %s21, %s35
      %s206 = sor.u32 %s204, %s205
      %p207 = scmp.eq.s32.totalorder %s206, 0
      %s209 = sadd.s32 %s208, 1
      %s210 = scalar_select %p207, %s208, %s209
      %p213 = pneg %p207
      %p214 = scmp.eq.s32.totalorder %s13, 3
      %p215 = por %p213, %p214
      %p216 = scmp.ne.s32.totalorder %s208, %s211
      %p217 = scmp.eq.s32.totalorder %s13, 0
      %p218 = por %p216, %p217
      %p219 = scmp.ne.s32.totalorder %s208, %s211
      %p220 = scmp.eq.s32.totalorder %s18, 3
      %p221 = por %p219, %p220
      %p222 = scmp.ne.s32.totalorder %s211, %s212
      %p223 = scmp.eq.s32.totalorder %s18, 0
      %p224 = por %p222, %p223
      %p225 = scmp.ne.s32.totalorder %s211, %s212
      %p226 = scmp.eq.s32.totalorder %s19, 3
      %p227 = por %p225, %p226
      %p229 = scmp.ne.s32.totalorder %s212, %s228
      %p230 = scmp.eq.s32.totalorder %s19, 0
      %p231 = por %p229, %p230
      %p232 = scmp.le.s32.totalorder 1, %s13
      %p233 = scmp.lt.s32.totalorder %s13, 5
      %p234 = pnand %p232, %p233
      %p235 = pneg %p234
      // Predicated region
      $region9: #{nl_block_nd_embedded.3} parent=5 // pred_check
        _
      $region10: #{nl_block_nd_embedded.3} parent=5 // pred_check_branch
        %237 = sbr.rel (%p234) target = $region12
      $region11: #{nl_block_nd_embedded.3} parent=5 // pred_region
        %s238 = ssub.s32 %s13, 1
        // Predicated region
        $region13: #{nl_block_nd_embedded.3} parent=11 // pred_check
          %p239 = pneg %p133
        $region14: #{nl_block_nd_embedded.3} parent=11 // pred_check_branch
          %241 = sbr.rel (%p239) target = $region16
        $region15: #{nl_block_nd_embedded.3} parent=11 // pred_region
          _
        $region16: #{nl_block_nd_embedded.3} parent=11 // pred_fallthru
          _
        // Predicated region
        $region17: #{nl_block_nd_embedded.3} parent=11 // pred_check
          %p242 = pneg %p154
        $region18: #{nl_block_nd_embedded.3} parent=11 // pred_check_branch
          %244 = sbr.rel (%p242) target = $region20
        $region19: #{nl_block_nd_embedded.3} parent=11 // pred_region
          _
        $region20: #{nl_block_nd_embedded.3} parent=11 // pred_fallthru
          _
        // Predicated region
        $region21: #{nl_block_nd_embedded.3} parent=11 // pred_check
          %p245 = pneg %p175
        $region22: #{nl_block_nd_embedded.3} parent=11 // pred_check_branch
          %247 = sbr.rel (%p245) target = $region24
        $region23: #{nl_block_nd_embedded.3} parent=11 // pred_region
          _
        $region24: #{nl_block_nd_embedded.3} parent=11 // pred_fallthru
          _
        // Predicated region
        $region25: #{nl_block_nd_embedded.3} parent=11 // pred_check
          %p248 = pneg %p196
        $region26: #{nl_block_nd_embedded.3} parent=11 // pred_check_branch
          %250 = sbr.rel (%p248) target = $region28
        $region27: #{nl_block_nd_embedded.3} parent=11 // pred_region
          _
        $region28: #{nl_block_nd_embedded.3} parent=11 // pred_fallthru
          _
      $region12: #{nl_block_nd_embedded.3} parent=5 // pred_fallthru
        _
      %p251 = scmp.lt.s32.totalorder %s13, 4
      // Predicated region
      $region29: #{nl_block_nd_embedded.3} parent=5 // pred_check
        %p252 = pneg %p251
      $region30: #{nl_block_nd_embedded.3} parent=5 // pred_check_branch
        %254 = sbr.rel (%p252) target = $region32
      $region31: #{nl_block_nd_embedded.3} parent=5 // pred_region
        // Predicated region
        $region33: #{nl_block_nd_embedded.3} parent=31 // pred_check
          %p255 = pneg %p54
        $region34: #{nl_block_nd_embedded.3} parent=31 // pred_check_branch
          %257 = sbr.rel (%p255) target = $region36
        $region35: #{nl_block_nd_embedded.3} parent=31 // pred_region
          %s258 = sand.u32 %s44, 1
          %s259 = sand.u32 %s44, 1
          %s260 = smul.addr %s259, 256
          %s261 = scalar_lea.vmem [#allocation6], %s260
          %s262 = smul.u32 2, %s21
          %s263 = smul.addr %s20, 64
          %s264 = sadd.s32 %s262, %s263
          %s265 = smul.addr %s264, 8
          %s266 = scalar_lea.vmem %s0, %s265
          // Predicated region
          $region37: #{nl_block_nd_embedded.3} parent=35 // pred_check
            _
          $region38: #{nl_block_nd_embedded.3} parent=35 // pred_check_branch
            %268 = sbr.rel (0) target = $region40
          $region39: #{nl_block_nd_embedded.3} parent=35 // pred_region
            // Predicated region
            $region41: #{nl_block_nd_embedded.3} parent=39 // pred_check
              _
            $region42: #{nl_block_nd_embedded.3} parent=39 // pred_check_branch
              %270 = sbr.rel (0) target = $region44
            $region43: #{nl_block_nd_embedded.3} parent=39 // pred_region
              loop: start=0, step=1, limit=1
              $region45: #{nl_block_nd_embedded.3} parent=43 // loop_pre_header
                _
              $region46: #{nl_block_nd_embedded.3} parent=43 // loop_header
                %s272 = sphi 0, %s276
                %p273 = scmp.ge.s32.totalorder %s272, 1
                %s277 = sphi %s266, %s266
                %s278 = sphi %s261, %s261
              $region47: #{nl_block_nd_embedded.3} parent=43 // loop_header_branch
                %275 = sbr.rel (%p273) target = $region51
              $region48: #{nl_block_nd_embedded.3} parent=43 // loop_body
                %v279 = vld [vmem:[%s277] sm:$0xff]
                %280 = vst [vmem:[%s278] sm:$0xff] %v279
                %v281 = vld [vmem:[%s277 + $0x8] sm:$0xff]
                %282 = vst [vmem:[%s278 + $0x8] sm:$0xff] %v281
                %v283 = vld [vmem:[%s277 + $0x20] sm:$0xff]
                %284 = vst [vmem:[%s278 + $0x10] sm:$0xff] %v283
                %v285 = vld [vmem:[%s277 + $0x28] sm:$0xff]
                %286 = vst [vmem:[%s278 + $0x18] sm:$0xff] %v285
                %v287 = vld [vmem:[%s277 + $0x40] sm:$0xff]
                %288 = vst [vmem:[%s278 + $0x20] sm:$0xff] %v287
                %v289 = vld [vmem:[%s277 + $0x48] sm:$0xff]
                %290 = vst [vmem:[%s278 + $0x28] sm:$0xff] %v289
                %v291 = vld [vmem:[%s277 + $0x60] sm:$0xff]
                %292 = vst [vmem:[%s278 + $0x30] sm:$0xff] %v291
                %v293 = vld [vmem:[%s277 + $0x68] sm:$0xff]
                %294 = vst [vmem:[%s278 + $0x38] sm:$0xff] %v293
                %v295 = vld [vmem:[%s277 + $0x80] sm:$0xff]
                %296 = vst [vmem:[%s278 + $0x40] sm:$0xff] %v295
                %v297 = vld [vmem:[%s277 + $0x88] sm:$0xff]
                %298 = vst [vmem:[%s278 + $0x48] sm:$0xff] %v297
                %v299 = vld [vmem:[%s277 + $0xa0] sm:$0xff]
                %300 = vst [vmem:[%s278 + $0x50] sm:$0xff] %v299
                %v301 = vld [vmem:[%s277 + $0xa8] sm:$0xff]
                %302 = vst [vmem:[%s278 + $0x58] sm:$0xff] %v301
                %v303 = vld [vmem:[%s277 + $0xc0] sm:$0xff]
                %304 = vst [vmem:[%s278 + $0x60] sm:$0xff] %v303
                %v305 = vld [vmem:[%s277 + $0xc8] sm:$0xff]
                %306 = vst [vmem:[%s278 + $0x68] sm:$0xff] %v305
                %v307 = vld [vmem:[%s277 + $0xe0] sm:$0xff]
                %308 = vst [vmem:[%s278 + $0x70] sm:$0xff] %v307
                %v309 = vld [vmem:[%s277 + $0xe8] sm:$0xff]
                %310 = vst [vmem:[%s278 + $0x78] sm:$0xff] %v309
                %v311 = vld [vmem:[%s277 + $0x100] sm:$0xff]
                %312 = vst [vmem:[%s278 + $0x80] sm:$0xff] %v311
                %v313 = vld [vmem:[%s277 + $0x108] sm:$0xff]
                %314 = vst [vmem:[%s278 + $0x88] sm:$0xff] %v313
                %v315 = vld [vmem:[%s277 + $0x120] sm:$0xff]
                %316 = vst [vmem:[%s278 + $0x90] sm:$0xff] %v315
                %v317 = vld [vmem:[%s277 + $0x128] sm:$0xff]
                %318 = vst [vmem:[%s278 + $0x98] sm:$0xff] %v317
                %v319 = vld [vmem:[%s277 + $0x140] sm:$0xff]
                %320 = vst [vmem:[%s278 + $0xa0] sm:$0xff] %v319
                %v321 = vld [vmem:[%s277 + $0x148] sm:$0xff]
                %322 = vst [vmem:[%s278 + $0xa8] sm:$0xff] %v321
                %v323 = vld [vmem:[%s277 + $0x160] sm:$0xff]
                %324 = vst [vmem:[%s278 + $0xb0] sm:$0xff] %v323
                %v325 = vld [vmem:[%s277 + $0x168] sm:$0xff]
                %326 = vst [vmem:[%s278 + $0xb8] sm:$0xff] %v325
                %v327 = vld [vmem:[%s277 + $0x180] sm:$0xff]
                %328 = vst [vmem:[%s278 + $0xc0] sm:$0xff] %v327
                %v329 = vld [vmem:[%s277 + $0x188] sm:$0xff]
                %330 = vst [vmem:[%s278 + $0xc8] sm:$0xff] %v329
                %v331 = vld [vmem:[%s277 + $0x1a0] sm:$0xff]
                %332 = vst [vmem:[%s278 + $0xd0] sm:$0xff] %v331
                %v333 = vld [vmem:[%s277 + $0x1a8] sm:$0xff]
                %334 = vst [vmem:[%s278 + $0xd8] sm:$0xff] %v333
                %v335 = vld [vmem:[%s277 + $0x1c0] sm:$0xff]
                %336 = vst [vmem:[%s278 + $0xe0] sm:$0xff] %v335
                %v337 = vld [vmem:[%s277 + $0x1c8] sm:$0xff]
                %338 = vst [vmem:[%s278 + $0xe8] sm:$0xff] %v337
                %v339 = vld [vmem:[%s277 + $0x1e0] sm:$0xff]
                %340 = vst [vmem:[%s278 + $0xf0] sm:$0xff] %v339
                %v341 = vld [vmem:[%s277 + $0x1e8] sm:$0xff]
                %342 = vst [vmem:[%s278 + $0xf8] sm:$0xff] %v341
              $region49: #{nl_block_nd_embedded.3} parent=43 // loop_footer
                %s276 = sadd.s32 1, %s272
              $region50: #{nl_block_nd_embedded.3} parent=43 // loop_footer_branch
                %271 = sbr.rel target = $region46
              $region51: #{nl_block_nd_embedded.3} parent=43 // loop_exit
                _
            $region44: #{nl_block_nd_embedded.3} parent=39 // pred_fallthru
              _
            // Predicated region
            $region52: #{nl_block_nd_embedded.3} parent=39 // pred_check
              _
            $region53: #{nl_block_nd_embedded.3} parent=39 // pred_check_branch
              %344 = sbr.rel target = $region55
            $region54: #{nl_block_nd_embedded.3} parent=39 // pred_region
              _
            $region55: #{nl_block_nd_embedded.3} parent=39 // pred_fallthru
              _
          $region40: #{nl_block_nd_embedded.3} parent=35 // pred_fallthru
            _
          %345 = vnop
        $region36: #{nl_block_nd_embedded.3} parent=31 // pred_fallthru
          _
        // Predicated region
        $region56: #{nl_block_nd_embedded.3} parent=31 // pred_check
          %p346 = pneg %p80
        $region57: #{nl_block_nd_embedded.3} parent=31 // pred_check_branch
          %348 = sbr.rel (%p346) target = $region59
        $region58: #{nl_block_nd_embedded.3} parent=31 // pred_region
          %p349 = scmp.lt.s32.totalorder %s20, 1
          %s350 = scalar_select %p349, %s20, 1
          %s351 = smul.addr %s350, 64
          %s352 = smul.addr %s351, 4
          %s353 = scalar_lea.vmem %s1, %s352
        $region59: #{nl_block_nd_embedded.3} parent=31 // pred_fallthru
          _
        // Predicated region
        $region60: #{nl_block_nd_embedded.3} parent=31 // pred_check
          %p354 = pneg %p106
        $region61: #{nl_block_nd_embedded.3} parent=31 // pred_check_branch
          %356 = sbr.rel (%p354) target = $region63
        $region62: #{nl_block_nd_embedded.3} parent=31 // pred_region
          %p357 = scmp.lt.s32.totalorder %s20, 1
          %s358 = scalar_select %p357, %s20, 1
          %s359 = smul.addr %s358, 64
          %s360 = smul.addr %s359, 4
          %s361 = scalar_lea.vmem %s2, %s360
        $region63: #{nl_block_nd_embedded.3} parent=31 // pred_fallthru
          _
      $region32: #{nl_block_nd_embedded.3} parent=5 // pred_fallthru
        _
      %p362 = scmp.le.s32.totalorder 1, %s13
      %p363 = scmp.lt.s32.totalorder %s13, 5
      %p364 = pnand %p362, %p363
      %p365 = pneg %p364
      // Predicated region
      $region64: #{nl_block_nd_embedded.3} parent=5 // pred_check
        _
      $region65: #{nl_block_nd_embedded.3} parent=5 // pred_check_branch
        %367 = sbr.rel (%p364) target = $region67
      $region66: #{nl_block_nd_embedded.3} parent=5 // pred_region
        %s368 = ssub.s32 %s13, 1
        %s369 = sand.u32 %s47, 1
        %s370 = sand.u32 %s47, 1
        %s371 = smul.addr %s370, 256
        %s372 = scalar_lea.vmem [#allocation6], %s371
        // Predicated region
        $region68: #{nl_block_nd_embedded.3} parent=66 // pred_check
          %p373 = pneg %p60
        $region69: #{nl_block_nd_embedded.3} parent=66 // pred_check_branch
          %375 = sbr.rel (%p373) target = $region71
        $region70: #{nl_block_nd_embedded.3} parent=66 // pred_region
          _
        $region71: #{nl_block_nd_embedded.3} parent=66 // pred_fallthru
          _
        %s376 = sand.u32 %s47, 1
        %s377 = sand.u32 %s47, 1
        %s378 = smul.addr %s377, 256
        %s379 = scalar_lea.vmem [#allocation6], %s378
        %p380 = pneg %p60
        %p381 = pneg %p57
        %p382 = scmp.lt.s32.totalorder %s23, 1
        %s383 = scalar_select %p382, %s23, 1
        %s384 = smul.addr %s383, 64
        %s385 = smul.addr %s384, 4
        %s386 = scalar_lea.vmem %s1, %s385
        %p387 = pneg %p86
        %p388 = pneg %p83
        %p389 = scmp.lt.s32.totalorder %s23, 1
        %s390 = scalar_select %p389, %s23, 1
        %s391 = smul.addr %s390, 64
        %s392 = smul.addr %s391, 4
        %s393 = scalar_lea.vmem %s2, %s392
        %p394 = pneg %p112
        %p395 = pneg %p109
        %p396 = pneg %p133
        %p397 = pneg %p130
        %p398 = pneg %p154
        %p399 = pneg %p151
        %p400 = pneg %p175
        %p401 = pneg %p172
        %p402 = pneg %p196
        %p403 = pneg %p193
        %p404 = pneg %p224
        %p405 = pneg %p221
        %s406 = sand.u32 %s211, 1
        %s407 = sand.u32 %s211, 1
        %s408 = smul.addr %s407, 256
        %s409 = scalar_lea.vmem [#allocation7], %s408
        %s410 = smul.u32 2, %s24
        %p411 = scmp.lt.s32.totalorder %s23, 1
        %s412 = scalar_select %p411, %s23, 1
        %s413 = smul.addr %s412, 64
        %s414 = smul.addr %s413, 4
        %s415 = scalar_lea.vmem %s1, %s414
        %p416 = scmp.lt.s32.totalorder %s23, 1
        %s417 = scalar_select %p416, %s23, 1
        %s418 = smul.addr %s417, 64
        %s419 = smul.addr %s418, 4
        %s420 = scalar_lea.vmem %s2, %s419
        %s421 = smul.u32 2, %s24
        %p423 = scmp.eq.s32.totalorder %s25, 0
        // Predicated region
        $region72: #{nl_block_nd_embedded.3} parent=66 // pred_check
          %p424 = pneg %p423
        $region73: #{nl_block_nd_embedded.3} parent=66 // pred_check_branch
          %426 = sbr.rel (%p424) target = $region75
        $region74: #{nl_block_nd_embedded.3} parent=66 // pred_region
          %vm427 = vcmask 7168
          %428 = vst.msk [vmem:[#allocation3] sm:$0xff] %vm427, -inf
          %429 = vst.msk [vmem:[#allocation3 + $0x8] sm:$0xff] %vm427, -inf
          %430 = vst.msk [vmem:[#allocation3 + $0x10] sm:$0xff] %vm427, -inf
          %431 = vst.msk [vmem:[#allocation3 + $0x18] sm:$0xff] %vm427, -inf
          %432 = vst.msk [vmem:[#allocation3 + $0x20] sm:$0xff] %vm427, -inf
          %433 = vst.msk [vmem:[#allocation3 + $0x28] sm:$0xff] %vm427, -inf
          %434 = vst.msk [vmem:[#allocation3 + $0x30] sm:$0xff] %vm427, -inf
          %435 = vst.msk [vmem:[#allocation3 + $0x38] sm:$0xff] %vm427, -inf
          %436 = vst.msk [vmem:[#allocation3 + $0x40] sm:$0xff] %vm427, -inf
          %437 = vst.msk [vmem:[#allocation3 + $0x48] sm:$0xff] %vm427, -inf
          %438 = vst.msk [vmem:[#allocation3 + $0x50] sm:$0xff] %vm427, -inf
          %439 = vst.msk [vmem:[#allocation3 + $0x58] sm:$0xff] %vm427, -inf
          %440 = vst.msk [vmem:[#allocation3 + $0x60] sm:$0xff] %vm427, -inf
          %441 = vst.msk [vmem:[#allocation3 + $0x68] sm:$0xff] %vm427, -inf
          %442 = vst.msk [vmem:[#allocation3 + $0x70] sm:$0xff] %vm427, -inf
          %443 = vst.msk [vmem:[#allocation3 + $0x78] sm:$0xff] %vm427, -inf
          %444 = vst.msk [vmem:[#allocation3 + $0x80] sm:$0xff] %vm427, -inf
          %445 = vst.msk [vmem:[#allocation3 + $0x88] sm:$0xff] %vm427, -inf
          %446 = vst.msk [vmem:[#allocation3 + $0x90] sm:$0xff] %vm427, -inf
          %447 = vst.msk [vmem:[#allocation3 + $0x98] sm:$0xff] %vm427, -inf
          %448 = vst.msk [vmem:[#allocation3 + $0xa0] sm:$0xff] %vm427, -inf
          %449 = vst.msk [vmem:[#allocation3 + $0xa8] sm:$0xff] %vm427, -inf
          %450 = vst.msk [vmem:[#allocation3 + $0xb0] sm:$0xff] %vm427, -inf
          %451 = vst.msk [vmem:[#allocation3 + $0xb8] sm:$0xff] %vm427, -inf
          %452 = vst.msk [vmem:[#allocation3 + $0xc0] sm:$0xff] %vm427, -inf
          %453 = vst.msk [vmem:[#allocation3 + $0xc8] sm:$0xff] %vm427, -inf
          %454 = vst.msk [vmem:[#allocation3 + $0xd0] sm:$0xff] %vm427, -inf
          %455 = vst.msk [vmem:[#allocation3 + $0xd8] sm:$0xff] %vm427, -inf
          %456 = vst.msk [vmem:[#allocation3 + $0xe0] sm:$0xff] %vm427, -inf
          %457 = vst.msk [vmem:[#allocation3 + $0xe8] sm:$0xff] %vm427, -inf
          %458 = vst.msk [vmem:[#allocation3 + $0xf0] sm:$0xff] %vm427, -inf
          %459 = vst.msk [vmem:[#allocation3 + $0xf8] sm:$0xff] %vm427, -inf
          %460 = vst.msk [vmem:[#allocation4] sm:$0xff] %vm427, 0.0
          %461 = vst.msk [vmem:[#allocation4 + $0x8] sm:$0xff] %vm427, 0.0
          %462 = vst.msk [vmem:[#allocation4 + $0x10] sm:$0xff] %vm427, 0.0
          %463 = vst.msk [vmem:[#allocation4 + $0x18] sm:$0xff] %vm427, 0.0
          %464 = vst.msk [vmem:[#allocation4 + $0x20] sm:$0xff] %vm427, 0.0
          %465 = vst.msk [vmem:[#allocation4 + $0x28] sm:$0xff] %vm427, 0.0
          %466 = vst.msk [vmem:[#allocation4 + $0x30] sm:$0xff] %vm427, 0.0
          %467 = vst.msk [vmem:[#allocation4 + $0x38] sm:$0xff] %vm427, 0.0
          %468 = vst.msk [vmem:[#allocation4 + $0x40] sm:$0xff] %vm427, 0.0
          %469 = vst.msk [vmem:[#allocation4 + $0x48] sm:$0xff] %vm427, 0.0
          %470 = vst.msk [vmem:[#allocation4 + $0x50] sm:$0xff] %vm427, 0.0
          %471 = vst.msk [vmem:[#allocation4 + $0x58] sm:$0xff] %vm427, 0.0
          %472 = vst.msk [vmem:[#allocation4 + $0x60] sm:$0xff] %vm427, 0.0
          %473 = vst.msk [vmem:[#allocation4 + $0x68] sm:$0xff] %vm427, 0.0
          %474 = vst.msk [vmem:[#allocation4 + $0x70] sm:$0xff] %vm427, 0.0
          %475 = vst.msk [vmem:[#allocation4 + $0x78] sm:$0xff] %vm427, 0.0
          %476 = vst.msk [vmem:[#allocation4 + $0x80] sm:$0xff] %vm427, 0.0
          %477 = vst.msk [vmem:[#allocation4 + $0x88] sm:$0xff] %vm427, 0.0
          %478 = vst.msk [vmem:[#allocation4 + $0x90] sm:$0xff] %vm427, 0.0
          %479 = vst.msk [vmem:[#allocation4 + $0x98] sm:$0xff] %vm427, 0.0
          %480 = vst.msk [vmem:[#allocation4 + $0xa0] sm:$0xff] %vm427, 0.0
          %481 = vst.msk [vmem:[#allocation4 + $0xa8] sm:$0xff] %vm427, 0.0
          %482 = vst.msk [vmem:[#allocation4 + $0xb0] sm:$0xff] %vm427, 0.0
          %483 = vst.msk [vmem:[#allocation4 + $0xb8] sm:$0xff] %vm427, 0.0
          %484 = vst.msk [vmem:[#allocation4 + $0xc0] sm:$0xff] %vm427, 0.0
          %485 = vst.msk [vmem:[#allocation4 + $0xc8] sm:$0xff] %vm427, 0.0
          %486 = vst.msk [vmem:[#allocation4 + $0xd0] sm:$0xff] %vm427, 0.0
          %487 = vst.msk [vmem:[#allocation4 + $0xd8] sm:$0xff] %vm427, 0.0
          %488 = vst.msk [vmem:[#allocation4 + $0xe0] sm:$0xff] %vm427, 0.0
          %489 = vst.msk [vmem:[#allocation4 + $0xe8] sm:$0xff] %vm427, 0.0
          %490 = vst.msk [vmem:[#allocation4 + $0xf0] sm:$0xff] %vm427, 0.0
          %491 = vst.msk [vmem:[#allocation4 + $0xf8] sm:$0xff] %vm427, 0.0
          %492 = vst [vmem:[#allocation5] sm:$0xff] 0.0
          %493 = vst [vmem:[#allocation5 + $0x8] sm:$0xff] 0.0
          %494 = vst [vmem:[#allocation5 + $0x10] sm:$0xff] 0.0
          %495 = vst [vmem:[#allocation5 + $0x18] sm:$0xff] 0.0
          %496 = vst [vmem:[#allocation5 + $0x20] sm:$0xff] 0.0
          %497 = vst [vmem:[#allocation5 + $0x28] sm:$0xff] 0.0
          %498 = vst [vmem:[#allocation5 + $0x30] sm:$0xff] 0.0
          %499 = vst [vmem:[#allocation5 + $0x38] sm:$0xff] 0.0
          %500 = vst [vmem:[#allocation5 + $0x40] sm:$0xff] 0.0
          %501 = vst [vmem:[#allocation5 + $0x48] sm:$0xff] 0.0
          %502 = vst [vmem:[#allocation5 + $0x50] sm:$0xff] 0.0
          %503 = vst [vmem:[#allocation5 + $0x58] sm:$0xff] 0.0
          %504 = vst [vmem:[#allocation5 + $0x60] sm:$0xff] 0.0
          %505 = vst [vmem:[#allocation5 + $0x68] sm:$0xff] 0.0
          %506 = vst [vmem:[#allocation5 + $0x70] sm:$0xff] 0.0
          %507 = vst [vmem:[#allocation5 + $0x78] sm:$0xff] 0.0
          %508 = vst [vmem:[#allocation5 + $0x80] sm:$0xff] 0.0
          %509 = vst [vmem:[#allocation5 + $0x88] sm:$0xff] 0.0
          %510 = vst [vmem:[#allocation5 + $0x90] sm:$0xff] 0.0
          %511 = vst [vmem:[#allocation5 + $0x98] sm:$0xff] 0.0
          %512 = vst [vmem:[#allocation5 + $0xa0] sm:$0xff] 0.0
          %513 = vst [vmem:[#allocation5 + $0xa8] sm:$0xff] 0.0
          %514 = vst [vmem:[#allocation5 + $0xb0] sm:$0xff] 0.0
          %515 = vst [vmem:[#allocation5 + $0xb8] sm:$0xff] 0.0
          %516 = vst [vmem:[#allocation5 + $0xc0] sm:$0xff] 0.0
          %517 = vst [vmem:[#allocation5 + $0xc8] sm:$0xff] 0.0
          %518 = vst [vmem:[#allocation5 + $0xd0] sm:$0xff] 0.0
          %519 = vst [vmem:[#allocation5 + $0xd8] sm:$0xff] 0.0
          %520 = vst [vmem:[#allocation5 + $0xe0] sm:$0xff] 0.0
          %521 = vst [vmem:[#allocation5 + $0xe8] sm:$0xff] 0.0
          %522 = vst [vmem:[#allocation5 + $0xf0] sm:$0xff] 0.0
          %523 = vst [vmem:[#allocation5 + $0xf8] sm:$0xff] 0.0
          %v524 = vld [vmem:[%s372] sm:$0xff]
          %v525 = vld [vmem:[%s372 + $0x8] sm:$0xff]
          %v526 = vld [vmem:[%s372 + $0x10] sm:$0xff]
          %v527 = vld [vmem:[%s372 + $0x18] sm:$0xff]
          %v528 = vld [vmem:[%s372 + $0x20] sm:$0xff]
          %v529 = vld [vmem:[%s372 + $0x28] sm:$0xff]
          %v530 = vld [vmem:[%s372 + $0x30] sm:$0xff]
          %v531 = vld [vmem:[%s372 + $0x38] sm:$0xff]
          %v532 = vld [vmem:[%s372 + $0x40] sm:$0xff]
          %v533 = vld [vmem:[%s372 + $0x48] sm:$0xff]
          %v534 = vld [vmem:[%s372 + $0x50] sm:$0xff]
          %v535 = vld [vmem:[%s372 + $0x58] sm:$0xff]
          %v536 = vld [vmem:[%s372 + $0x60] sm:$0xff]
          %v537 = vld [vmem:[%s372 + $0x68] sm:$0xff]
          %v538 = vld [vmem:[%s372 + $0x70] sm:$0xff]
          %v539 = vld [vmem:[%s372 + $0x78] sm:$0xff]
          %v540 = vld [vmem:[%s372 + $0x80] sm:$0xff]
          %v541 = vld [vmem:[%s372 + $0x88] sm:$0xff]
          %v542 = vld [vmem:[%s372 + $0x90] sm:$0xff]
          %v543 = vld [vmem:[%s372 + $0x98] sm:$0xff]
          %v544 = vld [vmem:[%s372 + $0xa0] sm:$0xff]
          %v545 = vld [vmem:[%s372 + $0xa8] sm:$0xff]
          %v546 = vld [vmem:[%s372 + $0xb0] sm:$0xff]
          %v547 = vld [vmem:[%s372 + $0xb8] sm:$0xff]
          %v548 = vld [vmem:[%s372 + $0xc0] sm:$0xff]
          %v549 = vld [vmem:[%s372 + $0xc8] sm:$0xff]
          %v550 = vld [vmem:[%s372 + $0xd0] sm:$0xff]
          %v551 = vld [vmem:[%s372 + $0xd8] sm:$0xff]
          %v552 = vld [vmem:[%s372 + $0xe0] sm:$0xff]
          %v553 = vld [vmem:[%s372 + $0xe8] sm:$0xff]
          %v554 = vld [vmem:[%s372 + $0xf0] sm:$0xff]
          %v555 = vld [vmem:[%s372 + $0xf8] sm:$0xff]
          %556 = vxpose.xlu0.b32.start [1/16] %v524, 128
          %557 = vxpose.xlu0.b32.cont [2/16] %v526, 128
          %558 = vxpose.xlu0.b32.cont [3/16] %v528, 128
          %559 = vxpose.xlu0.b32.cont [4/16] %v530, 128
          %560 = vxpose.xlu0.b32.cont [5/16] %v532, 128
          %561 = vxpose.xlu0.b32.cont [6/16] %v534, 128
          %562 = vxpose.xlu0.b32.cont [7/16] %v536, 128
          %563 = vxpose.xlu0.b32.cont [8/16] %v538, 128
          %564 = vxpose.xlu0.b32.cont [9/16] %v540, 128
          %565 = vxpose.xlu0.b32.cont [10/16] %v542, 128
          %566 = vxpose.xlu0.b32.cont [11/16] %v544, 128
          %567 = vxpose.xlu0.b32.cont [12/16] %v546, 128
          %568 = vxpose.xlu0.b32.cont [13/16] %v548, 128
          %569 = vxpose.xlu0.b32.cont [14/16] %v550, 128
          %570 = vxpose.xlu0.b32.cont [15/16] %v552, 128
          %571 = vxpose.xlu0.b32.end [16/16] %v554, 128
          %v572 = vpop.trf.xlu0
          %v573 = vpop.trf.xlu0
          %v574 = vpop.trf.xlu0
          %v575 = vpop.trf.xlu0
          %v576 = vpop.trf.xlu0
          %v577 = vpop.trf.xlu0
          %v578 = vpop.trf.xlu0
          %v579 = vpop.trf.xlu0
          %v580 = vpop.trf.xlu0
          %v581 = vpop.trf.xlu0
          %v582 = vpop.trf.xlu0
          %v583 = vpop.trf.xlu0
          %v584 = vpop.trf.xlu0
          %v585 = vpop.trf.xlu0
          %v586 = vpop.trf.xlu0
          %v587 = vpop.trf.xlu0
          %588 = vxpose.xlu0.b32.start [1/16] %v525, 128
          %589 = vxpose.xlu0.b32.cont [2/16] %v527, 128
          %590 = vxpose.xlu0.b32.cont [3/16] %v529, 128
          %591 = vxpose.xlu0.b32.cont [4/16] %v531, 128
          %592 = vxpose.xlu0.b32.cont [5/16] %v533, 128
          %593 = vxpose.xlu0.b32.cont [6/16] %v535, 128
          %594 = vxpose.xlu0.b32.cont [7/16] %v537, 128
          %595 = vxpose.xlu0.b32.cont [8/16] %v539, 128
          %596 = vxpose.xlu0.b32.cont [9/16] %v541, 128
          %597 = vxpose.xlu0.b32.cont [10/16] %v543, 128
          %598 = vxpose.xlu0.b32.cont [11/16] %v545, 128
          %599 = vxpose.xlu0.b32.cont [12/16] %v547, 128
          %600 = vxpose.xlu0.b32.cont [13/16] %v549, 128
          %601 = vxpose.xlu0.b32.cont [14/16] %v551, 128
          %602 = vxpose.xlu0.b32.cont [15/16] %v553, 128
          %603 = vxpose.xlu0.b32.end [16/16] %v555, 128
          %v604 = vpop.trf.xlu0
          %v605 = vpop.trf.xlu0
          %v606 = vpop.trf.xlu0
          %v607 = vpop.trf.xlu0
          %v608 = vpop.trf.xlu0
          %v609 = vpop.trf.xlu0
          %v610 = vpop.trf.xlu0
          %v611 = vpop.trf.xlu0
          %v612 = vpop.trf.xlu0
          %v613 = vpop.trf.xlu0
          %v614 = vpop.trf.xlu0
          %v615 = vpop.trf.xlu0
          %v616 = vpop.trf.xlu0
          %v617 = vpop.trf.xlu0
          %v618 = vpop.trf.xlu0
          %v619 = vpop.trf.xlu0
          %v620 = vpack.c.bf16 %v573, %v572
          %v621 = vpack.c.bf16 %v575, %v574
          %v622 = vpack.c.bf16 %v577, %v576
          %v623 = vpack.c.bf16 %v579, %v578
          %v624 = vpack.c.bf16 %v581, %v580
          %v625 = vpack.c.bf16 %v583, %v582
          %v626 = vpack.c.bf16 %v585, %v584
          %v627 = vpack.c.bf16 %v587, %v586
          %v628 = vpack.c.bf16 %v605, %v604
          %v629 = vpack.c.bf16 %v607, %v606
          %v630 = vpack.c.bf16 %v609, %v608
          %v631 = vpack.c.bf16 %v611, %v610
          %v632 = vpack.c.bf16 %v613, %v612
          %v633 = vpack.c.bf16 %v615, %v614
          %v634 = vpack.c.bf16 %v617, %v616
          %v635 = vpack.c.bf16 %v619, %v618
          %v636 = vld [vmem:[%s3] sm:$0xf]
          %v637 = vld [vmem:[%s3 + $0x4] sm:$0xf]
          %v638 = vld [vmem:[%s3 + $0x8] sm:$0xf]
          %v639 = vld [vmem:[%s3 + $0xc] sm:$0xf]
          %v640 = vld [vmem:[%s3 + $0x10] sm:$0xf]
          %v641 = vld [vmem:[%s3 + $0x14] sm:$0xf]
          %v642 = vld [vmem:[%s3 + $0x18] sm:$0xf]
          %v643 = vld [vmem:[%s3 + $0x1c] sm:$0xf]
          %v644 = vld [vmem:[%s3 + $0x20] sm:$0xf]
          %v645 = vld [vmem:[%s3 + $0x24] sm:$0xf]
          %v646 = vld [vmem:[%s3 + $0x28] sm:$0xf]
          %v647 = vld [vmem:[%s3 + $0x2c] sm:$0xf]
          %v648 = vld [vmem:[%s3 + $0x30] sm:$0xf]
          %v649 = vld [vmem:[%s3 + $0x34] sm:$0xf]
          %v650 = vld [vmem:[%s3 + $0x38] sm:$0xf]
          %v651 = vld [vmem:[%s3 + $0x3c] sm:$0xf]
          %v652 = vld [vmem:[%s4] sm:$0x1]
          %v654 = vlaneseq
          %v655 = vshrl.u32 %v654, 7
          %v656 = vsub.s32 0, %v655
          %v657 = vrot.slane %v652, %v656
          %v675 = vunpack.c.l.b16 %v636
          %v676 = vunpack.c.l.b16 %v637
          %v677 = vunpack.c.l.b16 %v638
          %v678 = vunpack.c.l.b16 %v639
          %v679 = vunpack.c.l.b16 %v640
          %v680 = vunpack.c.l.b16 %v641
          %v681 = vunpack.c.l.b16 %v642
          %v682 = vunpack.c.l.b16 %v643
          %v683 = vunpack.c.l.b16 %v644
          %v684 = vunpack.c.l.b16 %v645
          %v685 = vunpack.c.l.b16 %v646
          %v686 = vunpack.c.l.b16 %v647
          %v687 = vunpack.c.l.b16 %v648
          %v688 = vunpack.c.l.b16 %v649
          %v689 = vunpack.c.l.b16 %v650
          %v690 = vunpack.c.l.b16 %v651
          %v691 = vpack.c.b16 %v676, %v675
          %v692 = vpack.c.b16 %v678, %v677
          %v693 = vpack.c.b16 %v680, %v679
          %v694 = vpack.c.b16 %v682, %v681
          %v695 = vpack.c.b16 %v684, %v683
          %v696 = vpack.c.b16 %v686, %v685
          %v697 = vpack.c.b16 %v688, %v687
          %v698 = vpack.c.b16 %v690, %v689
          %707 = vmatprep.subr.bf16.mxu0 0
          %708 = vmatpush1.bf16.msra.mxu0 %v691
          %709 = vmatprep.subr.bf16.mxu0 0
          %710 = vmatpush1.bf16.msra.mxu0 %v692
          %711 = vmatprep.subr.bf16.mxu0 0
          %712 = vmatpush1.bf16.msra.mxu0 %v693
          %713 = vmatprep.subr.bf16.mxu0 0
          %714 = vmatpush1.bf16.msra.mxu0 %v694
          %715 = vmatprep.subr.bf16.mxu0 0
          %716 = vmatpush1.bf16.msra.mxu0 %v695
          %717 = vmatprep.subr.bf16.mxu0 0
          %718 = vmatpush1.bf16.msra.mxu0 %v696
          %719 = vmatprep.subr.bf16.mxu0 0
          %720 = vmatpush1.bf16.msra.mxu0 %v697
          %721 = vmatprep.subr.bf16.mxu0 0
          %722 = vmatpush1.bf16.msra.mxu0 %v698
          %723 = vmatprep.subr.bf16.mxu0 0
          %724 = vmatpush1.bf16.msra.mxu0 0
          %725 = vmatprep.subr.bf16.mxu0 0
          %726 = vmatpush1.bf16.msra.mxu0 0
          %727 = vmatprep.subr.bf16.mxu0 0
          %728 = vmatpush1.bf16.msra.mxu0 0
          %729 = vmatprep.subr.bf16.mxu0 0
          %730 = vmatpush1.bf16.msra.mxu0 0
          %731 = vmatprep.subr.bf16.mxu0 0
          %732 = vmatpush1.bf16.msra.mxu0 0
          %733 = vmatprep.subr.bf16.mxu0 0
          %734 = vmatpush1.bf16.msra.mxu0 0
          %735 = vmatprep.subr.bf16.mxu0 0
          %736 = vmatpush1.bf16.msra.mxu0 0
          %737 = vmatprep.subr.bf16.mxu0 0
          %738 = vmatpush1.bf16.msra.mxu0 0
          %739 = vmatprep.mubr.bf16.mxu0 0
          %740 = vmatmul.mubr.bf16.gmra.mrb[0].mxu0 %v620
          %v741 = vpop.f32.mrb[0].mxu0
          %v742 = vadd.f32 %v657, %v741
          %v743 = vpop.f32.mrb[0].mxu0
          %v744 = vpop.f32.mrb[0].mxu0
          %v745 = vadd.f32 %v657, %v744
          %v746 = vpop.f32.mrb[0].mxu0
          %747 = vmatprep.mubr.bf16.mxu0 0
          %748 = vmatmul.mubr.bf16.gmra.mrb[0].mxu0 %v621
          %v749 = vpop.f32.mrb[0].mxu0
          %v750 = vadd.f32 %v657, %v749
          %v751 = vpop.f32.mrb[0].mxu0
          %v752 = vpop.f32.mrb[0].mxu0
          %v753 = vadd.f32 %v657, %v752
          %v754 = vpop.f32.mrb[0].mxu0
          %755 = vmatprep.mubr.bf16.mxu0 0
          %756 = vmatmul.mubr.bf16.gmra.mrb[0].mxu0 %v622
          %v757 = vpop.f32.mrb[0].mxu0
          %v758 = vadd.f32 %v657, %v757
          %v759 = vpop.f32.mrb[0].mxu0
          %v760 = vpop.f32.mrb[0].mxu0
          %v761 = vadd.f32 %v657, %v760
          %v762 = vpop.f32.mrb[0].mxu0
          %763 = vmatprep.mubr.bf16.mxu0 0
          %764 = vmatmul.mubr.bf16.gmra.mrb[0].mxu0 %v623
          %v765 = vpop.f32.mrb[0].mxu0
          %v766 = vadd.f32 %v657, %v765
          %v767 = vpop.f32.mrb[0].mxu0
          %v768 = vpop.f32.mrb[0].mxu0
          %v769 = vadd.f32 %v657, %v768
          %v770 = vpop.f32.mrb[0].mxu0
          %771 = vmatprep.mubr.bf16.mxu0 0
          %772 = vmatmul.mubr.bf16.gmra.mrb[0].mxu0 %v624
          %v773 = vpop.f32.mrb[0].mxu0
          %v774 = vadd.f32 %v657, %v773
          %v775 = vpop.f32.mrb[0].mxu0
          %v776 = vpop.f32.mrb[0].mxu0
          %v777 = vadd.f32 %v657, %v776
          %v778 = vpop.f32.mrb[0].mxu0
          %779 = vmatprep.mubr.bf16.mxu0 0
          %780 = vmatmul.mubr.bf16.gmra.mrb[0].mxu0 %v625
          %v781 = vpop.f32.mrb[0].mxu0
          %v782 = vadd.f32 %v657, %v781
          %v783 = vpop.f32.mrb[0].mxu0
          %v784 = vpop.f32.mrb[0].mxu0
          %v785 = vadd.f32 %v657, %v784
          %v786 = vpop.f32.mrb[0].mxu0
          %787 = vmatprep.mubr.bf16.mxu0 0
          %788 = vmatmul.mubr.bf16.gmra.mrb[0].mxu0 %v626
          %v789 = vpop.f32.mrb[0].mxu0
          %v790 = vadd.f32 %v657, %v789
          %v791 = vpop.f32.mrb[0].mxu0
          %v792 = vpop.f32.mrb[0].mxu0
          %v793 = vadd.f32 %v657, %v792
          %v794 = vpop.f32.mrb[0].mxu0
          %795 = vmatprep.mubr.bf16.mxu0 0
          %796 = vmatmul.mubr.bf16.gmra.mrb[0].mxu0 %v627
          %v797 = vpop.f32.mrb[0].mxu0
          %v798 = vadd.f32 %v657, %v797
          %v799 = vpop.f32.mrb[0].mxu0
          %v800 = vpop.f32.mrb[0].mxu0
          %v801 = vadd.f32 %v657, %v800
          %v802 = vpop.f32.mrb[0].mxu0
          %803 = vmatprep.mubr.bf16.mxu0 0
          %804 = vmatmul.mubr.bf16.gmra.mrb[0].mxu0 %v628
          %v805 = vpop.f32.mrb[0].mxu0
          %v806 = vadd.f32 %v657, %v805
          %v807 = vpop.f32.mrb[0].mxu0
          %v808 = vpop.f32.mrb[0].mxu0
          %v809 = vadd.f32 %v657, %v808
          %v810 = vpop.f32.mrb[0].mxu0
          %811 = vmatprep.mubr.bf16.mxu0 0
          %812 = vmatmul.mubr.bf16.gmra.mrb[0].mxu0 %v629
          %v813 = vpop.f32.mrb[0].mxu0
          %v814 = vadd.f32 %v657, %v813
          %v815 = vpop.f32.mrb[0].mxu0
          %v816 = vpop.f32.mrb[0].mxu0
          %v817 = vadd.f32 %v657, %v816
          %v818 = vpop.f32.mrb[0].mxu0
          %819 = vmatprep.mubr.bf16.mxu0 0
          %820 = vmatmul.mubr.bf16.gmra.mrb[0].mxu0 %v630
          %v821 = vpop.f32.mrb[0].mxu0
          %v822 = vadd.f32 %v657, %v821
          %v823 = vpop.f32.mrb[0].mxu0
          %v824 = vpop.f32.mrb[0].mxu0
          %v825 = vadd.f32 %v657, %v824
          %v826 = vpop.f32.mrb[0].mxu0
          %827 = vmatprep.mubr.bf16.mxu0 0
          %828 = vmatmul.mubr.bf16.gmra.mrb[0].mxu0 %v631
          %v829 = vpop.f32.mrb[0].mxu0
          %v830 = vadd.f32 %v657, %v829
          %v831 = vpop.f32.mrb[0].mxu0
          %v832 = vpop.f32.mrb[0].mxu0
          %v833 = vadd.f32 %v657, %v832
          %v834 = vpop.f32.mrb[0].mxu0
          %835 = vmatprep.mubr.bf16.mxu0 0
          %836 = vmatmul.mubr.bf16.gmra.mrb[0].mxu0 %v632
          %v837 = vpop.f32.mrb[0].mxu0
          %v838 = vadd.f32 %v657, %v837
          %v839 = vpop.f32.mrb[0].mxu0
          %v840 = vpop.f32.mrb[0].mxu0
          %v841 = vadd.f32 %v657, %v840
          %v842 = vpop.f32.mrb[0].mxu0
          %843 = vmatprep.mubr.bf16.mxu0 0
          %844 = vmatmul.mubr.bf16.gmra.mrb[0].mxu0 %v633
          %v845 = vpop.f32.mrb[0].mxu0
          %v846 = vadd.f32 %v657, %v845
          %v847 = vpop.f32.mrb[0].mxu0
          %v848 = vpop.f32.mrb[0].mxu0
          %v849 = vadd.f32 %v657, %v848
          %v850 = vpop.f32.mrb[0].mxu0
          %851 = vmatprep.mubr.bf16.mxu0 0
          %852 = vmatmul.mubr.bf16.gmra.mrb[0].mxu0 %v634
          %v853 = vpop.f32.mrb[0].mxu0
          %v854 = vadd.f32 %v657, %v853
          %v855 = vpop.f32.mrb[0].mxu0
          %v856 = vpop.f32.mrb[0].mxu0
          %v857 = vadd.f32 %v657, %v856
          %v858 = vpop.f32.mrb[0].mxu0
          %859 = vmatprep.mubr.bf16.mxu0 0
          %860 = vmatmul.mubr.bf16.gmra.mrb[0].mxu0 %v635
          %v861 = vpop.f32.mrb[0].mxu0
          %v862 = vadd.f32 %v657, %v861
          %v863 = vpop.f32.mrb[0].mxu0
          %v864 = vpop.f32.mrb[0].mxu0
          %v865 = vadd.f32 %v657, %v864
          %v866 = vpop.f32.mrb[0].mxu0
          %867 = vdwg.mxu0
          %v868 = vpack.c.bf16 %v745, %v742
          %v869 = vpack.c.bf16 %v753, %v750
          %v870 = vpack.c.bf16 %v761, %v758
          %v871 = vpack.c.bf16 %v769, %v766
          %v872 = vpack.c.bf16 %v777, %v774
          %v873 = vpack.c.bf16 %v785, %v782
          %v874 = vpack.c.bf16 %v793, %v790
          %v875 = vpack.c.bf16 %v801, %v798
          %v876 = vpack.c.bf16 %v809, %v806
          %v877 = vpack.c.bf16 %v817, %v814
          %v878 = vpack.c.bf16 %v825, %v822
          %v879 = vpack.c.bf16 %v833, %v830
          %v880 = vpack.c.bf16 %v841, %v838
          %v881 = vpack.c.bf16 %v849, %v846
          %v882 = vpack.c.bf16 %v857, %v854
          %v883 = vpack.c.bf16 %v865, %v862
          %884 = vst [vmem:[#allocation2] sm:$0xff] %v868
          %885 = vst [vmem:[#allocation2 + $0x8] sm:$0xff] %v869
          %886 = vst [vmem:[#allocation2 + $0x10] sm:$0xff] %v870
          %887 = vst [vmem:[#allocation2 + $0x18] sm:$0xff] %v871
          %888 = vst [vmem:[#allocation2 + $0x20] sm:$0xff] %v872
          %889 = vst [vmem:[#allocation2 + $0x28] sm:$0xff] %v873
          %890 = vst [vmem:[#allocation2 + $0x30] sm:$0xff] %v874
          %891 = vst [vmem:[#allocation2 + $0x38] sm:$0xff] %v875
          %892 = vst [vmem:[#allocation2 + $0x40] sm:$0xff] %v876
          %893 = vst [vmem:[#allocation2 + $0x48] sm:$0xff] %v877
          %894 = vst [vmem:[#allocation2 + $0x50] sm:$0xff] %v878
          %895 = vst [vmem:[#allocation2 + $0x58] sm:$0xff] %v879
          %896 = vst [vmem:[#allocation2 + $0x60] sm:$0xff] %v880
          %897 = vst [vmem:[#allocation2 + $0x68] sm:$0xff] %v881
          %898 = vst [vmem:[#allocation2 + $0x70] sm:$0xff] %v882
          %899 = vst [vmem:[#allocation2 + $0x78] sm:$0xff] %v883
        $region75: #{nl_block_nd_embedded.3} parent=66 // pred_fallthru
          _
        %s900 = smul.u32 %s25, 512
        %s901 = sshra.s32 %s900, 3
        %s902 = sand.u32 %s900, 7
        %s903 = smul.addr %s901, 4
        %s904 = scalar_lea.vmem %s415, %s903
        %v905 = vld [vmem:[%s904] sm:$0xf]
        %v906 = vld [vmem:[%s904 + $0x4] sm:$0xf]
        %v907 = vld [vmem:[%s904 + $0x8] sm:$0xf]
        %v908 = vld [vmem:[%s904 + $0xc] sm:$0xf]
        %v909 = vld [vmem:[%s904 + $0x10] sm:$0xf]
        %v910 = vld [vmem:[%s904 + $0x14] sm:$0xf]
        %v911 = vld [vmem:[%s904 + $0x18] sm:$0xf]
        %v912 = vld [vmem:[%s904 + $0x1c] sm:$0xf]
        %v913 = vld [vmem:[%s904 + $0x20] sm:$0xf]
        %v914 = vld [vmem:[%s904 + $0x24] sm:$0xf]
        %v915 = vld [vmem:[%s904 + $0x28] sm:$0xf]
        %v916 = vld [vmem:[%s904 + $0x2c] sm:$0xf]
        %v917 = vld [vmem:[%s904 + $0x30] sm:$0xf]
        %v918 = vld [vmem:[%s904 + $0x34] sm:$0xf]
        %v919 = vld [vmem:[%s904 + $0x38] sm:$0xf]
        %v920 = vld [vmem:[%s904 + $0x3c] sm:$0xf]
        %v921 = vld [vmem:[%s904 + $0x40] sm:$0xf]
        %v922 = vld [vmem:[%s904 + $0x44] sm:$0xf]
        %v923 = vld [vmem:[%s904 + $0x48] sm:$0xf]
        %v924 = vld [vmem:[%s904 + $0x4c] sm:$0xf]
        %v925 = vld [vmem:[%s904 + $0x50] sm:$0xf]
        %v926 = vld [vmem:[%s904 + $0x54] sm:$0xf]
        %v927 = vld [vmem:[%s904 + $0x58] sm:$0xf]
        %v928 = vld [vmem:[%s904 + $0x5c] sm:$0xf]
        %v929 = vld [vmem:[%s904 + $0x60] sm:$0xf]
        %v930 = vld [vmem:[%s904 + $0x64] sm:$0xf]
        %v931 = vld [vmem:[%s904 + $0x68] sm:$0xf]
        %v932 = vld [vmem:[%s904 + $0x6c] sm:$0xf]
        %v933 = vld [vmem:[%s904 + $0x70] sm:$0xf]
        %v934 = vld [vmem:[%s904 + $0x74] sm:$0xf]
        %v935 = vld [vmem:[%s904 + $0x78] sm:$0xf]
        %v936 = vld [vmem:[%s904 + $0x7c] sm:$0xf]
        %v937 = vld [vmem:[%s904 + $0x80] sm:$0xf]
        %v938 = vld [vmem:[%s904 + $0x84] sm:$0xf]
        %v939 = vld [vmem:[%s904 + $0x88] sm:$0xf]
        %v940 = vld [vmem:[%s904 + $0x8c] sm:$0xf]
        %v941 = vld [vmem:[%s904 + $0x90] sm:$0xf]
        %v942 = vld [vmem:[%s904 + $0x94] sm:$0xf]
        %v943 = vld [vmem:[%s904 + $0x98] sm:$0xf]
        %v944 = vld [vmem:[%s904 + $0x9c] sm:$0xf]
        %v945 = vld [vmem:[%s904 + $0xa0] sm:$0xf]
        %v946 = vld [vmem:[%s904 + $0xa4] sm:$0xf]
        %v947 = vld [vmem:[%s904 + $0xa8] sm:$0xf]
        %v948 = vld [vmem:[%s904 + $0xac] sm:$0xf]
        %v949 = vld [vmem:[%s904 + $0xb0] sm:$0xf]
        %v950 = vld [vmem:[%s904 + $0xb4] sm:$0xf]
        %v951 = vld [vmem:[%s904 + $0xb8] sm:$0xf]
        %v952 = vld [vmem:[%s904 + $0xbc] sm:$0xf]
        %v953 = vld [vmem:[%s904 + $0xc0] sm:$0xf]
        %v954 = vld [vmem:[%s904 + $0xc4] sm:$0xf]
        %v955 = vld [vmem:[%s904 + $0xc8] sm:$0xf]
        %v956 = vld [vmem:[%s904 + $0xcc] sm:$0xf]
        %v957 = vld [vmem:[%s904 + $0xd0] sm:$0xf]
        %v958 = vld [vmem:[%s904 + $0xd4] sm:$0xf]
        %v959 = vld [vmem:[%s904 + $0xd8] sm:$0xf]
        %v960 = vld [vmem:[%s904 + $0xdc] sm:$0xf]
        %v961 = vld [vmem:[%s904 + $0xe0] sm:$0xf]
        %v962 = vld [vmem:[%s904 + $0xe4] sm:$0xf]
        %v963 = vld [vmem:[%s904 + $0xe8] sm:$0xf]
        %v964 = vld [vmem:[%s904 + $0xec] sm:$0xf]
        %v965 = vld [vmem:[%s904 + $0xf0] sm:$0xf]
        %v966 = vld [vmem:[%s904 + $0xf4] sm:$0xf]
        %v967 = vld [vmem:[%s904 + $0xf8] sm:$0xf]
        %v968 = vld [vmem:[%s904 + $0xfc] sm:$0xf]
        %s969 = smul.addr %s901, 4
        %s970 = scalar_lea.vmem %s420, %s969
        %v971 = vld [vmem:[%s970] sm:$0xf]
        %v972 = vld [vmem:[%s970 + $0x4] sm:$0xf]
        %v973 = vld [vmem:[%s970 + $0x8] sm:$0xf]
        %v974 = vld [vmem:[%s970 + $0xc] sm:$0xf]
        %v975 = vld [vmem:[%s970 + $0x10] sm:$0xf]
        %v976 = vld [vmem:[%s970 + $0x14] sm:$0xf]
        %v977 = vld [vmem:[%s970 + $0x18] sm:$0xf]
        %v978 = vld [vmem:[%s970 + $0x1c] sm:$0xf]
        %v979 = vld [vmem:[%s970 + $0x20] sm:$0xf]
        %v980 = vld [vmem:[%s970 + $0x24] sm:$0xf]
        %v981 = vld [vmem:[%s970 + $0x28] sm:$0xf]
        %v982 = vld [vmem:[%s970 + $0x2c] sm:$0xf]
        %v983 = vld [vmem:[%s970 + $0x30] sm:$0xf]
        %v984 = vld [vmem:[%s970 + $0x34] sm:$0xf]
        %v985 = vld [vmem:[%s970 + $0x38] sm:$0xf]
        %v986 = vld [vmem:[%s970 + $0x3c] sm:$0xf]
        %v987 = vld [vmem:[%s970 + $0x40] sm:$0xf]
        %v988 = vld [vmem:[%s970 + $0x44] sm:$0xf]
        %v989 = vld [vmem:[%s970 + $0x48] sm:$0xf]
        %v990 = vld [vmem:[%s970 + $0x4c] sm:$0xf]
        %v991 = vld [vmem:[%s970 + $0x50] sm:$0xf]
        %v992 = vld [vmem:[%s970 + $0x54] sm:$0xf]
        %v993 = vld [vmem:[%s970 + $0x58] sm:$0xf]
        %v994 = vld [vmem:[%s970 + $0x5c] sm:$0xf]
        %v995 = vld [vmem:[%s970 + $0x60] sm:$0xf]
        %v996 = vld [vmem:[%s970 + $0x64] sm:$0xf]
        %v997 = vld [vmem:[%s970 + $0x68] sm:$0xf]
        %v998 = vld [vmem:[%s970 + $0x6c] sm:$0xf]
        %v999 = vld [vmem:[%s970 + $0x70] sm:$0xf]
        %v1000 = vld [vmem:[%s970 + $0x74] sm:$0xf]
        %v1001 = vld [vmem:[%s970 + $0x78] sm:$0xf]
        %v1002 = vld [vmem:[%s970 + $0x7c] sm:$0xf]
        %v1003 = vld [vmem:[%s970 + $0x80] sm:$0xf]
        %v1004 = vld [vmem:[%s970 + $0x84] sm:$0xf]
        %v1005 = vld [vmem:[%s970 + $0x88] sm:$0xf]
        %v1006 = vld [vmem:[%s970 + $0x8c] sm:$0xf]
        %v1007 = vld [vmem:[%s970 + $0x90] sm:$0xf]
        %v1008 = vld [vmem:[%s970 + $0x94] sm:$0xf]
        %v1009 = vld [vmem:[%s970 + $0x98] sm:$0xf]
        %v1010 = vld [vmem:[%s970 + $0x9c] sm:$0xf]
        %v1011 = vld [vmem:[%s970 + $0xa0] sm:$0xf]
        %v1012 = vld [vmem:[%s970 + $0xa4] sm:$0xf]
        %v1013 = vld [vmem:[%s970 + $0xa8] sm:$0xf]
        %v1014 = vld [vmem:[%s970 + $0xac] sm:$0xf]
        %v1015 = vld [vmem:[%s970 + $0xb0] sm:$0xf]
        %v1016 = vld [vmem:[%s970 + $0xb4] sm:$0xf]
        %v1017 = vld [vmem:[%s970 + $0xb8] sm:$0xf]
        %v1018 = vld [vmem:[%s970 + $0xbc] sm:$0xf]
        %v1019 = vld [vmem:[%s970 + $0xc0] sm:$0xf]
        %v1020 = vld [vmem:[%s970 + $0xc4] sm:$0xf]
        %v1021 = vld [vmem:[%s970 + $0xc8] sm:$0xf]
        %v1022 = vld [vmem:[%s970 + $0xcc] sm:$0xf]
        %v1023 = vld [vmem:[%s970 + $0xd0] sm:$0xf]
        %v1024 = vld [vmem:[%s970 + $0xd4] sm:$0xf]
        %v1025 = vld [vmem:[%s970 + $0xd8] sm:$0xf]
        %v1026 = vld [vmem:[%s970 + $0xdc] sm:$0xf]
        %v1027 = vld [vmem:[%s970 + $0xe0] sm:$0xf]
        %v1028 = vld [vmem:[%s970 + $0xe4] sm:$0xf]
        %v1029 = vld [vmem:[%s970 + $0xe8] sm:$0xf]
        %v1030 = vld [vmem:[%s970 + $0xec] sm:$0xf]
        %v1031 = vld [vmem:[%s970 + $0xf0] sm:$0xf]
        %v1032 = vld [vmem:[%s970 + $0xf4] sm:$0xf]
        %v1033 = vld [vmem:[%s970 + $0xf8] sm:$0xf]
        %v1034 = vld [vmem:[%s970 + $0xfc] sm:$0xf]
        %v1035 = vld [vmem:[#allocation2] sm:$0xff]
        %v1036 = vld [vmem:[#allocation2 + $0x8] sm:$0xff]
        %v1037 = vld [vmem:[#allocation2 + $0x10] sm:$0xff]
        %v1038 = vld [vmem:[#allocation2 + $0x18] sm:$0xff]
        %v1039 = vld [vmem:[#allocation2 + $0x20] sm:$0xff]
        %v1040 = vld [vmem:[#allocation2 + $0x28] sm:$0xff]
        %v1041 = vld [vmem:[#allocation2 + $0x30] sm:$0xff]
        %v1042 = vld [vmem:[#allocation2 + $0x38] sm:$0xff]
        %v1043 = vld [vmem:[#allocation2 + $0x40] sm:$0xff]
        %v1044 = vld [vmem:[#allocation2 + $0x48] sm:$0xff]
        %v1045 = vld [vmem:[#allocation2 + $0x50] sm:$0xff]
        %v1046 = vld [vmem:[#allocation2 + $0x58] sm:$0xff]
        %v1047 = vld [vmem:[#allocation2 + $0x60] sm:$0xff]
        %v1048 = vld [vmem:[#allocation2 + $0x68] sm:$0xff]
        %v1049 = vld [vmem:[#allocation2 + $0x70] sm:$0xff]
        %v1050 = vld [vmem:[#allocation2 + $0x78] sm:$0xff]
        %v1115 = vunpack.c.l.b16 %v905
        %v1116 = vunpack.c.l.b16 %v906
        %v1117 = vunpack.c.l.b16 %v907
        %v1118 = vunpack.c.l.b16 %v908
        %v1119 = vunpack.c.l.b16 %v909
        %v1120 = vunpack.c.l.b16 %v910
        %v1121 = vunpack.c.l.b16 %v911
        %v1122 = vunpack.c.l.b16 %v912
        %v1123 = vunpack.c.l.b16 %v913
        %v1124 = vunpack.c.l.b16 %v914
        %v1125 = vunpack.c.l.b16 %v915
        %v1126 = vunpack.c.l.b16 %v916
        %v1127 = vunpack.c.l.b16 %v917
        %v1128 = vunpack.c.l.b16 %v918
        %v1129 = vunpack.c.l.b16 %v919
        %v1130 = vunpack.c.l.b16 %v920
        %v1131 = vunpack.c.l.b16 %v921
        %v1132 = vunpack.c.l.b16 %v922
        %v1133 = vunpack.c.l.b16 %v923
        %v1134 = vunpack.c.l.b16 %v924
        %v1135 = vunpack.c.l.b16 %v925
        %v1136 = vunpack.c.l.b16 %v926
        %v1137 = vunpack.c.l.b16 %v927
        %v1138 = vunpack.c.l.b16 %v928
        %v1139 = vunpack.c.l.b16 %v929
        %v1140 = vunpack.c.l.b16 %v930
        %v1141 = vunpack.c.l.b16 %v931
        %v1142 = vunpack.c.l.b16 %v932
        %v1143 = vunpack.c.l.b16 %v933
        %v1144 = vunpack.c.l.b16 %v934
        %v1145 = vunpack.c.l.b16 %v935
        %v1146 = vunpack.c.l.b16 %v936
        %v1147 = vunpack.c.l.b16 %v937
        %v1148 = vunpack.c.l.b16 %v938
        %v1149 = vunpack.c.l.b16 %v939
        %v1150 = vunpack.c.l.b16 %v940
        %v1151 = vunpack.c.l.b16 %v941
        %v1152 = vunpack.c.l.b16 %v942
        %v1153 = vunpack.c.l.b16 %v943
        %v1154 = vunpack.c.l.b16 %v944
        %v1155 = vunpack.c.l.b16 %v945
        %v1156 = vunpack.c.l.b16 %v946
        %v1157 = vunpack.c.l.b16 %v947
        %v1158 = vunpack.c.l.b16 %v948
        %v1159 = vunpack.c.l.b16 %v949
        %v1160 = vunpack.c.l.b16 %v950
        %v1161 = vunpack.c.l.b16 %v951
        %v1162 = vunpack.c.l.b16 %v952
        %v1163 = vunpack.c.l.b16 %v953
        %v1164 = vunpack.c.l.b16 %v954
        %v1165 = vunpack.c.l.b16 %v955
        %v1166 = vunpack.c.l.b16 %v956
        %v1167 = vunpack.c.l.b16 %v957
        %v1168 = vunpack.c.l.b16 %v958
        %v1169 = vunpack.c.l.b16 %v959
        %v1170 = vunpack.c.l.b16 %v960
        %v1171 = vunpack.c.l.b16 %v961
        %v1172 = vunpack.c.l.b16 %v962
        %v1173 = vunpack.c.l.b16 %v963
        %v1174 = vunpack.c.l.b16 %v964
        %v1175 = vunpack.c.l.b16 %v965
        %v1176 = vunpack.c.l.b16 %v966
        %v1177 = vunpack.c.l.b16 %v967
        %v1178 = vunpack.c.l.b16 %v968
        %v1179 = vpack.c.b16 %v1116, %v1115
        %v1180 = vpack.c.b16 %v1118, %v1117
        %v1181 = vpack.c.b16 %v1120, %v1119
        %v1182 = vpack.c.b16 %v1122, %v1121
        %v1183 = vpack.c.b16 %v1124, %v1123
        %v1184 = vpack.c.b16 %v1126, %v1125
        %v1185 = vpack.c.b16 %v1128, %v1127
        %v1186 = vpack.c.b16 %v1130, %v1129
        %v1187 = vpack.c.b16 %v1132, %v1131
        %v1188 = vpack.c.b16 %v1134, %v1133
        %v1189 = vpack.c.b16 %v1136, %v1135
        %v1190 = vpack.c.b16 %v1138, %v1137
        %v1191 = vpack.c.b16 %v1140, %v1139
        %v1192 = vpack.c.b16 %v1142, %v1141
        %v1193 = vpack.c.b16 %v1144, %v1143
        %v1194 = vpack.c.b16 %v1146, %v1145
        %v1195 = vpack.c.b16 %v1148, %v1147
        %v1196 = vpack.c.b16 %v1150, %v1149
        %v1197 = vpack.c.b16 %v1152, %v1151
        %v1198 = vpack.c.b16 %v1154, %v1153
        %v1199 = vpack.c.b16 %v1156, %v1155
        %v1200 = vpack.c.b16 %v1158, %v1157
        %v1201 = vpack.c.b16 %v1160, %v1159
        %v1202 = vpack.c.b16 %v1162, %v1161
        %v1203 = vpack.c.b16 %v1164, %v1163
        %v1204 = vpack.c.b16 %v1166, %v1165
        %v1205 = vpack.c.b16 %v1168, %v1167
        %v1206 = vpack.c.b16 %v1170, %v1169
        %v1207 = vpack.c.b16 %v1172, %v1171
        %v1208 = vpack.c.b16 %v1174, %v1173
        %v1209 = vpack.c.b16 %v1176, %v1175
        %v1210 = vpack.c.b16 %v1178, %v1177
        %1243 = vmatprep.subr.bf16.mxu0 0
        %1244 = vmatpush1.bf16.xpose.msra.mxu0 %v1179
        %1245 = vmatprep.subr.bf16.mxu0 0
        %1246 = vmatpush1.bf16.xpose.msra.mxu0 %v1180
        %1247 = vmatprep.subr.bf16.mxu0 0
        %1248 = vmatpush1.bf16.xpose.msra.mxu0 %v1181
        %1249 = vmatprep.subr.bf16.mxu0 0
        %1250 = vmatpush1.bf16.xpose.msra.mxu0 %v1182
        %1251 = vmatprep.subr.bf16.mxu0 0
        %1252 = vmatpush1.bf16.xpose.msra.mxu0 %v1183
        %1253 = vmatprep.subr.bf16.mxu0 0
        %1254 = vmatpush1.bf16.xpose.msra.mxu0 %v1184
        %1255 = vmatprep.subr.bf16.mxu0 0
        %1256 = vmatpush1.bf16.xpose.msra.mxu0 %v1185
        %1257 = vmatprep.subr.bf16.mxu0 0
        %1258 = vmatpush1.bf16.xpose.msra.mxu0 %v1186
        %1259 = vmatprep.subr.bf16.mxu0 0
        %1260 = vmatpush1.bf16.xpose.msra.mxu0 %v1187
        %1261 = vmatprep.subr.bf16.mxu0 0
        %1262 = vmatpush1.bf16.xpose.msra.mxu0 %v1188
        %1263 = vmatprep.subr.bf16.mxu0 0
        %1264 = vmatpush1.bf16.xpose.msra.mxu0 %v1189
        %1265 = vmatprep.subr.bf16.mxu0 0
        %1266 = vmatpush1.bf16.xpose.msra.mxu0 %v1190
        %1267 = vmatprep.subr.bf16.mxu0 0
        %1268 = vmatpush1.bf16.xpose.msra.mxu0 %v1191
        %1269 = vmatprep.subr.bf16.mxu0 0
        %1270 = vmatpush1.bf16.xpose.msra.mxu0 %v1192
        %1271 = vmatprep.subr.bf16.mxu0 0
        %1272 = vmatpush1.bf16.xpose.msra.mxu0 %v1193
        %1273 = vmatprep.subr.bf16.mxu0 0
        %1274 = vmatpush1.bf16.xpose.msra.mxu0 %v1194
        %1275 = vmatprep.mubr.bf16.mxu0 0
        %1276 = vmatmul.mubr.bf16.gmra.mrb[0].mxu0 %v1035
        %v1277 = vpop.f32.mrb[0].mxu0
        %v1278 = vadd.f32 0.0, %v1277
        %v1279 = vpop.f32.mrb[0].mxu0
        %v1280 = vadd.f32 0.0, %v1279
        %v1281 = vpop.f32.mrb[0].mxu0
        %v1282 = vadd.f32 0.0, %v1281
        %v1283 = vpop.f32.mrb[0].mxu0
        %v1284 = vadd.f32 0.0, %v1283
        %1285 = vmatprep.mubr.bf16.mxu0 0
        %1286 = vmatmul.mubr.bf16.gmra.mrb[0].mxu0 %v1036
        %v1287 = vpop.f32.mrb[0].mxu0
        %v1288 = vadd.f32 0.0, %v1287
        %v1289 = vpop.f32.mrb[0].mxu0
        %v1290 = vadd.f32 0.0, %v1289
        %v1291 = vpop.f32.mrb[0].mxu0
        %v1292 = vadd.f32 0.0, %v1291
        %v1293 = vpop.f32.mrb[0].mxu0
        %v1294 = vadd.f32 0.0, %v1293
        %1295 = vmatprep.mubr.bf16.mxu0 0
        %1296 = vmatmul.mubr.bf16.gmra.mrb[0].mxu0 %v1037
        %v1297 = vpop.f32.mrb[0].mxu0
        %v1298 = vadd.f32 0.0, %v1297
        %v1299 = vpop.f32.mrb[0].mxu0
        %v1300 = vadd.f32 0.0, %v1299
        %v1301 = vpop.f32.mrb[0].mxu0
        %v1302 = vadd.f32 0.0, %v1301
        %v1303 = vpop.f32.mrb[0].mxu0
        %v1304 = vadd.f32 0.0, %v1303
        %1305 = vmatprep.mubr.bf16.mxu0 0
        %1306 = vmatmul.mubr.bf16.gmra.mrb[0].mxu0 %v1038
        %v1307 = vpop.f32.mrb[0].mxu0
        %v1308 = vadd.f32 0.0, %v1307
        %v1309 = vpop.f32.mrb[0].mxu0
        %v1310 = vadd.f32 0.0, %v1309
        %v1311 = vpop.f32.mrb[0].mxu0
        %v1312 = vadd.f32 0.0, %v1311
        %v1313 = vpop.f32.mrb[0].mxu0
        %v1314 = vadd.f32 0.0, %v1313
        %1315 = vmatprep.mubr.bf16.mxu0 0
        %1316 = vmatmul.mubr.bf16.gmra.mrb[0].mxu0 %v1039
        %v1317 = vpop.f32.mrb[0].mxu0
        %v1318 = vadd.f32 0.0, %v1317
        %v1319 = vpop.f32.mrb[0].mxu0
        %v1320 = vadd.f32 0.0, %v1319
        %v1321 = vpop.f32.mrb[0].mxu0
        %v1322 = vadd.f32 0.0, %v1321
        %v1323 = vpop.f32.mrb[0].mxu0
        %v1324 = vadd.f32 0.0, %v1323
        %1325 = vmatprep.mubr.bf16.mxu0 0
        %1326 = vmatmul.mubr.bf16.gmra.mrb[0].mxu0 %v1040
        %v1327 = vpop.f32.mrb[0].mxu0
        %v1328 = vadd.f32 0.0, %v1327
        %v1329 = vpop.f32.mrb[0].mxu0
        %v1330 = vadd.f32 0.0, %v1329
        %v1331 = vpop.f32.mrb[0].mxu0
        %v1332 = vadd.f32 0.0, %v1331
        %v1333 = vpop.f32.mrb[0].mxu0
        %v1334 = vadd.f32 0.0, %v1333
        %1335 = vmatprep.mubr.bf16.mxu0 0
        %1336 = vmatmul.mubr.bf16.gmra.mrb[0].mxu0 %v1041
        %v1337 = vpop.f32.mrb[0].mxu0
        %v1338 = vadd.f32 0.0, %v1337
        %v1339 = vpop.f32.mrb[0].mxu0
        %v1340 = vadd.f32 0.0, %v1339
        %v1341 = vpop.f32.mrb[0].mxu0
        %v1342 = vadd.f32 0.0, %v1341
        %v1343 = vpop.f32.mrb[0].mxu0
        %v1344 = vadd.f32 0.0, %v1343
        %1345 = vmatprep.mubr.bf16.mxu0 0
        %1346 = vmatmul.mubr.bf16.gmra.mrb[0].mxu0 %v1042
        %v1347 = vpop.f32.mrb[0].mxu0
        %v1348 = vadd.f32 0.0, %v1347
        %v1349 = vpop.f32.mrb[0].mxu0
        %v1350 = vadd.f32 0.0, %v1349
        %v1351 = vpop.f32.mrb[0].mxu0
        %v1352 = vadd.f32 0.0, %v1351
        %v1353 = vpop.f32.mrb[0].mxu0
        %v1354 = vadd.f32 0.0, %v1353
        %1355 = vmatprep.mubr.bf16.mxu0 0
        %1356 = vmatmul.mubr.bf16.gmra.mrb[0].mxu0 %v1043
        %v1357 = vpop.f32.mrb[0].mxu0
        %v1358 = vadd.f32 0.0, %v1357
        %v1359 = vpop.f32.mrb[0].mxu0
        %v1360 = vadd.f32 0.0, %v1359
        %v1361 = vpop.f32.mrb[0].mxu0
        %v1362 = vadd.f32 0.0, %v1361
        %v1363 = vpop.f32.mrb[0].mxu0
        %v1364 = vadd.f32 0.0, %v1363
        %1365 = vmatprep.mubr.bf16.mxu0 0
        %1366 = vmatmul.mubr.bf16.gmra.mrb[0].mxu0 %v1044
        %v1367 = vpop.f32.mrb[0].mxu0
        %v1368 = vadd.f32 0.0, %v1367
        %v1369 = vpop.f32.mrb[0].mxu0
        %v1370 = vadd.f32 0.0, %v1369
        %v1371 = vpop.f32.mrb[0].mxu0
        %v1372 = vadd.f32 0.0, %v1371
        %v1373 = vpop.f32.mrb[0].mxu0
        %v1374 = vadd.f32 0.0, %v1373
        %1375 = vmatprep.mubr.bf16.mxu0 0
        %1376 = vmatmul.mubr.bf16.gmra.mrb[0].mxu0 %v1045
        %v1377 = vpop.f32.mrb[0].mxu0
        %v1378 = vadd.f32 0.0, %v1377
        %v1379 = vpop.f32.mrb[0].mxu0
        %v1380 = vadd.f32 0.0, %v1379
        %v1381 = vpop.f32.mrb[0].mxu0
        %v1382 = vadd.f32 0.0, %v1381
        %v1383 = vpop.f32.mrb[0].mxu0
        %v1384 = vadd.f32 0.0, %v1383
        %1385 = vmatprep.mubr.bf16.mxu0 0
        %1386 = vmatmul.mubr.bf16.gmra.mrb[0].mxu0 %v1046
        %v1387 = vpop.f32.mrb[0].mxu0
        %v1388 = vadd.f32 0.0, %v1387
        %v1389 = vpop.f32.mrb[0].mxu0
        %v1390 = vadd.f32 0.0, %v1389
        %v1391 = vpop.f32.mrb[0].mxu0
        %v1392 = vadd.f32 0.0, %v1391
        %v1393 = vpop.f32.mrb[0].mxu0
        %v1394 = vadd.f32 0.0, %v1393
        %1395 = vmatprep.mubr.bf16.mxu0 0
        %1396 = vmatmul.mubr.bf16.gmra.mrb[0].mxu0 %v1047
        %v1397 = vpop.f32.mrb[0].mxu0
        %v1398 = vadd.f32 0.0, %v1397
        %v1399 = vpop.f32.mrb[0].mxu0
        %v1400 = vadd.f32 0.0, %v1399
        %v1401 = vpop.f32.mrb[0].mxu0
        %v1402 = vadd.f32 0.0, %v1401
        %v1403 = vpop.f32.mrb[0].mxu0
        %v1404 = vadd.f32 0.0, %v1403
        %1405 = vmatprep.mubr.bf16.mxu0 0
        %1406 = vmatmul.mubr.bf16.gmra.mrb[0].mxu0 %v1048
        %v1407 = vpop.f32.mrb[0].mxu0
        %v1408 = vadd.f32 0.0, %v1407
        %v1409 = vpop.f32.mrb[0].mxu0
        %v1410 = vadd.f32 0.0, %v1409
        %v1411 = vpop.f32.mrb[0].mxu0
        %v1412 = vadd.f32 0.0, %v1411
        %v1413 = vpop.f32.mrb[0].mxu0
        %v1414 = vadd.f32 0.0, %v1413
        %1415 = vmatprep.mubr.bf16.mxu0 0
        %1416 = vmatmul.mubr.bf16.gmra.mrb[0].mxu0 %v1049
        %v1417 = vpop.f32.mrb[0].mxu0
        %v1418 = vadd.f32 0.0, %v1417
        %v1419 = vpop.f32.mrb[0].mxu0
        %v1420 = vadd.f32 0.0, %v1419
        %v1421 = vpop.f32.mrb[0].mxu0
        %v1422 = vadd.f32 0.0, %v1421
        %v1423 = vpop.f32.mrb[0].mxu0
        %v1424 = vadd.f32 0.0, %v1423
        %1425 = vmatprep.mubr.bf16.mxu0 0
        %1426 = vmatmul.mubr.bf16.gmra.mrb[0].mxu0 %v1050
        %v1427 = vpop.f32.mrb[0].mxu0
        %v1428 = vadd.f32 0.0, %v1427
        %v1429 = vpop.f32.mrb[0].mxu0
        %v1430 = vadd.f32 0.0, %v1429
        %v1431 = vpop.f32.mrb[0].mxu0
        %v1432 = vadd.f32 0.0, %v1431
        %v1433 = vpop.f32.mrb[0].mxu0
        %v1434 = vadd.f32 0.0, %v1433
        %1435 = vdwg.mxu0
        %1436 = vmatprep.subr.bf16.mxu0 0
        %1437 = vmatpush1.bf16.xpose.msra.mxu0 %v1195
        %1438 = vmatprep.subr.bf16.mxu0 0
        %1439 = vmatpush1.bf16.xpose.msra.mxu0 %v1196
        %1440 = vmatprep.subr.bf16.mxu0 0
        %1441 = vmatpush1.bf16.xpose.msra.mxu0 %v1197
        %1442 = vmatprep.subr.bf16.mxu0 0
        %1443 = vmatpush1.bf16.xpose.msra.mxu0 %v1198
        %1444 = vmatprep.subr.bf16.mxu0 0
        %1445 = vmatpush1.bf16.xpose.msra.mxu0 %v1199
        %1446 = vmatprep.subr.bf16.mxu0 0
        %1447 = vmatpush1.bf16.xpose.msra.mxu0 %v1200
        %1448 = vmatprep.subr.bf16.mxu0 0
        %1449 = vmatpush1.bf16.xpose.msra.mxu0 %v1201
        %1450 = vmatprep.subr.bf16.mxu0 0
        %1451 = vmatpush1.bf16.xpose.msra.mxu0 %v1202
        %1452 = vmatprep.subr.bf16.mxu0 0
        %1453 = vmatpush1.bf16.xpose.msra.mxu0 %v1203
        %1454 = vmatprep.subr.bf16.mxu0 0
        %1455 = vmatpush1.bf16.xpose.msra.mxu0 %v1204
        %1456 = vmatprep.subr.bf16.mxu0 0
        %1457 = vmatpush1.bf16.xpose.msra.mxu0 %v1205
        %1458 = vmatprep.subr.bf16.mxu0 0
        %1459 = vmatpush1.bf16.xpose.msra.mxu0 %v1206
        %1460 = vmatprep.subr.bf16.mxu0 0
        %1461 = vmatpush1.bf16.xpose.msra.mxu0 %v1207
        %1462 = vmatprep.subr.bf16.mxu0 0
        %1463 = vmatpush1.bf16.xpose.msra.mxu0 %v1208
        %1464 = vmatprep.subr.bf16.mxu0 0
        %1465 = vmatpush1.bf16.xpose.msra.mxu0 %v1209
        %1466 = vmatprep.subr.bf16.mxu0 0
        %1467 = vmatpush1.bf16.xpose.msra.mxu0 %v1210
        %1468 = vmatprep.mubr.bf16.mxu0 0
        %1469 = vmatmul.mubr.bf16.gmra.mrb[0].mxu0 %v1035
        %v1470 = vpop.f32.mrb[0].mxu0
        %v1471 = vadd.f32 0.0, %v1470
        %v1472 = vpop.f32.mrb[0].mxu0
        %v1473 = vadd.f32 0.0, %v1472
        %v1474 = vpop.f32.mrb[0].mxu0
        %v1475 = vadd.f32 0.0, %v1474
        %v1476 = vpop.f32.mrb[0].mxu0
        %v1477 = vadd.f32 0.0, %v1476
        %1478 = vmatprep.mubr.bf16.mxu0 0
        %1479 = vmatmul.mubr.bf16.gmra.mrb[0].mxu0 %v1036
        %v1480 = vpop.f32.mrb[0].mxu0
        %v1481 = vadd.f32 0.0, %v1480
        %v1482 = vpop.f32.mrb[0].mxu0
        %v1483 = vadd.f32 0.0, %v1482
        %v1484 = vpop.f32.mrb[0].mxu0
        %v1485 = vadd.f32 0.0, %v1484
        %v1486 = vpop.f32.mrb[0].mxu0
        %v1487 = vadd.f32 0.0, %v1486
        %1488 = vmatprep.mubr.bf16.mxu0 0
        %1489 = vmatmul.mubr.bf16.gmra.mrb[0].mxu0 %v1037
        %v1490 = vpop.f32.mrb[0].mxu0
        %v1491 = vadd.f32 0.0, %v1490
        %v1492 = vpop.f32.mrb[0].mxu0
        %v1493 = vadd.f32 0.0, %v1492
        %v1494 = vpop.f32.mrb[0].mxu0
        %v1495 = vadd.f32 0.0, %v1494
        %v1496 = vpop.f32.mrb[0].mxu0
        %v1497 = vadd.f32 0.0, %v1496
        %1498 = vmatprep.mubr.bf16.mxu0 0
        %1499 = vmatmul.mubr.bf16.gmra.mrb[0].mxu0 %v1038
        %v1500 = vpop.f32.mrb[0].mxu0
        %v1501 = vadd.f32 0.0, %v1500
        %v1502 = vpop.f32.mrb[0].mxu0
        %v1503 = vadd.f32 0.0, %v1502
        %v1504 = vpop.f32.mrb[0].mxu0
        %v1505 = vadd.f32 0.0, %v1504
        %v1506 = vpop.f32.mrb[0].mxu0
        %v1507 = vadd.f32 0.0, %v1506
        %1508 = vmatprep.mubr.bf16.mxu0 0
        %1509 = vmatmul.mubr.bf16.gmra.mrb[0].mxu0 %v1039
        %v1510 = vpop.f32.mrb[0].mxu0
        %v1511 = vadd.f32 0.0, %v1510
        %v1512 = vpop.f32.mrb[0].mxu0
        %v1513 = vadd.f32 0.0, %v1512
        %v1514 = vpop.f32.mrb[0].mxu0
        %v1515 = vadd.f32 0.0, %v1514
        %v1516 = vpop.f32.mrb[0].mxu0
        %v1517 = vadd.f32 0.0, %v1516
        %1518 = vmatprep.mubr.bf16.mxu0 0
        %1519 = vmatmul.mubr.bf16.gmra.mrb[0].mxu0 %v1040
        %v1520 = vpop.f32.mrb[0].mxu0
        %v1521 = vadd.f32 0.0, %v1520
        %v1522 = vpop.f32.mrb[0].mxu0
        %v1523 = vadd.f32 0.0, %v1522
        %v1524 = vpop.f32.mrb[0].mxu0
        %v1525 = vadd.f32 0.0, %v1524
        %v1526 = vpop.f32.mrb[0].mxu0
        %v1527 = vadd.f32 0.0, %v1526
        %1528 = vmatprep.mubr.bf16.mxu0 0
        %1529 = vmatmul.mubr.bf16.gmra.mrb[0].mxu0 %v1041
        %v1530 = vpop.f32.mrb[0].mxu0
        %v1531 = vadd.f32 0.0, %v1530
        %v1532 = vpop.f32.mrb[0].mxu0
        %v1533 = vadd.f32 0.0, %v1532
        %v1534 = vpop.f32.mrb[0].mxu0
        %v1535 = vadd.f32 0.0, %v1534
        %v1536 = vpop.f32.mrb[0].mxu0
        %v1537 = vadd.f32 0.0, %v1536
        %1538 = vmatprep.mubr.bf16.mxu0 0
        %1539 = vmatmul.mubr.bf16.gmra.mrb[0].mxu0 %v1042
        %v1540 = vpop.f32.mrb[0].mxu0
        %v1541 = vadd.f32 0.0, %v1540
        %v1542 = vpop.f32.mrb[0].mxu0
        %v1543 = vadd.f32 0.0, %v1542
        %v1544 = vpop.f32.mrb[0].mxu0
        %v1545 = vadd.f32 0.0, %v1544
        %v1546 = vpop.f32.mrb[0].mxu0
        %v1547 = vadd.f32 0.0, %v1546
        %1548 = vmatprep.mubr.bf16.mxu0 0
        %1549 = vmatmul.mubr.bf16.gmra.mrb[0].mxu0 %v1043
        %v1550 = vpop.f32.mrb[0].mxu0
        %v1551 = vadd.f32 0.0, %v1550
        %v1552 = vpop.f32.mrb[0].mxu0
        %v1553 = vadd.f32 0.0, %v1552
        %v1554 = vpop.f32.mrb[0].mxu0
        %v1555 = vadd.f32 0.0, %v1554
        %v1556 = vpop.f32.mrb[0].mxu0
        %v1557 = vadd.f32 0.0, %v1556
        %1558 = vmatprep.mubr.bf16.mxu0 0
        %1559 = vmatmul.mubr.bf16.gmra.mrb[0].mxu0 %v1044
        %v1560 = vpop.f32.mrb[0].mxu0
        %v1561 = vadd.f32 0.0, %v1560
        %v1562 = vpop.f32.mrb[0].mxu0
        %v1563 = vadd.f32 0.0, %v1562
        %v1564 = vpop.f32.mrb[0].mxu0
        %v1565 = vadd.f32 0.0, %v1564
        %v1566 = vpop.f32.mrb[0].mxu0
        %v1567 = vadd.f32 0.0, %v1566
        %1568 = vmatprep.mubr.bf16.mxu0 0
        %1569 = vmatmul.mubr.bf16.gmra.mrb[0].mxu0 %v1045
        %v1570 = vpop.f32.mrb[0].mxu0
        %v1571 = vadd.f32 0.0, %v1570
        %v1572 = vpop.f32.mrb[0].mxu0
        %v1573 = vadd.f32 0.0, %v1572
        %v1574 = vpop.f32.mrb[0].mxu0
        %v1575 = vadd.f32 0.0, %v1574
        %v1576 = vpop.f32.mrb[0].mxu0
        %v1577 = vadd.f32 0.0, %v1576
        %1578 = vmatprep.mubr.bf16.mxu0 0
        %1579 = vmatmul.mubr.bf16.gmra.mrb[0].mxu0 %v1046
        %v1580 = vpop.f32.mrb[0].mxu0
        %v1581 = vadd.f32 0.0, %v1580
        %v1582 = vpop.f32.mrb[0].mxu0
        %v1583 = vadd.f32 0.0, %v1582
        %v1584 = vpop.f32.mrb[0].mxu0
        %v1585 = vadd.f32 0.0, %v1584
        %v1586 = vpop.f32.mrb[0].mxu0
        %v1587 = vadd.f32 0.0, %v1586
        %1588 = vmatprep.mubr.bf16.mxu0 0
        %1589 = vmatmul.mubr.bf16.gmra.mrb[0].mxu0 %v1047
        %v1590 = vpop.f32.mrb[0].mxu0
        %v1591 = vadd.f32 0.0, %v1590
        %v1592 = vpop.f32.mrb[0].mxu0
        %v1593 = vadd.f32 0.0, %v1592
        %v1594 = vpop.f32.mrb[0].mxu0
        %v1595 = vadd.f32 0.0, %v1594
        %v1596 = vpop.f32.mrb[0].mxu0
        %v1597 = vadd.f32 0.0, %v1596
        %1598 = vmatprep.mubr.bf16.mxu0 0
        %1599 = vmatmul.mubr.bf16.gmra.mrb[0].mxu0 %v1048
        %v1600 = vpop.f32.mrb[0].mxu0
        %v1601 = vadd.f32 0.0, %v1600
        %v1602 = vpop.f32.mrb[0].mxu0
        %v1603 = vadd.f32 0.0, %v1602
        %v1604 = vpop.f32.mrb[0].mxu0
        %v1605 = vadd.f32 0.0, %v1604
        %v1606 = vpop.f32.mrb[0].mxu0
        %v1607 = vadd.f32 0.0, %v1606
        %1608 = vmatprep.mubr.bf16.mxu0 0
        %1609 = vmatmul.mubr.bf16.gmra.mrb[0].mxu0 %v1049
        %v1610 = vpop.f32.mrb[0].mxu0
        %v1611 = vadd.f32 0.0, %v1610
        %v1612 = vpop.f32.mrb[0].mxu0
        %v1613 = vadd.f32 0.0, %v1612
        %v1614 = vpop.f32.mrb[0].mxu0
        %v1615 = vadd.f32 0.0, %v1614
        %v1616 = vpop.f32.mrb[0].mxu0
        %v1617 = vadd.f32 0.0, %v1616
        %1618 = vmatprep.mubr.bf16.mxu0 0
        %1619 = vmatmul.mubr.bf16.gmra.mrb[0].mxu0 %v1050
        %v1620 = vpop.f32.mrb[0].mxu0
        %v1621 = vadd.f32 0.0, %v1620
        %v1622 = vpop.f32.mrb[0].mxu0
        %v1623 = vadd.f32 0.0, %v1622
        %v1624 = vpop.f32.mrb[0].mxu0
        %v1625 = vadd.f32 0.0, %v1624
        %v1626 = vpop.f32.mrb[0].mxu0
        %v1627 = vadd.f32 0.0, %v1626
        %1628 = vdwg.mxu0
        %v1629 = vld [vmem:[#allocation3] sm:$0xff]
        %v1630 = vld [vmem:[#allocation3 + $0x8] sm:$0xff]
        %v1631 = vld [vmem:[#allocation3 + $0x10] sm:$0xff]
        %v1632 = vld [vmem:[#allocation3 + $0x18] sm:$0xff]
        %v1633 = vld [vmem:[#allocation3 + $0x20] sm:$0xff]
        %v1634 = vld [vmem:[#allocation3 + $0x28] sm:$0xff]
        %v1635 = vld [vmem:[#allocation3 + $0x30] sm:$0xff]
        %v1636 = vld [vmem:[#allocation3 + $0x38] sm:$0xff]
        %v1637 = vld [vmem:[#allocation3 + $0x40] sm:$0xff]
        %v1638 = vld [vmem:[#allocation3 + $0x48] sm:$0xff]
        %v1639 = vld [vmem:[#allocation3 + $0x50] sm:$0xff]
        %v1640 = vld [vmem:[#allocation3 + $0x58] sm:$0xff]
        %v1641 = vld [vmem:[#allocation3 + $0x60] sm:$0xff]
        %v1642 = vld [vmem:[#allocation3 + $0x68] sm:$0xff]
        %v1643 = vld [vmem:[#allocation3 + $0x70] sm:$0xff]
        %v1644 = vld [vmem:[#allocation3 + $0x78] sm:$0xff]
        %v1645 = vld [vmem:[#allocation3 + $0x80] sm:$0xff]
        %v1646 = vld [vmem:[#allocation3 + $0x88] sm:$0xff]
        %v1647 = vld [vmem:[#allocation3 + $0x90] sm:$0xff]
        %v1648 = vld [vmem:[#allocation3 + $0x98] sm:$0xff]
        %v1649 = vld [vmem:[#allocation3 + $0xa0] sm:$0xff]
        %v1650 = vld [vmem:[#allocation3 + $0xa8] sm:$0xff]
        %v1651 = vld [vmem:[#allocation3 + $0xb0] sm:$0xff]
        %v1652 = vld [vmem:[#allocation3 + $0xb8] sm:$0xff]
        %v1653 = vld [vmem:[#allocation3 + $0xc0] sm:$0xff]
        %v1654 = vld [vmem:[#allocation3 + $0xc8] sm:$0xff]
        %v1655 = vld [vmem:[#allocation3 + $0xd0] sm:$0xff]
        %v1656 = vld [vmem:[#allocation3 + $0xd8] sm:$0xff]
        %v1657 = vld [vmem:[#allocation3 + $0xe0] sm:$0xff]
        %v1658 = vld [vmem:[#allocation3 + $0xe8] sm:$0xff]
        %v1659 = vld [vmem:[#allocation3 + $0xf0] sm:$0xff]
        %v1660 = vld [vmem:[#allocation3 + $0xf8] sm:$0xff]
        %v1661 = vmax.f32 %v1278, %v1280
        %v1662 = vmax.f32 %v1661, %v1471
        %v1663 = vmax.f32 %v1662, %v1473
        %1664 = vmax.xlane.f32.xlu0 %v1663
        %v1665 = vpop.xlane.xlu0 %1664
        %v1666 = vmax.f32 %v1282, %v1284
        %v1667 = vmax.f32 %v1666, %v1475
        %v1668 = vmax.f32 %v1667, %v1477
        %1669 = vmax.xlane.f32.xlu0 %v1668
        %v1670 = vpop.xlane.xlu0 %1669
        %v1671 = vmax.f32 %v1288, %v1290
        %v1672 = vmax.f32 %v1671, %v1481
        %v1673 = vmax.f32 %v1672, %v1483
        %1674 = vmax.xlane.f32.xlu0 %v1673
        %v1675 = vpop.xlane.xlu0 %1674
        %v1676 = vmax.f32 %v1292, %v1294
        %v1677 = vmax.f32 %v1676, %v1485
        %v1678 = vmax.f32 %v1677, %v1487
        %1679 = vmax.xlane.f32.xlu0 %v1678
        %v1680 = vpop.xlane.xlu0 %1679
        %v1681 = vmax.f32 %v1298, %v1300
        %v1682 = vmax.f32 %v1681, %v1491
        %v1683 = vmax.f32 %v1682, %v1493
        %1684 = vmax.xlane.f32.xlu0 %v1683
        %v1685 = vpop.xlane.xlu0 %1684
        %v1686 = vmax.f32 %v1302, %v1304
        %v1687 = vmax.f32 %v1686, %v1495
        %v1688 = vmax.f32 %v1687, %v1497
        %1689 = vmax.xlane.f32.xlu0 %v1688
        %v1690 = vpop.xlane.xlu0 %1689
        %v1691 = vmax.f32 %v1308, %v1310
        %v1692 = vmax.f32 %v1691, %v1501
        %v1693 = vmax.f32 %v1692, %v1503
        %1694 = vmax.xlane.f32.xlu0 %v1693
        %v1695 = vpop.xlane.xlu0 %1694
        %v1696 = vmax.f32 %v1312, %v1314
        %v1697 = vmax.f32 %v1696, %v1505
        %v1698 = vmax.f32 %v1697, %v1507
        %1699 = vmax.xlane.f32.xlu0 %v1698
        %v1700 = vpop.xlane.xlu0 %1699
        %v1701 = vmax.f32 %v1318, %v1320
        %v1702 = vmax.f32 %v1701, %v1511
        %v1703 = vmax.f32 %v1702, %v1513
        %1704 = vmax.xlane.f32.xlu0 %v1703
        %v1705 = vpop.xlane.xlu0 %1704
        %v1706 = vmax.f32 %v1322, %v1324
        %v1707 = vmax.f32 %v1706, %v1515
        %v1708 = vmax.f32 %v1707, %v1517
        %1709 = vmax.xlane.f32.xlu0 %v1708
        %v1710 = vpop.xlane.xlu0 %1709
        %v1711 = vmax.f32 %v1328, %v1330
        %v1712 = vmax.f32 %v1711, %v1521
        %v1713 = vmax.f32 %v1712, %v1523
        %1714 = vmax.xlane.f32.xlu0 %v1713
        %v1715 = vpop.xlane.xlu0 %1714
        %v1716 = vmax.f32 %v1332, %v1334
        %v1717 = vmax.f32 %v1716, %v1525
        %v1718 = vmax.f32 %v1717, %v1527
        %1719 = vmax.xlane.f32.xlu0 %v1718
        %v1720 = vpop.xlane.xlu0 %1719
        %v1721 = vmax.f32 %v1338, %v1340
        %v1722 = vmax.f32 %v1721, %v1531
        %v1723 = vmax.f32 %v1722, %v1533
        %1724 = vmax.xlane.f32.xlu0 %v1723
        %v1725 = vpop.xlane.xlu0 %1724
        %v1726 = vmax.f32 %v1342, %v1344
        %v1727 = vmax.f32 %v1726, %v1535
        %v1728 = vmax.f32 %v1727, %v1537
        %1729 = vmax.xlane.f32.xlu0 %v1728
        %v1730 = vpop.xlane.xlu0 %1729
        %v1731 = vmax.f32 %v1348, %v1350
        %v1732 = vmax.f32 %v1731, %v1541
        %v1733 = vmax.f32 %v1732, %v1543
        %1734 = vmax.xlane.f32.xlu0 %v1733
        %v1735 = vpop.xlane.xlu0 %1734
        %v1736 = vmax.f32 %v1352, %v1354
        %v1737 = vmax.f32 %v1736, %v1545
        %v1738 = vmax.f32 %v1737, %v1547
        %1739 = vmax.xlane.f32.xlu0 %v1738
        %v1740 = vpop.xlane.xlu0 %1739
        %v1741 = vmax.f32 %v1358, %v1360
        %v1742 = vmax.f32 %v1741, %v1551
        %v1743 = vmax.f32 %v1742, %v1553
        %1744 = vmax.xlane.f32.xlu0 %v1743
        %v1745 = vpop.xlane.xlu0 %1744
        %v1746 = vmax.f32 %v1362, %v1364
        %v1747 = vmax.f32 %v1746, %v1555
        %v1748 = vmax.f32 %v1747, %v1557
        %1749 = vmax.xlane.f32.xlu0 %v1748
        %v1750 = vpop.xlane.xlu0 %1749
        %v1751 = vmax.f32 %v1368, %v1370
        %v1752 = vmax.f32 %v1751, %v1561
        %v1753 = vmax.f32 %v1752, %v1563
        %1754 = vmax.xlane.f32.xlu0 %v1753
        %v1755 = vpop.xlane.xlu0 %1754
        %v1756 = vmax.f32 %v1372, %v1374
        %v1757 = vmax.f32 %v1756, %v1565
        %v1758 = vmax.f32 %v1757, %v1567
        %1759 = vmax.xlane.f32.xlu0 %v1758
        %v1760 = vpop.xlane.xlu0 %1759
        %v1761 = vmax.f32 %v1378, %v1380
        %v1762 = vmax.f32 %v1761, %v1571
        %v1763 = vmax.f32 %v1762, %v1573
        %1764 = vmax.xlane.f32.xlu0 %v1763
        %v1765 = vpop.xlane.xlu0 %1764
        %v1766 = vmax.f32 %v1382, %v1384
        %v1767 = vmax.f32 %v1766, %v1575
        %v1768 = vmax.f32 %v1767, %v1577
        %1769 = vmax.xlane.f32.xlu0 %v1768
        %v1770 = vpop.xlane.xlu0 %1769
        %v1771 = vmax.f32 %v1388, %v1390
        %v1772 = vmax.f32 %v1771, %v1581
        %v1773 = vmax.f32 %v1772, %v1583
        %1774 = vmax.xlane.f32.xlu0 %v1773
        %v1775 = vpop.xlane.xlu0 %1774
        %v1776 = vmax.f32 %v1392, %v1394
        %v1777 = vmax.f32 %v1776, %v1585
        %v1778 = vmax.f32 %v1777, %v1587
        %1779 = vmax.xlane.f32.xlu0 %v1778
        %v1780 = vpop.xlane.xlu0 %1779
        %v1781 = vmax.f32 %v1398, %v1400
        %v1782 = vmax.f32 %v1781, %v1591
        %v1783 = vmax.f32 %v1782, %v1593
        %1784 = vmax.xlane.f32.xlu0 %v1783
        %v1785 = vpop.xlane.xlu0 %1784
        %v1786 = vmax.f32 %v1402, %v1404
        %v1787 = vmax.f32 %v1786, %v1595
        %v1788 = vmax.f32 %v1787, %v1597
        %1789 = vmax.xlane.f32.xlu0 %v1788
        %v1790 = vpop.xlane.xlu0 %1789
        %v1791 = vmax.f32 %v1408, %v1410
        %v1792 = vmax.f32 %v1791, %v1601
        %v1793 = vmax.f32 %v1792, %v1603
        %1794 = vmax.xlane.f32.xlu0 %v1793
        %v1795 = vpop.xlane.xlu0 %1794
        %v1796 = vmax.f32 %v1412, %v1414
        %v1797 = vmax.f32 %v1796, %v1605
        %v1798 = vmax.f32 %v1797, %v1607
        %1799 = vmax.xlane.f32.xlu0 %v1798
        %v1800 = vpop.xlane.xlu0 %1799
        %v1801 = vmax.f32 %v1418, %v1420
        %v1802 = vmax.f32 %v1801, %v1611
        %v1803 = vmax.f32 %v1802, %v1613
        %1804 = vmax.xlane.f32.xlu0 %v1803
        %v1805 = vpop.xlane.xlu0 %1804
        %v1806 = vmax.f32 %v1422, %v1424
        %v1807 = vmax.f32 %v1806, %v1615
        %v1808 = vmax.f32 %v1807, %v1617
        %1809 = vmax.xlane.f32.xlu0 %v1808
        %v1810 = vpop.xlane.xlu0 %1809
        %v1811 = vmax.f32 %v1428, %v1430
        %v1812 = vmax.f32 %v1811, %v1621
        %v1813 = vmax.f32 %v1812, %v1623
        %1814 = vmax.xlane.f32.xlu0 %v1813
        %v1815 = vpop.xlane.xlu0 %1814
        %v1816 = vmax.f32 %v1432, %v1434
        %v1817 = vmax.f32 %v1816, %v1625
        %v1818 = vmax.f32 %v1817, %v1627
        %1819 = vmax.xlane.f32.xlu0 %v1818
        %v1820 = vpop.xlane.xlu0 %1819
        %v1821 = vmax.f32 %v1629, %v1665
        %v1822 = vmax.f32 %v1630, %v1670
        %v1823 = vmax.f32 %v1631, %v1675
        %v1824 = vmax.f32 %v1632, %v1680
        %v1825 = vmax.f32 %v1633, %v1685
        %v1826 = vmax.f32 %v1634, %v1690
        %v1827 = vmax.f32 %v1635, %v1695
        %v1828 = vmax.f32 %v1636, %v1700
        %v1829 = vmax.f32 %v1637, %v1705
        %v1830 = vmax.f32 %v1638, %v1710
        %v1831 = vmax.f32 %v1639, %v1715
        %v1832 = vmax.f32 %v1640, %v1720
        %v1833 = vmax.f32 %v1641, %v1725
        %v1834 = vmax.f32 %v1642, %v1730
        %v1835 = vmax.f32 %v1643, %v1735
        %v1836 = vmax.f32 %v1644, %v1740
        %v1837 = vmax.f32 %v1645, %v1745
        %v1838 = vmax.f32 %v1646, %v1750
        %v1839 = vmax.f32 %v1647, %v1755
        %v1840 = vmax.f32 %v1648, %v1760
        %v1841 = vmax.f32 %v1649, %v1765
        %v1842 = vmax.f32 %v1650, %v1770
        %v1843 = vmax.f32 %v1651, %v1775
        %v1844 = vmax.f32 %v1652, %v1780
        %v1845 = vmax.f32 %v1653, %v1785
        %v1846 = vmax.f32 %v1654, %v1790
        %v1847 = vmax.f32 %v1655, %v1795
        %v1848 = vmax.f32 %v1656, %v1800
        %v1849 = vmax.f32 %v1657, %v1805
        %v1850 = vmax.f32 %v1658, %v1810
        %v1851 = vmax.f32 %v1659, %v1815
        %v1852 = vmax.f32 %v1660, %v1820
        %v1853 = vsub.f32 %v1629, %v1821
        %v1854 = vsub.f32 %v1630, %v1822
        %v1855 = vsub.f32 %v1631, %v1823
        %v1856 = vsub.f32 %v1632, %v1824
        %v1857 = vsub.f32 %v1633, %v1825
        %v1858 = vsub.f32 %v1634, %v1826
        %v1859 = vsub.f32 %v1635, %v1827
        %v1860 = vsub.f32 %v1636, %v1828
        %v1861 = vsub.f32 %v1637, %v1829
        %v1862 = vsub.f32 %v1638, %v1830
        %v1863 = vsub.f32 %v1639, %v1831
        %v1864 = vsub.f32 %v1640, %v1832
        %v1865 = vsub.f32 %v1641, %v1833
        %v1866 = vsub.f32 %v1642, %v1834
        %v1867 = vsub.f32 %v1643, %v1835
        %v1868 = vsub.f32 %v1644, %v1836
        %v1869 = vsub.f32 %v1645, %v1837
        %v1870 = vsub.f32 %v1646, %v1838
        %v1871 = vsub.f32 %v1647, %v1839
        %v1872 = vsub.f32 %v1648, %v1840
        %v1873 = vsub.f32 %v1649, %v1841
        %v1874 = vsub.f32 %v1650, %v1842
        %v1875 = vsub.f32 %v1651, %v1843
        %v1876 = vsub.f32 %v1652, %v1844
        %v1877 = vsub.f32 %v1653, %v1845
        %v1878 = vsub.f32 %v1654, %v1846
        %v1879 = vsub.f32 %v1655, %v1847
        %v1880 = vsub.f32 %v1656, %v1848
        %v1881 = vsub.f32 %v1657, %v1849
        %v1882 = vsub.f32 %v1658, %v1850
        %v1883 = vsub.f32 %v1659, %v1851
        %v1884 = vsub.f32 %v1660, %v1852
        %v1885 = vmul.f32 %v1853, 1.442695
        %v1886 = vpow.pop %v1885
        %v1887 = vmul.f32 %v1854, 1.442695
        %v1888 = vpow.pop %v1887
        %v1889 = vmul.f32 %v1855, 1.442695
        %v1890 = vpow.pop %v1889
        %v1891 = vmul.f32 %v1856, 1.442695
        %v1892 = vpow.pop %v1891
        %v1893 = vmul.f32 %v1857, 1.442695
        %v1894 = vpow.pop %v1893
        %v1895 = vmul.f32 %v1858, 1.442695
        %v1896 = vpow.pop %v1895
        %v1897 = vmul.f32 %v1859, 1.442695
        %v1898 = vpow.pop %v1897
        %v1899 = vmul.f32 %v1860, 1.442695
        %v1900 = vpow.pop %v1899
        %v1901 = vmul.f32 %v1861, 1.442695
        %v1902 = vpow.pop %v1901
        %v1903 = vmul.f32 %v1862, 1.442695
        %v1904 = vpow.pop %v1903
        %v1905 = vmul.f32 %v1863, 1.442695
        %v1906 = vpow.pop %v1905
        %v1907 = vmul.f32 %v1864, 1.442695
        %v1908 = vpow.pop %v1907
        %v1909 = vmul.f32 %v1865, 1.442695
        %v1910 = vpow.pop %v1909
        %v1911 = vmul.f32 %v1866, 1.442695
        %v1912 = vpow.pop %v1911
        %v1913 = vmul.f32 %v1867, 1.442695
        %v1914 = vpow.pop %v1913
        %v1915 = vmul.f32 %v1868, 1.442695
        %v1916 = vpow.pop %v1915
        %v1917 = vmul.f32 %v1869, 1.442695
        %v1918 = vpow.pop %v1917
        %v1919 = vmul.f32 %v1870, 1.442695
        %v1920 = vpow.pop %v1919
        %v1921 = vmul.f32 %v1871, 1.442695
        %v1922 = vpow.pop %v1921
        %v1923 = vmul.f32 %v1872, 1.442695
        %v1924 = vpow.pop %v1923
        %v1925 = vmul.f32 %v1873, 1.442695
        %v1926 = vpow.pop %v1925
        %v1927 = vmul.f32 %v1874, 1.442695
        %v1928 = vpow.pop %v1927
        %v1929 = vmul.f32 %v1875, 1.442695
        %v1930 = vpow.pop %v1929
        %v1931 = vmul.f32 %v1876, 1.442695
        %v1932 = vpow.pop %v1931
        %v1933 = vmul.f32 %v1877, 1.442695
        %v1934 = vpow.pop %v1933
        %v1935 = vmul.f32 %v1878, 1.442695
        %v1936 = vpow.pop %v1935
        %v1937 = vmul.f32 %v1879, 1.442695
        %v1938 = vpow.pop %v1937
        %v1939 = vmul.f32 %v1880, 1.442695
        %v1940 = vpow.pop %v1939
        %v1941 = vmul.f32 %v1881, 1.442695
        %v1942 = vpow.pop %v1941
        %v1943 = vmul.f32 %v1882, 1.442695
        %v1944 = vpow.pop %v1943
        %v1945 = vmul.f32 %v1883, 1.442695
        %v1946 = vpow.pop %v1945
        %v1947 = vmul.f32 %v1884, 1.442695
        %v1948 = vpow.pop %v1947
        %1950 = vset.pattern.permute.xlu0 0
        %1951 = vperm.xlu0 %1950, %v1821
        %v1952 = vpop.permute.xlu0 %1951
        %1955 = vset.pattern.permute.xlu0 0
        %1956 = vperm.xlu0 %1955, %v1822
        %v1957 = vpop.permute.xlu0 %1956
        %1960 = vset.pattern.permute.xlu0 0
        %1961 = vperm.xlu0 %1960, %v1823
        %v1962 = vpop.permute.xlu0 %1961
        %1965 = vset.pattern.permute.xlu0 0
        %1966 = vperm.xlu0 %1965, %v1824
        %v1967 = vpop.permute.xlu0 %1966
        %1970 = vset.pattern.permute.xlu0 0
        %1971 = vperm.xlu0 %1970, %v1825
        %v1972 = vpop.permute.xlu0 %1971
        %1975 = vset.pattern.permute.xlu0 0
        %1976 = vperm.xlu0 %1975, %v1826
        %v1977 = vpop.permute.xlu0 %1976
        %1980 = vset.pattern.permute.xlu0 0
        %1981 = vperm.xlu0 %1980, %v1827
        %v1982 = vpop.permute.xlu0 %1981
        %1985 = vset.pattern.permute.xlu0 0
        %1986 = vperm.xlu0 %1985, %v1828
        %v1987 = vpop.permute.xlu0 %1986
        %1990 = vset.pattern.permute.xlu0 0
        %1991 = vperm.xlu0 %1990, %v1829
        %v1992 = vpop.permute.xlu0 %1991
        %1995 = vset.pattern.permute.xlu0 0
        %1996 = vperm.xlu0 %1995, %v1830
        %v1997 = vpop.permute.xlu0 %1996
        %2000 = vset.pattern.permute.xlu0 0
        %2001 = vperm.xlu0 %2000, %v1831
        %v2002 = vpop.permute.xlu0 %2001
        %2005 = vset.pattern.permute.xlu0 0
        %2006 = vperm.xlu0 %2005, %v1832
        %v2007 = vpop.permute.xlu0 %2006
        %2010 = vset.pattern.permute.xlu0 0
        %2011 = vperm.xlu0 %2010, %v1833
        %v2012 = vpop.permute.xlu0 %2011
        %2015 = vset.pattern.permute.xlu0 0
        %2016 = vperm.xlu0 %2015, %v1834
        %v2017 = vpop.permute.xlu0 %2016
        %2020 = vset.pattern.permute.xlu0 0
        %2021 = vperm.xlu0 %2020, %v1835
        %v2022 = vpop.permute.xlu0 %2021
        %2025 = vset.pattern.permute.xlu0 0
        %2026 = vperm.xlu0 %2025, %v1836
        %v2027 = vpop.permute.xlu0 %2026
        %2030 = vset.pattern.permute.xlu0 0
        %2031 = vperm.xlu0 %2030, %v1837
        %v2032 = vpop.permute.xlu0 %2031
        %2035 = vset.pattern.permute.xlu0 0
        %2036 = vperm.xlu0 %2035, %v1838
        %v2037 = vpop.permute.xlu0 %2036
        %2040 = vset.pattern.permute.xlu0 0
        %2041 = vperm.xlu0 %2040, %v1839
        %v2042 = vpop.permute.xlu0 %2041
        %2045 = vset.pattern.permute.xlu0 0
        %2046 = vperm.xlu0 %2045, %v1840
        %v2047 = vpop.permute.xlu0 %2046
        %2050 = vset.pattern.permute.xlu0 0
        %2051 = vperm.xlu0 %2050, %v1841
        %v2052 = vpop.permute.xlu0 %2051
        %2055 = vset.pattern.permute.xlu0 0
        %2056 = vperm.xlu0 %2055, %v1842
        %v2057 = vpop.permute.xlu0 %2056
        %2060 = vset.pattern.permute.xlu0 0
        %2061 = vperm.xlu0 %2060, %v1843
        %v2062 = vpop.permute.xlu0 %2061
        %2065 = vset.pattern.permute.xlu0 0
        %2066 = vperm.xlu0 %2065, %v1844
        %v2067 = vpop.permute.xlu0 %2066
        %2070 = vset.pattern.permute.xlu0 0
        %2071 = vperm.xlu0 %2070, %v1845
        %v2072 = vpop.permute.xlu0 %2071
        %2075 = vset.pattern.permute.xlu0 0
        %2076 = vperm.xlu0 %2075, %v1846
        %v2077 = vpop.permute.xlu0 %2076
        %2080 = vset.pattern.permute.xlu0 0
        %2081 = vperm.xlu0 %2080, %v1847
        %v2082 = vpop.permute.xlu0 %2081
        %2085 = vset.pattern.permute.xlu0 0
        %2086 = vperm.xlu0 %2085, %v1848
        %v2087 = vpop.permute.xlu0 %2086
        %2090 = vset.pattern.permute.xlu0 0
        %2091 = vperm.xlu0 %2090, %v1849
        %v2092 = vpop.permute.xlu0 %2091
        %2095 = vset.pattern.permute.xlu0 0
        %2096 = vperm.xlu0 %2095, %v1850
        %v2097 = vpop.permute.xlu0 %2096
        %2100 = vset.pattern.permute.xlu0 0
        %2101 = vperm.xlu0 %2100, %v1851
        %v2102 = vpop.permute.xlu0 %2101
        %2105 = vset.pattern.permute.xlu0 0
        %2106 = vperm.xlu0 %2105, %v1852
        %v2107 = vpop.permute.xlu0 %2106
        %v2109 = vsub.f32 %v1278, %v1952
        %v2110 = vsub.f32 %v1280, %v1952
        %v2111 = vsub.f32 %v1471, %v1952
        %v2112 = vsub.f32 %v1473, %v1952
        %v2113 = vsub.f32 %v1282, %v1957
        %v2114 = vsub.f32 %v1284, %v1957
        %v2115 = vsub.f32 %v1475, %v1957
        %v2116 = vsub.f32 %v1477, %v1957
        %v2117 = vsub.f32 %v1288, %v1962
        %v2118 = vsub.f32 %v1290, %v1962
        %v2119 = vsub.f32 %v1481, %v1962
        %v2120 = vsub.f32 %v1483, %v1962
        %v2121 = vsub.f32 %v1292, %v1967
        %v2122 = vsub.f32 %v1294, %v1967
        %v2123 = vsub.f32 %v1485, %v1967
        %v2124 = vsub.f32 %v1487, %v1967
        %v2125 = vsub.f32 %v1298, %v1972
        %v2126 = vsub.f32 %v1300, %v1972
        %v2127 = vsub.f32 %v1491, %v1972
        %v2128 = vsub.f32 %v1493, %v1972
        %v2129 = vsub.f32 %v1302, %v1977
        %v2130 = vsub.f32 %v1304, %v1977
        %v2131 = vsub.f32 %v1495, %v1977
        %v2132 = vsub.f32 %v1497, %v1977
        %v2133 = vsub.f32 %v1308, %v1982
        %v2134 = vsub.f32 %v1310, %v1982
        %v2135 = vsub.f32 %v1501, %v1982
        %v2136 = vsub.f32 %v1503, %v1982
        %v2137 = vsub.f32 %v1312, %v1987
        %v2138 = vsub.f32 %v1314, %v1987
        %v2139 = vsub.f32 %v1505, %v1987
        %v2140 = vsub.f32 %v1507, %v1987
        %v2141 = vsub.f32 %v1318, %v1992
        %v2142 = vsub.f32 %v1320, %v1992
        %v2143 = vsub.f32 %v1511, %v1992
        %v2144 = vsub.f32 %v1513, %v1992
        %v2145 = vsub.f32 %v1322, %v1997
        %v2146 = vsub.f32 %v1324, %v1997
        %v2147 = vsub.f32 %v1515, %v1997
        %v2148 = vsub.f32 %v1517, %v1997
        %v2149 = vsub.f32 %v1328, %v2002
        %v2150 = vsub.f32 %v1330, %v2002
        %v2151 = vsub.f32 %v1521, %v2002
        %v2152 = vsub.f32 %v1523, %v2002
        %v2153 = vsub.f32 %v1332, %v2007
        %v2154 = vsub.f32 %v1334, %v2007
        %v2155 = vsub.f32 %v1525, %v2007
        %v2156 = vsub.f32 %v1527, %v2007
        %v2157 = vsub.f32 %v1338, %v2012
        %v2158 = vsub.f32 %v1340, %v2012
        %v2159 = vsub.f32 %v1531, %v2012
        %v2160 = vsub.f32 %v1533, %v2012
        %v2161 = vsub.f32 %v1342, %v2017
        %v2162 = vsub.f32 %v1344, %v2017
        %v2163 = vsub.f32 %v1535, %v2017
        %v2164 = vsub.f32 %v1537, %v2017
        %v2165 = vsub.f32 %v1348, %v2022
        %v2166 = vsub.f32 %v1350, %v2022
        %v2167 = vsub.f32 %v1541, %v2022
        %v2168 = vsub.f32 %v1543, %v2022
        %v2169 = vsub.f32 %v1352, %v2027
        %v2170 = vsub.f32 %v1354, %v2027
        %v2171 = vsub.f32 %v1545, %v2027
        %v2172 = vsub.f32 %v1547, %v2027
        %v2173 = vsub.f32 %v1358, %v2032
        %v2174 = vsub.f32 %v1360, %v2032
        %v2175 = vsub.f32 %v1551, %v2032
        %v2176 = vsub.f32 %v1553, %v2032
        %v2177 = vsub.f32 %v1362, %v2037
        %v2178 = vsub.f32 %v1364, %v2037
        %v2179 = vsub.f32 %v1555, %v2037
        %v2180 = vsub.f32 %v1557, %v2037
        %v2181 = vsub.f32 %v1368, %v2042
        %v2182 = vsub.f32 %v1370, %v2042
        %v2183 = vsub.f32 %v1561, %v2042
        %v2184 = vsub.f32 %v1563, %v2042
        %v2185 = vsub.f32 %v1372, %v2047
        %v2186 = vsub.f32 %v1374, %v2047
        %v2187 = vsub.f32 %v1565, %v2047
        %v2188 = vsub.f32 %v1567, %v2047
        %v2189 = vsub.f32 %v1378, %v2052
        %v2190 = vsub.f32 %v1380, %v2052
        %v2191 = vsub.f32 %v1571, %v2052
        %v2192 = vsub.f32 %v1573, %v2052
        %v2193 = vsub.f32 %v1382, %v2057
        %v2194 = vsub.f32 %v1384, %v2057
        %v2195 = vsub.f32 %v1575, %v2057
        %v2196 = vsub.f32 %v1577, %v2057
        %v2197 = vsub.f32 %v1388, %v2062
        %v2198 = vsub.f32 %v1390, %v2062
        %v2199 = vsub.f32 %v1581, %v2062
        %v2200 = vsub.f32 %v1583, %v2062
        %v2201 = vsub.f32 %v1392, %v2067
        %v2202 = vsub.f32 %v1394, %v2067
        %v2203 = vsub.f32 %v1585, %v2067
        %v2204 = vsub.f32 %v1587, %v2067
        %v2205 = vsub.f32 %v1398, %v2072
        %v2206 = vsub.f32 %v1400, %v2072
        %v2207 = vsub.f32 %v1591, %v2072
        %v2208 = vsub.f32 %v1593, %v2072
        %v2209 = vsub.f32 %v1402, %v2077
        %v2210 = vsub.f32 %v1404, %v2077
        %v2211 = vsub.f32 %v1595, %v2077
        %v2212 = vsub.f32 %v1597, %v2077
        %v2213 = vsub.f32 %v1408, %v2082
        %v2214 = vsub.f32 %v1410, %v2082
        %v2215 = vsub.f32 %v1601, %v2082
        %v2216 = vsub.f32 %v1603, %v2082
        %v2217 = vsub.f32 %v1412, %v2087
        %v2218 = vsub.f32 %v1414, %v2087
        %v2219 = vsub.f32 %v1605, %v2087
        %v2220 = vsub.f32 %v1607, %v2087
        %v2221 = vsub.f32 %v1418, %v2092
        %v2222 = vsub.f32 %v1420, %v2092
        %v2223 = vsub.f32 %v1611, %v2092
        %v2224 = vsub.f32 %v1613, %v2092
        %v2225 = vsub.f32 %v1422, %v2097
        %v2226 = vsub.f32 %v1424, %v2097
        %v2227 = vsub.f32 %v1615, %v2097
        %v2228 = vsub.f32 %v1617, %v2097
        %v2229 = vsub.f32 %v1428, %v2102
        %v2230 = vsub.f32 %v1430, %v2102
        %v2231 = vsub.f32 %v1621, %v2102
        %v2232 = vsub.f32 %v1623, %v2102
        %v2233 = vsub.f32 %v1432, %v2107
        %v2234 = vsub.f32 %v1434, %v2107
        %v2235 = vsub.f32 %v1625, %v2107
        %v2236 = vsub.f32 %v1627, %v2107
        %v2237 = vmul.f32 %v2109, 1.442695
        %v2238 = vpow.pop %v2237
        %v2239 = vmul.f32 %v2110, 1.442695
        %v2240 = vpow.pop %v2239
        %v2241 = vmul.f32 %v2111, 1.442695
        %v2242 = vpow.pop %v2241
        %v2243 = vmul.f32 %v2112, 1.442695
        %v2244 = vpow.pop %v2243
        %v2245 = vmul.f32 %v2113, 1.442695
        %v2246 = vpow.pop %v2245
        %v2247 = vmul.f32 %v2114, 1.442695
        %v2248 = vpow.pop %v2247
        %v2249 = vmul.f32 %v2115, 1.442695
        %v2250 = vpow.pop %v2249
        %v2251 = vmul.f32 %v2116, 1.442695
        %v2252 = vpow.pop %v2251
        %v2253 = vmul.f32 %v2117, 1.442695
        %v2254 = vpow.pop %v2253
        %v2255 = vmul.f32 %v2118, 1.442695
        %v2256 = vpow.pop %v2255
        %v2257 = vmul.f32 %v2119, 1.442695
        %v2258 = vpow.pop %v2257
        %v2259 = vmul.f32 %v2120, 1.442695
        %v2260 = vpow.pop %v2259
        %v2261 = vmul.f32 %v2121, 1.442695
        %v2262 = vpow.pop %v2261
        %v2263 = vmul.f32 %v2122, 1.442695
        %v2264 = vpow.pop %v2263
        %v2265 = vmul.f32 %v2123, 1.442695
        %v2266 = vpow.pop %v2265
        %v2267 = vmul.f32 %v2124, 1.442695
        %v2268 = vpow.pop %v2267
        %v2269 = vmul.f32 %v2125, 1.442695
        %v2270 = vpow.pop %v2269
        %v2271 = vmul.f32 %v2126, 1.442695
        %v2272 = vpow.pop %v2271
        %v2273 = vmul.f32 %v2127, 1.442695
        %v2274 = vpow.pop %v2273
        %v2275 = vmul.f32 %v2128, 1.442695
        %v2276 = vpow.pop %v2275
        %v2277 = vmul.f32 %v2129, 1.442695
        %v2278 = vpow.pop %v2277
        %v2279 = vmul.f32 %v2130, 1.442695
        %v2280 = vpow.pop %v2279
        %v2281 = vmul.f32 %v2131, 1.442695
        %v2282 = vpow.pop %v2281
        %v2283 = vmul.f32 %v2132, 1.442695
        %v2284 = vpow.pop %v2283
        %v2285 = vmul.f32 %v2133, 1.442695
        %v2286 = vpow.pop %v2285
        %v2287 = vmul.f32 %v2134, 1.442695
        %v2288 = vpow.pop %v2287
        %v2289 = vmul.f32 %v2135, 1.442695
        %v2290 = vpow.pop %v2289
        %v2291 = vmul.f32 %v2136, 1.442695
        %v2292 = vpow.pop %v2291
        %v2293 = vmul.f32 %v2137, 1.442695
        %v2294 = vpow.pop %v2293
        %v2295 = vmul.f32 %v2138, 1.442695
        %v2296 = vpow.pop %v2295
        %v2297 = vmul.f32 %v2139, 1.442695
        %v2298 = vpow.pop %v2297
        %v2299 = vmul.f32 %v2140, 1.442695
        %v2300 = vpow.pop %v2299
        %v2301 = vmul.f32 %v2141, 1.442695
        %v2302 = vpow.pop %v2301
        %v2303 = vmul.f32 %v2142, 1.442695
        %v2304 = vpow.pop %v2303
        %v2305 = vmul.f32 %v2143, 1.442695
        %v2306 = vpow.pop %v2305
        %v2307 = vmul.f32 %v2144, 1.442695
        %v2308 = vpow.pop %v2307
        %v2309 = vmul.f32 %v2145, 1.442695
        %v2310 = vpow.pop %v2309
        %v2311 = vmul.f32 %v2146, 1.442695
        %v2312 = vpow.pop %v2311
        %v2313 = vmul.f32 %v2147, 1.442695
        %v2314 = vpow.pop %v2313
        %v2315 = vmul.f32 %v2148, 1.442695
        %v2316 = vpow.pop %v2315
        %v2317 = vmul.f32 %v2149, 1.442695
        %v2318 = vpow.pop %v2317
        %v2319 = vmul.f32 %v2150, 1.442695
        %v2320 = vpow.pop %v2319
        %v2321 = vmul.f32 %v2151, 1.442695
        %v2322 = vpow.pop %v2321
        %v2323 = vmul.f32 %v2152, 1.442695
        %v2324 = vpow.pop %v2323
        %v2325 = vmul.f32 %v2153, 1.442695
        %v2326 = vpow.pop %v2325
        %v2327 = vmul.f32 %v2154, 1.442695
        %v2328 = vpow.pop %v2327
        %v2329 = vmul.f32 %v2155, 1.442695
        %v2330 = vpow.pop %v2329
        %v2331 = vmul.f32 %v2156, 1.442695
        %v2332 = vpow.pop %v2331
        %v2333 = vmul.f32 %v2157, 1.442695
        %v2334 = vpow.pop %v2333
        %v2335 = vmul.f32 %v2158, 1.442695
        %v2336 = vpow.pop %v2335
        %v2337 = vmul.f32 %v2159, 1.442695
        %v2338 = vpow.pop %v2337
        %v2339 = vmul.f32 %v2160, 1.442695
        %v2340 = vpow.pop %v2339
        %v2341 = vmul.f32 %v2161, 1.442695
        %v2342 = vpow.pop %v2341
        %v2343 = vmul.f32 %v2162, 1.442695
        %v2344 = vpow.pop %v2343
        %v2345 = vmul.f32 %v2163, 1.442695
        %v2346 = vpow.pop %v2345
        %v2347 = vmul.f32 %v2164, 1.442695
        %v2348 = vpow.pop %v2347
        %v2349 = vmul.f32 %v2165, 1.442695
        %v2350 = vpow.pop %v2349
        %v2351 = vmul.f32 %v2166, 1.442695
        %v2352 = vpow.pop %v2351
        %v2353 = vmul.f32 %v2167, 1.442695
        %v2354 = vpow.pop %v2353
        %v2355 = vmul.f32 %v2168, 1.442695
        %v2356 = vpow.pop %v2355
        %v2357 = vmul.f32 %v2169, 1.442695
        %v2358 = vpow.pop %v2357
        %v2359 = vmul.f32 %v2170, 1.442695
        %v2360 = vpow.pop %v2359
        %v2361 = vmul.f32 %v2171, 1.442695
        %v2362 = vpow.pop %v2361
        %v2363 = vmul.f32 %v2172, 1.442695
        %v2364 = vpow.pop %v2363
        %v2365 = vmul.f32 %v2173, 1.442695
        %v2366 = vpow.pop %v2365
        %v2367 = vmul.f32 %v2174, 1.442695
        %v2368 = vpow.pop %v2367
        %v2369 = vmul.f32 %v2175, 1.442695
        %v2370 = vpow.pop %v2369
        %v2371 = vmul.f32 %v2176, 1.442695
        %v2372 = vpow.pop %v2371
        %v2373 = vmul.f32 %v2177, 1.442695
        %v2374 = vpow.pop %v2373
        %v2375 = vmul.f32 %v2178, 1.442695
        %v2376 = vpow.pop %v2375
        %v2377 = vmul.f32 %v2179, 1.442695
        %v2378 = vpow.pop %v2377
        %v2379 = vmul.f32 %v2180, 1.442695
        %v2380 = vpow.pop %v2379
        %v2381 = vmul.f32 %v2181, 1.442695
        %v2382 = vpow.pop %v2381
        %v2383 = vmul.f32 %v2182, 1.442695
        %v2384 = vpow.pop %v2383
        %v2385 = vmul.f32 %v2183, 1.442695
        %v2386 = vpow.pop %v2385
        %v2387 = vmul.f32 %v2184, 1.442695
        %v2388 = vpow.pop %v2387
        %v2389 = vmul.f32 %v2185, 1.442695
        %v2390 = vpow.pop %v2389
        %v2391 = vmul.f32 %v2186, 1.442695
        %v2392 = vpow.pop %v2391
        %v2393 = vmul.f32 %v2187, 1.442695
        %v2394 = vpow.pop %v2393
        %v2395 = vmul.f32 %v2188, 1.442695
        %v2396 = vpow.pop %v2395
        %v2397 = vmul.f32 %v2189, 1.442695
        %v2398 = vpow.pop %v2397
        %v2399 = vmul.f32 %v2190, 1.442695
        %v2400 = vpow.pop %v2399
        %v2401 = vmul.f32 %v2191, 1.442695
        %v2402 = vpow.pop %v2401
        %v2403 = vmul.f32 %v2192, 1.442695
        %v2404 = vpow.pop %v2403
        %v2405 = vmul.f32 %v2193, 1.442695
        %v2406 = vpow.pop %v2405
        %v2407 = vmul.f32 %v2194, 1.442695
        %v2408 = vpow.pop %v2407
        %v2409 = vmul.f32 %v2195, 1.442695
        %v2410 = vpow.pop %v2409
        %v2411 = vmul.f32 %v2196, 1.442695
        %v2412 = vpow.pop %v2411
        %v2413 = vmul.f32 %v2197, 1.442695
        %v2414 = vpow.pop %v2413
        %v2415 = vmul.f32 %v2198, 1.442695
        %v2416 = vpow.pop %v2415
        %v2417 = vmul.f32 %v2199, 1.442695
        %v2418 = vpow.pop %v2417
        %v2419 = vmul.f32 %v2200, 1.442695
        %v2420 = vpow.pop %v2419
        %v2421 = vmul.f32 %v2201, 1.442695
        %v2422 = vpow.pop %v2421
        %v2423 = vmul.f32 %v2202, 1.442695
        %v2424 = vpow.pop %v2423
        %v2425 = vmul.f32 %v2203, 1.442695
        %v2426 = vpow.pop %v2425
        %v2427 = vmul.f32 %v2204, 1.442695
        %v2428 = vpow.pop %v2427
        %v2429 = vmul.f32 %v2205, 1.442695
        %v2430 = vpow.pop %v2429
        %v2431 = vmul.f32 %v2206, 1.442695
        %v2432 = vpow.pop %v2431
        %v2433 = vmul.f32 %v2207, 1.442695
        %v2434 = vpow.pop %v2433
        %v2435 = vmul.f32 %v2208, 1.442695
        %v2436 = vpow.pop %v2435
        %v2437 = vmul.f32 %v2209, 1.442695
        %v2438 = vpow.pop %v2437
        %v2439 = vmul.f32 %v2210, 1.442695
        %v2440 = vpow.pop %v2439
        %v2441 = vmul.f32 %v2211, 1.442695
        %v2442 = vpow.pop %v2441
        %v2443 = vmul.f32 %v2212, 1.442695
        %v2444 = vpow.pop %v2443
        %v2445 = vmul.f32 %v2213, 1.442695
        %v2446 = vpow.pop %v2445
        %v2447 = vmul.f32 %v2214, 1.442695
        %v2448 = vpow.pop %v2447
        %v2449 = vmul.f32 %v2215, 1.442695
        %v2450 = vpow.pop %v2449
        %v2451 = vmul.f32 %v2216, 1.442695
        %v2452 = vpow.pop %v2451
        %v2453 = vmul.f32 %v2217, 1.442695
        %v2454 = vpow.pop %v2453
        %v2455 = vmul.f32 %v2218, 1.442695
        %v2456 = vpow.pop %v2455
        %v2457 = vmul.f32 %v2219, 1.442695
        %v2458 = vpow.pop %v2457
        %v2459 = vmul.f32 %v2220, 1.442695
        %v2460 = vpow.pop %v2459
        %v2461 = vmul.f32 %v2221, 1.442695
        %v2462 = vpow.pop %v2461
        %v2463 = vmul.f32 %v2222, 1.442695
        %v2464 = vpow.pop %v2463
        %v2465 = vmul.f32 %v2223, 1.442695
        %v2466 = vpow.pop %v2465
        %v2467 = vmul.f32 %v2224, 1.442695
        %v2468 = vpow.pop %v2467
        %v2469 = vmul.f32 %v2225, 1.442695
        %v2470 = vpow.pop %v2469
        %v2471 = vmul.f32 %v2226, 1.442695
        %v2472 = vpow.pop %v2471
        %v2473 = vmul.f32 %v2227, 1.442695
        %v2474 = vpow.pop %v2473
        %v2475 = vmul.f32 %v2228, 1.442695
        %v2476 = vpow.pop %v2475
        %v2477 = vmul.f32 %v2229, 1.442695
        %v2478 = vpow.pop %v2477
        %v2479 = vmul.f32 %v2230, 1.442695
        %v2480 = vpow.pop %v2479
        %v2481 = vmul.f32 %v2231, 1.442695
        %v2482 = vpow.pop %v2481
        %v2483 = vmul.f32 %v2232, 1.442695
        %v2484 = vpow.pop %v2483
        %v2485 = vmul.f32 %v2233, 1.442695
        %v2486 = vpow.pop %v2485
        %v2487 = vmul.f32 %v2234, 1.442695
        %v2488 = vpow.pop %v2487
        %v2489 = vmul.f32 %v2235, 1.442695
        %v2490 = vpow.pop %v2489
        %v2491 = vmul.f32 %v2236, 1.442695
        %v2492 = vpow.pop %v2491
        %v2493 = vld [vmem:[#allocation4] sm:$0xff]
        %v2494 = vld [vmem:[#allocation4 + $0x8] sm:$0xff]
        %v2495 = vld [vmem:[#allocation4 + $0x10] sm:$0xff]
        %v2496 = vld [vmem:[#allocation4 + $0x18] sm:$0xff]
        %v2497 = vld [vmem:[#allocation4 + $0x20] sm:$0xff]
        %v2498 = vld [vmem:[#allocation4 + $0x28] sm:$0xff]
        %v2499 = vld [vmem:[#allocation4 + $0x30] sm:$0xff]
        %v2500 = vld [vmem:[#allocation4 + $0x38] sm:$0xff]
        %v2501 = vld [vmem:[#allocation4 + $0x40] sm:$0xff]
        %v2502 = vld [vmem:[#allocation4 + $0x48] sm:$0xff]
        %v2503 = vld [vmem:[#allocation4 + $0x50] sm:$0xff]
        %v2504 = vld [vmem:[#allocation4 + $0x58] sm:$0xff]
        %v2505 = vld [vmem:[#allocation4 + $0x60] sm:$0xff]
        %v2506 = vld [vmem:[#allocation4 + $0x68] sm:$0xff]
        %v2507 = vld [vmem:[#allocation4 + $0x70] sm:$0xff]
        %v2508 = vld [vmem:[#allocation4 + $0x78] sm:$0xff]
        %v2509 = vld [vmem:[#allocation4 + $0x80] sm:$0xff]
        %v2510 = vld [vmem:[#allocation4 + $0x88] sm:$0xff]
        %v2511 = vld [vmem:[#allocation4 + $0x90] sm:$0xff]
        %v2512 = vld [vmem:[#allocation4 + $0x98] sm:$0xff]
        %v2513 = vld [vmem:[#allocation4 + $0xa0] sm:$0xff]
        %v2514 = vld [vmem:[#allocation4 + $0xa8] sm:$0xff]
        %v2515 = vld [vmem:[#allocation4 + $0xb0] sm:$0xff]
        %v2516 = vld [vmem:[#allocation4 + $0xb8] sm:$0xff]
        %v2517 = vld [vmem:[#allocation4 + $0xc0] sm:$0xff]
        %v2518 = vld [vmem:[#allocation4 + $0xc8] sm:$0xff]
        %v2519 = vld [vmem:[#allocation4 + $0xd0] sm:$0xff]
        %v2520 = vld [vmem:[#allocation4 + $0xd8] sm:$0xff]
        %v2521 = vld [vmem:[#allocation4 + $0xe0] sm:$0xff]
        %v2522 = vld [vmem:[#allocation4 + $0xe8] sm:$0xff]
        %v2523 = vld [vmem:[#allocation4 + $0xf0] sm:$0xff]
        %v2524 = vld [vmem:[#allocation4 + $0xf8] sm:$0xff]
        %v2525 = vmul.f32 %v1886, %v2493
        %v2526 = vmul.f32 %v1888, %v2494
        %v2527 = vmul.f32 %v1890, %v2495
        %v2528 = vmul.f32 %v1892, %v2496
        %v2529 = vmul.f32 %v1894, %v2497
        %v2530 = vmul.f32 %v1896, %v2498
        %v2531 = vmul.f32 %v1898, %v2499
        %v2532 = vmul.f32 %v1900, %v2500
        %v2533 = vmul.f32 %v1902, %v2501
        %v2534 = vmul.f32 %v1904, %v2502
        %v2535 = vmul.f32 %v1906, %v2503
        %v2536 = vmul.f32 %v1908, %v2504
        %v2537 = vmul.f32 %v1910, %v2505
        %v2538 = vmul.f32 %v1912, %v2506
        %v2539 = vmul.f32 %v1914, %v2507
        %v2540 = vmul.f32 %v1916, %v2508
        %v2541 = vmul.f32 %v1918, %v2509
        %v2542 = vmul.f32 %v1920, %v2510
        %v2543 = vmul.f32 %v1922, %v2511
        %v2544 = vmul.f32 %v1924, %v2512
        %v2545 = vmul.f32 %v1926, %v2513
        %v2546 = vmul.f32 %v1928, %v2514
        %v2547 = vmul.f32 %v1930, %v2515
        %v2548 = vmul.f32 %v1932, %v2516
        %v2549 = vmul.f32 %v1934, %v2517
        %v2550 = vmul.f32 %v1936, %v2518
        %v2551 = vmul.f32 %v1938, %v2519
        %v2552 = vmul.f32 %v1940, %v2520
        %v2553 = vmul.f32 %v1942, %v2521
        %v2554 = vmul.f32 %v1944, %v2522
        %v2555 = vmul.f32 %v1946, %v2523
        %v2556 = vmul.f32 %v1948, %v2524
        %v2557 = vadd.f32 %v2238, %v2240
        %v2558 = vadd.f32 %v2557, %v2242
        %v2559 = vadd.f32 %v2558, %v2244
        %2560 = vadd.xlane.f32.xlu0 %v2559
        %v2561 = vpop.xlane.xlu0 %2560
        %v2562 = vadd.f32 %v2246, %v2248
        %v2563 = vadd.f32 %v2562, %v2250
        %v2564 = vadd.f32 %v2563, %v2252
        %2565 = vadd.xlane.f32.xlu0 %v2564
        %v2566 = vpop.xlane.xlu0 %2565
        %v2567 = vadd.f32 %v2254, %v2256
        %v2568 = vadd.f32 %v2567, %v2258
        %v2569 = vadd.f32 %v2568, %v2260
        %2570 = vadd.xlane.f32.xlu0 %v2569
        %v2571 = vpop.xlane.xlu0 %2570
        %v2572 = vadd.f32 %v2262, %v2264
        %v2573 = vadd.f32 %v2572, %v2266
        %v2574 = vadd.f32 %v2573, %v2268
        %2575 = vadd.xlane.f32.xlu0 %v2574
        %v2576 = vpop.xlane.xlu0 %2575
        %v2577 = vadd.f32 %v2270, %v2272
        %v2578 = vadd.f32 %v2577, %v2274
        %v2579 = vadd.f32 %v2578, %v2276
        %2580 = vadd.xlane.f32.xlu0 %v2579
        %v2581 = vpop.xlane.xlu0 %2580
        %v2582 = vadd.f32 %v2278, %v2280
        %v2583 = vadd.f32 %v2582, %v2282
        %v2584 = vadd.f32 %v2583, %v2284
        %2585 = vadd.xlane.f32.xlu0 %v2584
        %v2586 = vpop.xlane.xlu0 %2585
        %v2587 = vadd.f32 %v2286, %v2288
        %v2588 = vadd.f32 %v2587, %v2290
        %v2589 = vadd.f32 %v2588, %v2292
        %2590 = vadd.xlane.f32.xlu0 %v2589
        %v2591 = vpop.xlane.xlu0 %2590
        %v2592 = vadd.f32 %v2294, %v2296
        %v2593 = vadd.f32 %v2592, %v2298
        %v2594 = vadd.f32 %v2593, %v2300
        %2595 = vadd.xlane.f32.xlu0 %v2594
        %v2596 = vpop.xlane.xlu0 %2595
        %v2597 = vadd.f32 %v2302, %v2304
        %v2598 = vadd.f32 %v2597, %v2306
        %v2599 = vadd.f32 %v2598, %v2308
        %2600 = vadd.xlane.f32.xlu0 %v2599
        %v2601 = vpop.xlane.xlu0 %2600
        %v2602 = vadd.f32 %v2310, %v2312
        %v2603 = vadd.f32 %v2602, %v2314
        %v2604 = vadd.f32 %v2603, %v2316
        %2605 = vadd.xlane.f32.xlu0 %v2604
        %v2606 = vpop.xlane.xlu0 %2605
        %v2607 = vadd.f32 %v2318, %v2320
        %v2608 = vadd.f32 %v2607, %v2322
        %v2609 = vadd.f32 %v2608, %v2324
        %2610 = vadd.xlane.f32.xlu0 %v2609
        %v2611 = vpop.xlane.xlu0 %2610
        %v2612 = vadd.f32 %v2326, %v2328
        %v2613 = vadd.f32 %v2612, %v2330
        %v2614 = vadd.f32 %v2613, %v2332
        %2615 = vadd.xlane.f32.xlu0 %v2614
        %v2616 = vpop.xlane.xlu0 %2615
        %v2617 = vadd.f32 %v2334, %v2336
        %v2618 = vadd.f32 %v2617, %v2338
        %v2619 = vadd.f32 %v2618, %v2340
        %2620 = vadd.xlane.f32.xlu0 %v2619
        %v2621 = vpop.xlane.xlu0 %2620
        %v2622 = vadd.f32 %v2342, %v2344
        %v2623 = vadd.f32 %v2622, %v2346
        %v2624 = vadd.f32 %v2623, %v2348
        %2625 = vadd.xlane.f32.xlu0 %v2624
        %v2626 = vpop.xlane.xlu0 %2625
        %v2627 = vadd.f32 %v2350, %v2352
        %v2628 = vadd.f32 %v2627, %v2354
        %v2629 = vadd.f32 %v2628, %v2356
        %2630 = vadd.xlane.f32.xlu0 %v2629
        %v2631 = vpop.xlane.xlu0 %2630
        %v2632 = vadd.f32 %v2358, %v2360
        %v2633 = vadd.f32 %v2632, %v2362
        %v2634 = vadd.f32 %v2633, %v2364
        %2635 = vadd.xlane.f32.xlu0 %v2634
        %v2636 = vpop.xlane.xlu0 %2635
        %v2637 = vadd.f32 %v2366, %v2368
        %v2638 = vadd.f32 %v2637, %v2370
        %v2639 = vadd.f32 %v2638, %v2372
        %2640 = vadd.xlane.f32.xlu0 %v2639
        %v2641 = vpop.xlane.xlu0 %2640
        %v2642 = vadd.f32 %v2374, %v2376
        %v2643 = vadd.f32 %v2642, %v2378
        %v2644 = vadd.f32 %v2643, %v2380
        %2645 = vadd.xlane.f32.xlu0 %v2644
        %v2646 = vpop.xlane.xlu0 %2645
        %v2647 = vadd.f32 %v2382, %v2384
        %v2648 = vadd.f32 %v2647, %v2386
        %v2649 = vadd.f32 %v2648, %v2388
        %2650 = vadd.xlane.f32.xlu0 %v2649
        %v2651 = vpop.xlane.xlu0 %2650
        %v2652 = vadd.f32 %v2390, %v2392
        %v2653 = vadd.f32 %v2652, %v2394
        %v2654 = vadd.f32 %v2653, %v2396
        %2655 = vadd.xlane.f32.xlu0 %v2654
        %v2656 = vpop.xlane.xlu0 %2655
        %v2657 = vadd.f32 %v2398, %v2400
        %v2658 = vadd.f32 %v2657, %v2402
        %v2659 = vadd.f32 %v2658, %v2404
        %2660 = vadd.xlane.f32.xlu0 %v2659
        %v2661 = vpop.xlane.xlu0 %2660
        %v2662 = vadd.f32 %v2406, %v2408
        %v2663 = vadd.f32 %v2662, %v2410
        %v2664 = vadd.f32 %v2663, %v2412
        %2665 = vadd.xlane.f32.xlu0 %v2664
        %v2666 = vpop.xlane.xlu0 %2665
        %v2667 = vadd.f32 %v2414, %v2416
        %v2668 = vadd.f32 %v2667, %v2418
        %v2669 = vadd.f32 %v2668, %v2420
        %2670 = vadd.xlane.f32.xlu0 %v2669
        %v2671 = vpop.xlane.xlu0 %2670
        %v2672 = vadd.f32 %v2422, %v2424
        %v2673 = vadd.f32 %v2672, %v2426
        %v2674 = vadd.f32 %v2673, %v2428
        %2675 = vadd.xlane.f32.xlu0 %v2674
        %v2676 = vpop.xlane.xlu0 %2675
        %v2677 = vadd.f32 %v2430, %v2432
        %v2678 = vadd.f32 %v2677, %v2434
        %v2679 = vadd.f32 %v2678, %v2436
        %2680 = vadd.xlane.f32.xlu0 %v2679
        %v2681 = vpop.xlane.xlu0 %2680
        %v2682 = vadd.f32 %v2438, %v2440
        %v2683 = vadd.f32 %v2682, %v2442
        %v2684 = vadd.f32 %v2683, %v2444
        %2685 = vadd.xlane.f32.xlu0 %v2684
        %v2686 = vpop.xlane.xlu0 %2685
        %v2687 = vadd.f32 %v2446, %v2448
        %v2688 = vadd.f32 %v2687, %v2450
        %v2689 = vadd.f32 %v2688, %v2452
        %2690 = vadd.xlane.f32.xlu0 %v2689
        %v2691 = vpop.xlane.xlu0 %2690
        %v2692 = vadd.f32 %v2454, %v2456
        %v2693 = vadd.f32 %v2692, %v2458
        %v2694 = vadd.f32 %v2693, %v2460
        %2695 = vadd.xlane.f32.xlu0 %v2694
        %v2696 = vpop.xlane.xlu0 %2695
        %v2697 = vadd.f32 %v2462, %v2464
        %v2698 = vadd.f32 %v2697, %v2466
        %v2699 = vadd.f32 %v2698, %v2468
        %2700 = vadd.xlane.f32.xlu0 %v2699
        %v2701 = vpop.xlane.xlu0 %2700
        %v2702 = vadd.f32 %v2470, %v2472
        %v2703 = vadd.f32 %v2702, %v2474
        %v2704 = vadd.f32 %v2703, %v2476
        %2705 = vadd.xlane.f32.xlu0 %v2704
        %v2706 = vpop.xlane.xlu0 %2705
        %v2707 = vadd.f32 %v2478, %v2480
        %v2708 = vadd.f32 %v2707, %v2482
        %v2709 = vadd.f32 %v2708, %v2484
        %2710 = vadd.xlane.f32.xlu0 %v2709
        %v2711 = vpop.xlane.xlu0 %2710
        %v2712 = vadd.f32 %v2486, %v2488
        %v2713 = vadd.f32 %v2712, %v2490
        %v2714 = vadd.f32 %v2713, %v2492
        %2715 = vadd.xlane.f32.xlu0 %v2714
        %v2716 = vpop.xlane.xlu0 %2715
        %v2717 = vadd.f32 %v2525, %v2561
        %v2718 = vadd.f32 %v2526, %v2566
        %v2719 = vadd.f32 %v2527, %v2571
        %v2720 = vadd.f32 %v2528, %v2576
        %v2721 = vadd.f32 %v2529, %v2581
        %v2722 = vadd.f32 %v2530, %v2586
        %v2723 = vadd.f32 %v2531, %v2591
        %v2724 = vadd.f32 %v2532, %v2596
        %v2725 = vadd.f32 %v2533, %v2601
        %v2726 = vadd.f32 %v2534, %v2606
        %v2727 = vadd.f32 %v2535, %v2611
        %v2728 = vadd.f32 %v2536, %v2616
        %v2729 = vadd.f32 %v2537, %v2621
        %v2730 = vadd.f32 %v2538, %v2626
        %v2731 = vadd.f32 %v2539, %v2631
        %v2732 = vadd.f32 %v2540, %v2636
        %v2733 = vadd.f32 %v2541, %v2641
        %v2734 = vadd.f32 %v2542, %v2646
        %v2735 = vadd.f32 %v2543, %v2651
        %v2736 = vadd.f32 %v2544, %v2656
        %v2737 = vadd.f32 %v2545, %v2661
        %v2738 = vadd.f32 %v2546, %v2666
        %v2739 = vadd.f32 %v2547, %v2671
        %v2740 = vadd.f32 %v2548, %v2676
        %v2741 = vadd.f32 %v2549, %v2681
        %v2742 = vadd.f32 %v2550, %v2686
        %v2743 = vadd.f32 %v2551, %v2691
        %v2744 = vadd.f32 %v2552, %v2696
        %v2745 = vadd.f32 %v2553, %v2701
        %v2746 = vadd.f32 %v2554, %v2706
        %v2747 = vadd.f32 %v2555, %v2711
        %v2748 = vadd.f32 %v2556, %v2716
        %vm2749 = vcmask 7168
        %2750 = vst.msk [vmem:[#allocation4] sm:$0xff] %vm2749, %v2717
        %2751 = vst.msk [vmem:[#allocation4 + $0x8] sm:$0xff] %vm2749, %v2718
        %2752 = vst.msk [vmem:[#allocation4 + $0x10] sm:$0xff] %vm2749, %v2719
        %2753 = vst.msk [vmem:[#allocation4 + $0x18] sm:$0xff] %vm2749, %v2720
        %2754 = vst.msk [vmem:[#allocation4 + $0x20] sm:$0xff] %vm2749, %v2721
        %2755 = vst.msk [vmem:[#allocation4 + $0x28] sm:$0xff] %vm2749, %v2722
        %2756 = vst.msk [vmem:[#allocation4 + $0x30] sm:$0xff] %vm2749, %v2723
        %2757 = vst.msk [vmem:[#allocation4 + $0x38] sm:$0xff] %vm2749, %v2724
        %2758 = vst.msk [vmem:[#allocation4 + $0x40] sm:$0xff] %vm2749, %v2725
        %2759 = vst.msk [vmem:[#allocation4 + $0x48] sm:$0xff] %vm2749, %v2726
        %2760 = vst.msk [vmem:[#allocation4 + $0x50] sm:$0xff] %vm2749, %v2727
        %2761 = vst.msk [vmem:[#allocation4 + $0x58] sm:$0xff] %vm2749, %v2728
        %2762 = vst.msk [vmem:[#allocation4 + $0x60] sm:$0xff] %vm2749, %v2729
        %2763 = vst.msk [vmem:[#allocation4 + $0x68] sm:$0xff] %vm2749, %v2730
        %2764 = vst.msk [vmem:[#allocation4 + $0x70] sm:$0xff] %vm2749, %v2731
        %2765 = vst.msk [vmem:[#allocation4 + $0x78] sm:$0xff] %vm2749, %v2732
        %2766 = vst.msk [vmem:[#allocation4 + $0x80] sm:$0xff] %vm2749, %v2733
        %2767 = vst.msk [vmem:[#allocation4 + $0x88] sm:$0xff] %vm2749, %v2734
        %2768 = vst.msk [vmem:[#allocation4 + $0x90] sm:$0xff] %vm2749, %v2735
        %2769 = vst.msk [vmem:[#allocation4 + $0x98] sm:$0xff] %vm2749, %v2736
        %2770 = vst.msk [vmem:[#allocation4 + $0xa0] sm:$0xff] %vm2749, %v2737
        %2771 = vst.msk [vmem:[#allocation4 + $0xa8] sm:$0xff] %vm2749, %v2738
        %2772 = vst.msk [vmem:[#allocation4 + $0xb0] sm:$0xff] %vm2749, %v2739
        %2773 = vst.msk [vmem:[#allocation4 + $0xb8] sm:$0xff] %vm2749, %v2740
        %2774 = vst.msk [vmem:[#allocation4 + $0xc0] sm:$0xff] %vm2749, %v2741
        %2775 = vst.msk [vmem:[#allocation4 + $0xc8] sm:$0xff] %vm2749, %v2742
        %2776 = vst.msk [vmem:[#allocation4 + $0xd0] sm:$0xff] %vm2749, %v2743
        %2777 = vst.msk [vmem:[#allocation4 + $0xd8] sm:$0xff] %vm2749, %v2744
        %2778 = vst.msk [vmem:[#allocation4 + $0xe0] sm:$0xff] %vm2749, %v2745
        %2779 = vst.msk [vmem:[#allocation4 + $0xe8] sm:$0xff] %vm2749, %v2746
        %2780 = vst.msk [vmem:[#allocation4 + $0xf0] sm:$0xff] %vm2749, %v2747
        %2781 = vst.msk [vmem:[#allocation4 + $0xf8] sm:$0xff] %vm2749, %v2748
        %v2782 = vld [vmem:[#allocation5] sm:$0xff]
        %v2783 = vld [vmem:[#allocation5 + $0x8] sm:$0xff]
        %v2784 = vld [vmem:[#allocation5 + $0x10] sm:$0xff]
        %v2785 = vld [vmem:[#allocation5 + $0x18] sm:$0xff]
        %v2786 = vld [vmem:[#allocation5 + $0x20] sm:$0xff]
        %v2787 = vld [vmem:[#allocation5 + $0x28] sm:$0xff]
        %v2788 = vld [vmem:[#allocation5 + $0x30] sm:$0xff]
        %v2789 = vld [vmem:[#allocation5 + $0x38] sm:$0xff]
        %v2790 = vld [vmem:[#allocation5 + $0x40] sm:$0xff]
        %v2791 = vld [vmem:[#allocation5 + $0x48] sm:$0xff]
        %v2792 = vld [vmem:[#allocation5 + $0x50] sm:$0xff]
        %v2793 = vld [vmem:[#allocation5 + $0x58] sm:$0xff]
        %v2794 = vld [vmem:[#allocation5 + $0x60] sm:$0xff]
        %v2795 = vld [vmem:[#allocation5 + $0x68] sm:$0xff]
        %v2796 = vld [vmem:[#allocation5 + $0x70] sm:$0xff]
        %v2797 = vld [vmem:[#allocation5 + $0x78] sm:$0xff]
        %v2798 = vld [vmem:[#allocation5 + $0x80] sm:$0xff]
        %v2799 = vld [vmem:[#allocation5 + $0x88] sm:$0xff]
        %v2800 = vld [vmem:[#allocation5 + $0x90] sm:$0xff]
        %v2801 = vld [vmem:[#allocation5 + $0x98] sm:$0xff]
        %v2802 = vld [vmem:[#allocation5 + $0xa0] sm:$0xff]
        %v2803 = vld [vmem:[#allocation5 + $0xa8] sm:$0xff]
        %v2804 = vld [vmem:[#allocation5 + $0xb0] sm:$0xff]
        %v2805 = vld [vmem:[#allocation5 + $0xb8] sm:$0xff]
        %v2806 = vld [vmem:[#allocation5 + $0xc0] sm:$0xff]
        %v2807 = vld [vmem:[#allocation5 + $0xc8] sm:$0xff]
        %v2808 = vld [vmem:[#allocation5 + $0xd0] sm:$0xff]
        %v2809 = vld [vmem:[#allocation5 + $0xd8] sm:$0xff]
        %v2810 = vld [vmem:[#allocation5 + $0xe0] sm:$0xff]
        %v2811 = vld [vmem:[#allocation5 + $0xe8] sm:$0xff]
        %v2812 = vld [vmem:[#allocation5 + $0xf0] sm:$0xff]
        %v2813 = vld [vmem:[#allocation5 + $0xf8] sm:$0xff]
        %2815 = vset.pattern.permute.xlu0 0
        %2816 = vperm.xlu0 %2815, %v1886
        %v2817 = vpop.permute.xlu0 %2816
        %2820 = vset.pattern.permute.xlu0 0
        %2821 = vperm.xlu0 %2820, %v1888
        %v2822 = vpop.permute.xlu0 %2821
        %2825 = vset.pattern.permute.xlu0 0
        %2826 = vperm.xlu0 %2825, %v1890
        %v2827 = vpop.permute.xlu0 %2826
        %2830 = vset.pattern.permute.xlu0 0
        %2831 = vperm.xlu0 %2830, %v1892
        %v2832 = vpop.permute.xlu0 %2831
        %2835 = vset.pattern.permute.xlu0 0
        %2836 = vperm.xlu0 %2835, %v1894
        %v2837 = vpop.permute.xlu0 %2836
        %2840 = vset.pattern.permute.xlu0 0
        %2841 = vperm.xlu0 %2840, %v1896
        %v2842 = vpop.permute.xlu0 %2841
        %2845 = vset.pattern.permute.xlu0 0
        %2846 = vperm.xlu0 %2845, %v1898
        %v2847 = vpop.permute.xlu0 %2846
        %2850 = vset.pattern.permute.xlu0 0
        %2851 = vperm.xlu0 %2850, %v1900
        %v2852 = vpop.permute.xlu0 %2851
        %2855 = vset.pattern.permute.xlu0 0
        %2856 = vperm.xlu0 %2855, %v1902
        %v2857 = vpop.permute.xlu0 %2856
        %2860 = vset.pattern.permute.xlu0 0
        %2861 = vperm.xlu0 %2860, %v1904
        %v2862 = vpop.permute.xlu0 %2861
        %2865 = vset.pattern.permute.xlu0 0
        %2866 = vperm.xlu0 %2865, %v1906
        %v2867 = vpop.permute.xlu0 %2866
        %2870 = vset.pattern.permute.xlu0 0
        %2871 = vperm.xlu0 %2870, %v1908
        %v2872 = vpop.permute.xlu0 %2871
        %2875 = vset.pattern.permute.xlu0 0
        %2876 = vperm.xlu0 %2875, %v1910
        %v2877 = vpop.permute.xlu0 %2876
        %2880 = vset.pattern.permute.xlu0 0
        %2881 = vperm.xlu0 %2880, %v1912
        %v2882 = vpop.permute.xlu0 %2881
        %2885 = vset.pattern.permute.xlu0 0
        %2886 = vperm.xlu0 %2885, %v1914
        %v2887 = vpop.permute.xlu0 %2886
        %2890 = vset.pattern.permute.xlu0 0
        %2891 = vperm.xlu0 %2890, %v1916
        %v2892 = vpop.permute.xlu0 %2891
        %2895 = vset.pattern.permute.xlu0 0
        %2896 = vperm.xlu0 %2895, %v1918
        %v2897 = vpop.permute.xlu0 %2896
        %2900 = vset.pattern.permute.xlu0 0
        %2901 = vperm.xlu0 %2900, %v1920
        %v2902 = vpop.permute.xlu0 %2901
        %2905 = vset.pattern.permute.xlu0 0
        %2906 = vperm.xlu0 %2905, %v1922
        %v2907 = vpop.permute.xlu0 %2906
        %2910 = vset.pattern.permute.xlu0 0
        %2911 = vperm.xlu0 %2910, %v1924
        %v2912 = vpop.permute.xlu0 %2911
        %2915 = vset.pattern.permute.xlu0 0
        %2916 = vperm.xlu0 %2915, %v1926
        %v2917 = vpop.permute.xlu0 %2916
        %2920 = vset.pattern.permute.xlu0 0
        %2921 = vperm.xlu0 %2920, %v1928
        %v2922 = vpop.permute.xlu0 %2921
        %2925 = vset.pattern.permute.xlu0 0
        %2926 = vperm.xlu0 %2925, %v1930
        %v2927 = vpop.permute.xlu0 %2926
        %2930 = vset.pattern.permute.xlu0 0
        %2931 = vperm.xlu0 %2930, %v1932
        %v2932 = vpop.permute.xlu0 %2931
        %2935 = vset.pattern.permute.xlu0 0
        %2936 = vperm.xlu0 %2935, %v1934
        %v2937 = vpop.permute.xlu0 %2936
        %2940 = vset.pattern.permute.xlu0 0
        %2941 = vperm.xlu0 %2940, %v1936
        %v2942 = vpop.permute.xlu0 %2941
        %2945 = vset.pattern.permute.xlu0 0
        %2946 = vperm.xlu0 %2945, %v1938
        %v2947 = vpop.permute.xlu0 %2946
        %2950 = vset.pattern.permute.xlu0 0
        %2951 = vperm.xlu0 %2950, %v1940
        %v2952 = vpop.permute.xlu0 %2951
        %2955 = vset.pattern.permute.xlu0 0
        %2956 = vperm.xlu0 %2955, %v1942
        %v2957 = vpop.permute.xlu0 %2956
        %2960 = vset.pattern.permute.xlu0 0
        %2961 = vperm.xlu0 %2960, %v1944
        %v2962 = vpop.permute.xlu0 %2961
        %2965 = vset.pattern.permute.xlu0 0
        %2966 = vperm.xlu0 %2965, %v1946
        %v2967 = vpop.permute.xlu0 %2966
        %2970 = vset.pattern.permute.xlu0 0
        %2971 = vperm.xlu0 %2970, %v1948
        %v2972 = vpop.permute.xlu0 %2971
        %v2974 = vmul.f32 %v2817, %v2782
        %v2975 = vmul.f32 %v2822, %v2783
        %v2976 = vmul.f32 %v2827, %v2784
        %v2977 = vmul.f32 %v2832, %v2785
        %v2978 = vmul.f32 %v2837, %v2786
        %v2979 = vmul.f32 %v2842, %v2787
        %v2980 = vmul.f32 %v2847, %v2788
        %v2981 = vmul.f32 %v2852, %v2789
        %v2982 = vmul.f32 %v2857, %v2790
        %v2983 = vmul.f32 %v2862, %v2791
        %v2984 = vmul.f32 %v2867, %v2792
        %v2985 = vmul.f32 %v2872, %v2793
        %v2986 = vmul.f32 %v2877, %v2794
        %v2987 = vmul.f32 %v2882, %v2795
        %v2988 = vmul.f32 %v2887, %v2796
        %v2989 = vmul.f32 %v2892, %v2797
        %v2990 = vmul.f32 %v2897, %v2798
        %v2991 = vmul.f32 %v2902, %v2799
        %v2992 = vmul.f32 %v2907, %v2800
        %v2993 = vmul.f32 %v2912, %v2801
        %v2994 = vmul.f32 %v2917, %v2802
        %v2995 = vmul.f32 %v2922, %v2803
        %v2996 = vmul.f32 %v2927, %v2804
        %v2997 = vmul.f32 %v2932, %v2805
        %v2998 = vmul.f32 %v2937, %v2806
        %v2999 = vmul.f32 %v2942, %v2807
        %v3000 = vmul.f32 %v2947, %v2808
        %v3001 = vmul.f32 %v2952, %v2809
        %v3002 = vmul.f32 %v2957, %v2810
        %v3003 = vmul.f32 %v2962, %v2811
        %v3004 = vmul.f32 %v2967, %v2812
        %v3005 = vmul.f32 %v2972, %v2813
        %v3006 = vpack.c.bf16 %v2246, %v2238
        %v3007 = vpack.c.bf16 %v2248, %v2240
        %v3008 = vpack.c.bf16 %v2250, %v2242
        %v3009 = vpack.c.bf16 %v2252, %v2244
        %v3010 = vpack.c.bf16 %v2262, %v2254
        %v3011 = vpack.c.bf16 %v2264, %v2256
        %v3012 = vpack.c.bf16 %v2266, %v2258
        %v3013 = vpack.c.bf16 %v2268, %v2260
        %v3014 = vpack.c.bf16 %v2278, %v2270
        %v3015 = vpack.c.bf16 %v2280, %v2272
        %v3016 = vpack.c.bf16 %v2282, %v2274
        %v3017 = vpack.c.bf16 %v2284, %v2276
        %v3018 = vpack.c.bf16 %v2294, %v2286
        %v3019 = vpack.c.bf16 %v2296, %v2288
        %v3020 = vpack.c.bf16 %v2298, %v2290
        %v3021 = vpack.c.bf16 %v2300, %v2292
        %v3022 = vpack.c.bf16 %v2310, %v2302
        %v3023 = vpack.c.bf16 %v2312, %v2304
        %v3024 = vpack.c.bf16 %v2314, %v2306
        %v3025 = vpack.c.bf16 %v2316, %v2308
        %v3026 = vpack.c.bf16 %v2326, %v2318
        %v3027 = vpack.c.bf16 %v2328, %v2320
        %v3028 = vpack.c.bf16 %v2330, %v2322
        %v3029 = vpack.c.bf16 %v2332, %v2324
        %v3030 = vpack.c.bf16 %v2342, %v2334
        %v3031 = vpack.c.bf16 %v2344, %v2336
        %v3032 = vpack.c.bf16 %v2346, %v2338
        %v3033 = vpack.c.bf16 %v2348, %v2340
        %v3034 = vpack.c.bf16 %v2358, %v2350
        %v3035 = vpack.c.bf16 %v2360, %v2352
        %v3036 = vpack.c.bf16 %v2362, %v2354
        %v3037 = vpack.c.bf16 %v2364, %v2356
        %v3038 = vpack.c.bf16 %v2374, %v2366
        %v3039 = vpack.c.bf16 %v2376, %v2368
        %v3040 = vpack.c.bf16 %v2378, %v2370
        %v3041 = vpack.c.bf16 %v2380, %v2372
        %v3042 = vpack.c.bf16 %v2390, %v2382
        %v3043 = vpack.c.bf16 %v2392, %v2384
        %v3044 = vpack.c.bf16 %v2394, %v2386
        %v3045 = vpack.c.bf16 %v2396, %v2388
        %v3046 = vpack.c.bf16 %v2406, %v2398
        %v3047 = vpack.c.bf16 %v2408, %v2400
        %v3048 = vpack.c.bf16 %v2410, %v2402
        %v3049 = vpack.c.bf16 %v2412, %v2404
        %v3050 = vpack.c.bf16 %v2422, %v2414
        %v3051 = vpack.c.bf16 %v2424, %v2416
        %v3052 = vpack.c.bf16 %v2426, %v2418
        %v3053 = vpack.c.bf16 %v2428, %v2420
        %v3054 = vpack.c.bf16 %v2438, %v2430
        %v3055 = vpack.c.bf16 %v2440, %v2432
        %v3056 = vpack.c.bf16 %v2442, %v2434
        %v3057 = vpack.c.bf16 %v2444, %v2436
        %v3058 = vpack.c.bf16 %v2454, %v2446
        %v3059 = vpack.c.bf16 %v2456, %v2448
        %v3060 = vpack.c.bf16 %v2458, %v2450
        %v3061 = vpack.c.bf16 %v2460, %v2452
        %v3062 = vpack.c.bf16 %v2470, %v2462
        %v3063 = vpack.c.bf16 %v2472, %v2464
        %v3064 = vpack.c.bf16 %v2474, %v2466
        %v3065 = vpack.c.bf16 %v2476, %v2468
        %v3066 = vpack.c.bf16 %v2486, %v2478
        %v3067 = vpack.c.bf16 %v2488, %v2480
        %v3068 = vpack.c.bf16 %v2490, %v2482
        %v3069 = vpack.c.bf16 %v2492, %v2484
        %v3134 = vunpack.c.l.b16 %v971
        %v3135 = vunpack.c.l.b16 %v972
        %v3136 = vunpack.c.l.b16 %v973
        %v3137 = vunpack.c.l.b16 %v974
        %v3138 = vunpack.c.l.b16 %v975
        %v3139 = vunpack.c.l.b16 %v976
        %v3140 = vunpack.c.l.b16 %v977
        %v3141 = vunpack.c.l.b16 %v978
        %v3142 = vunpack.c.l.b16 %v979
        %v3143 = vunpack.c.l.b16 %v980
        %v3144 = vunpack.c.l.b16 %v981
        %v3145 = vunpack.c.l.b16 %v982
        %v3146 = vunpack.c.l.b16 %v983
        %v3147 = vunpack.c.l.b16 %v984
        %v3148 = vunpack.c.l.b16 %v985
        %v3149 = vunpack.c.l.b16 %v986
        %v3150 = vunpack.c.l.b16 %v987
        %v3151 = vunpack.c.l.b16 %v988
        %v3152 = vunpack.c.l.b16 %v989
        %v3153 = vunpack.c.l.b16 %v990
        %v3154 = vunpack.c.l.b16 %v991
        %v3155 = vunpack.c.l.b16 %v992
        %v3156 = vunpack.c.l.b16 %v993
        %v3157 = vunpack.c.l.b16 %v994
        %v3158 = vunpack.c.l.b16 %v995
        %v3159 = vunpack.c.l.b16 %v996
        %v3160 = vunpack.c.l.b16 %v997
        %v3161 = vunpack.c.l.b16 %v998
        %v3162 = vunpack.c.l.b16 %v999
        %v3163 = vunpack.c.l.b16 %v1000
        %v3164 = vunpack.c.l.b16 %v1001
        %v3165 = vunpack.c.l.b16 %v1002
        %v3166 = vunpack.c.l.b16 %v1003
        %v3167 = vunpack.c.l.b16 %v1004
        %v3168 = vunpack.c.l.b16 %v1005
        %v3169 = vunpack.c.l.b16 %v1006
        %v3170 = vunpack.c.l.b16 %v1007
        %v3171 = vunpack.c.l.b16 %v1008
        %v3172 = vunpack.c.l.b16 %v1009
        %v3173 = vunpack.c.l.b16 %v1010
        %v3174 = vunpack.c.l.b16 %v1011
        %v3175 = vunpack.c.l.b16 %v1012
        %v3176 = vunpack.c.l.b16 %v1013
        %v3177 = vunpack.c.l.b16 %v1014
        %v3178 = vunpack.c.l.b16 %v1015
        %v3179 = vunpack.c.l.b16 %v1016
        %v3180 = vunpack.c.l.b16 %v1017
        %v3181 = vunpack.c.l.b16 %v1018
        %v3182 = vunpack.c.l.b16 %v1019
        %v3183 = vunpack.c.l.b16 %v1020
        %v3184 = vunpack.c.l.b16 %v1021
        %v3185 = vunpack.c.l.b16 %v1022
        %v3186 = vunpack.c.l.b16 %v1023
        %v3187 = vunpack.c.l.b16 %v1024
        %v3188 = vunpack.c.l.b16 %v1025
        %v3189 = vunpack.c.l.b16 %v1026
        %v3190 = vunpack.c.l.b16 %v1027
        %v3191 = vunpack.c.l.b16 %v1028
        %v3192 = vunpack.c.l.b16 %v1029
        %v3193 = vunpack.c.l.b16 %v1030
        %v3194 = vunpack.c.l.b16 %v1031
        %v3195 = vunpack.c.l.b16 %v1032
        %v3196 = vunpack.c.l.b16 %v1033
        %v3197 = vunpack.c.l.b16 %v1034
        %v3198 = vpack.c.b16 %v3135, %v3134
        %v3199 = vpack.c.b16 %v3137, %v3136
        %v3200 = vpack.c.b16 %v3139, %v3138
        %v3201 = vpack.c.b16 %v3141, %v3140
        %v3202 = vpack.c.b16 %v3143, %v3142
        %v3203 = vpack.c.b16 %v3145, %v3144
        %v3204 = vpack.c.b16 %v3147, %v3146
        %v3205 = vpack.c.b16 %v3149, %v3148
        %v3206 = vpack.c.b16 %v3151, %v3150
        %v3207 = vpack.c.b16 %v3153, %v3152
        %v3208 = vpack.c.b16 %v3155, %v3154
        %v3209 = vpack.c.b16 %v3157, %v3156
        %v3210 = vpack.c.b16 %v3159, %v3158
        %v3211 = vpack.c.b16 %v3161, %v3160
        %v3212 = vpack.c.b16 %v3163, %v3162
        %v3213 = vpack.c.b16 %v3165, %v3164
        %v3214 = vpack.c.b16 %v3167, %v3166
        %v3215 = vpack.c.b16 %v3169, %v3168
        %v3216 = vpack.c.b16 %v3171, %v3170
        %v3217 = vpack.c.b16 %v3173, %v3172
        %v3218 = vpack.c.b16 %v3175, %v3174
        %v3219 = vpack.c.b16 %v3177, %v3176
        %v3220 = vpack.c.b16 %v3179, %v3178
        %v3221 = vpack.c.b16 %v3181, %v3180
        %v3222 = vpack.c.b16 %v3183, %v3182
        %v3223 = vpack.c.b16 %v3185, %v3184
        %v3224 = vpack.c.b16 %v3187, %v3186
        %v3225 = vpack.c.b16 %v3189, %v3188
        %v3226 = vpack.c.b16 %v3191, %v3190
        %v3227 = vpack.c.b16 %v3193, %v3192
        %v3228 = vpack.c.b16 %v3195, %v3194
        %v3229 = vpack.c.b16 %v3197, %v3196
        %3262 = vmatprep.subr.bf16.mxu0 0
        %3263 = vmatpush1.bf16.msra.mxu0 %v3198
        %3264 = vmatprep.subr.bf16.mxu0 0
        %3265 = vmatpush1.bf16.msra.mxu0 %v3199
        %3266 = vmatprep.subr.bf16.mxu0 0
        %3267 = vmatpush1.bf16.msra.mxu0 %v3200
        %3268 = vmatprep.subr.bf16.mxu0 0
        %3269 = vmatpush1.bf16.msra.mxu0 %v3201
        %3270 = vmatprep.subr.bf16.mxu0 0
        %3271 = vmatpush1.bf16.msra.mxu0 %v3202
        %3272 = vmatprep.subr.bf16.mxu0 0
        %3273 = vmatpush1.bf16.msra.mxu0 %v3203
        %3274 = vmatprep.subr.bf16.mxu0 0
        %3275 = vmatpush1.bf16.msra.mxu0 %v3204
        %3276 = vmatprep.subr.bf16.mxu0 0
        %3277 = vmatpush1.bf16.msra.mxu0 %v3205
        %3278 = vmatprep.subr.bf16.mxu0 0
        %3279 = vmatpush1.bf16.msra.mxu0 %v3206
        %3280 = vmatprep.subr.bf16.mxu0 0
        %3281 = vmatpush1.bf16.msra.mxu0 %v3207
        %3282 = vmatprep.subr.bf16.mxu0 0
        %3283 = vmatpush1.bf16.msra.mxu0 %v3208
        %3284 = vmatprep.subr.bf16.mxu0 0
        %3285 = vmatpush1.bf16.msra.mxu0 %v3209
        %3286 = vmatprep.subr.bf16.mxu0 0
        %3287 = vmatpush1.bf16.msra.mxu0 %v3210
        %3288 = vmatprep.subr.bf16.mxu0 0
        %3289 = vmatpush1.bf16.msra.mxu0 %v3211
        %3290 = vmatprep.subr.bf16.mxu0 0
        %3291 = vmatpush1.bf16.msra.mxu0 %v3212
        %3292 = vmatprep.subr.bf16.mxu0 0
        %3293 = vmatpush1.bf16.msra.mxu0 %v3213
        %3294 = vmatprep.mubr.bf16.mxu0 %v3007
        %3295 = vmatmul.mubr.bf16.gmra.mrb[0].mxu0 %v3006
        %v3296 = vpop.f32.mrb[0].mxu0
        %v3297 = vadd.f32 0.0, %v3296
        %v3298 = vpop.f32.mrb[0].mxu0
        %v3299 = vpop.f32.mrb[0].mxu0
        %v3300 = vadd.f32 0.0, %v3299
        %v3301 = vpop.f32.mrb[0].mxu0
        %3302 = vmatprep.mubr.bf16.mxu0 %v3011
        %3303 = vmatmul.mubr.bf16.gmra.mrb[0].mxu0 %v3010
        %v3304 = vpop.f32.mrb[0].mxu0
        %v3305 = vadd.f32 0.0, %v3304
        %v3306 = vpop.f32.mrb[0].mxu0
        %v3307 = vpop.f32.mrb[0].mxu0
        %v3308 = vadd.f32 0.0, %v3307
        %v3309 = vpop.f32.mrb[0].mxu0
        %3310 = vmatprep.mubr.bf16.mxu0 %v3015
        %3311 = vmatmul.mubr.bf16.gmra.mrb[0].mxu0 %v3014
        %v3312 = vpop.f32.mrb[0].mxu0
        %v3313 = vadd.f32 0.0, %v3312
        %v3314 = vpop.f32.mrb[0].mxu0
        %v3315 = vpop.f32.mrb[0].mxu0
        %v3316 = vadd.f32 0.0, %v3315
        %v3317 = vpop.f32.mrb[0].mxu0
        %3318 = vmatprep.mubr.bf16.mxu0 %v3019
        %3319 = vmatmul.mubr.bf16.gmra.mrb[0].mxu0 %v3018
        %v3320 = vpop.f32.mrb[0].mxu0
        %v3321 = vadd.f32 0.0, %v3320
        %v3322 = vpop.f32.mrb[0].mxu0
        %v3323 = vpop.f32.mrb[0].mxu0
        %v3324 = vadd.f32 0.0, %v3323
        %v3325 = vpop.f32.mrb[0].mxu0
        %3326 = vmatprep.mubr.bf16.mxu0 %v3023
        %3327 = vmatmul.mubr.bf16.gmra.mrb[0].mxu0 %v3022
        %v3328 = vpop.f32.mrb[0].mxu0
        %v3329 = vadd.f32 0.0, %v3328
        %v3330 = vpop.f32.mrb[0].mxu0
        %v3331 = vpop.f32.mrb[0].mxu0
        %v3332 = vadd.f32 0.0, %v3331
        %v3333 = vpop.f32.mrb[0].mxu0
        %3334 = vmatprep.mubr.bf16.mxu0 %v3027
        %3335 = vmatmul.mubr.bf16.gmra.mrb[0].mxu0 %v3026
        %v3336 = vpop.f32.mrb[0].mxu0
        %v3337 = vadd.f32 0.0, %v3336
        %v3338 = vpop.f32.mrb[0].mxu0
        %v3339 = vpop.f32.mrb[0].mxu0
        %v3340 = vadd.f32 0.0, %v3339
        %v3341 = vpop.f32.mrb[0].mxu0
        %3342 = vmatprep.mubr.bf16.mxu0 %v3031
        %3343 = vmatmul.mubr.bf16.gmra.mrb[0].mxu0 %v3030
        %v3344 = vpop.f32.mrb[0].mxu0
        %v3345 = vadd.f32 0.0, %v3344
        %v3346 = vpop.f32.mrb[0].mxu0
        %v3347 = vpop.f32.mrb[0].mxu0
        %v3348 = vadd.f32 0.0, %v3347
        %v3349 = vpop.f32.mrb[0].mxu0
        %3350 = vmatprep.mubr.bf16.mxu0 %v3035
        %3351 = vmatmul.mubr.bf16.gmra.mrb[0].mxu0 %v3034
        %v3352 = vpop.f32.mrb[0].mxu0
        %v3353 = vadd.f32 0.0, %v3352
        %v3354 = vpop.f32.mrb[0].mxu0
        %v3355 = vpop.f32.mrb[0].mxu0
        %v3356 = vadd.f32 0.0, %v3355
        %v3357 = vpop.f32.mrb[0].mxu0
        %3358 = vmatprep.mubr.bf16.mxu0 %v3039
        %3359 = vmatmul.mubr.bf16.gmra.mrb[0].mxu0 %v3038
        %v3360 = vpop.f32.mrb[0].mxu0
        %v3361 = vadd.f32 0.0, %v3360
        %v3362 = vpop.f32.mrb[0].mxu0
        %v3363 = vpop.f32.mrb[0].mxu0
        %v3364 = vadd.f32 0.0, %v3363
        %v3365 = vpop.f32.mrb[0].mxu0
        %3366 = vmatprep.mubr.bf16.mxu0 %v3043
        %3367 = vmatmul.mubr.bf16.gmra.mrb[0].mxu0 %v3042
        %v3368 = vpop.f32.mrb[0].mxu0
        %v3369 = vadd.f32 0.0, %v3368
        %v3370 = vpop.f32.mrb[0].mxu0
        %v3371 = vpop.f32.mrb[0].mxu0
        %v3372 = vadd.f32 0.0, %v3371
        %v3373 = vpop.f32.mrb[0].mxu0
        %3374 = vmatprep.mubr.bf16.mxu0 %v3047
        %3375 = vmatmul.mubr.bf16.gmra.mrb[0].mxu0 %v3046
        %v3376 = vpop.f32.mrb[0].mxu0
        %v3377 = vadd.f32 0.0, %v3376
        %v3378 = vpop.f32.mrb[0].mxu0
        %v3379 = vpop.f32.mrb[0].mxu0
        %v3380 = vadd.f32 0.0, %v3379
        %v3381 = vpop.f32.mrb[0].mxu0
        %3382 = vmatprep.mubr.bf16.mxu0 %v3051
        %3383 = vmatmul.mubr.bf16.gmra.mrb[0].mxu0 %v3050
        %v3384 = vpop.f32.mrb[0].mxu0
        %v3385 = vadd.f32 0.0, %v3384
        %v3386 = vpop.f32.mrb[0].mxu0
        %v3387 = vpop.f32.mrb[0].mxu0
        %v3388 = vadd.f32 0.0, %v3387
        %v3389 = vpop.f32.mrb[0].mxu0
        %3390 = vmatprep.mubr.bf16.mxu0 %v3055
        %3391 = vmatmul.mubr.bf16.gmra.mrb[0].mxu0 %v3054
        %v3392 = vpop.f32.mrb[0].mxu0
        %v3393 = vadd.f32 0.0, %v3392
        %v3394 = vpop.f32.mrb[0].mxu0
        %v3395 = vpop.f32.mrb[0].mxu0
        %v3396 = vadd.f32 0.0, %v3395
        %v3397 = vpop.f32.mrb[0].mxu0
        %3398 = vmatprep.mubr.bf16.mxu0 %v3059
        %3399 = vmatmul.mubr.bf16.gmra.mrb[0].mxu0 %v3058
        %v3400 = vpop.f32.mrb[0].mxu0
        %v3401 = vadd.f32 0.0, %v3400
        %v3402 = vpop.f32.mrb[0].mxu0
        %v3403 = vpop.f32.mrb[0].mxu0
        %v3404 = vadd.f32 0.0, %v3403
        %v3405 = vpop.f32.mrb[0].mxu0
        %3406 = vmatprep.mubr.bf16.mxu0 %v3063
        %3407 = vmatmul.mubr.bf16.gmra.mrb[0].mxu0 %v3062
        %v3408 = vpop.f32.mrb[0].mxu0
        %v3409 = vadd.f32 0.0, %v3408
        %v3410 = vpop.f32.mrb[0].mxu0
        %v3411 = vpop.f32.mrb[0].mxu0
        %v3412 = vadd.f32 0.0, %v3411
        %v3413 = vpop.f32.mrb[0].mxu0
        %3414 = vmatprep.mubr.bf16.mxu0 %v3067
        %3415 = vmatmul.mubr.bf16.gmra.mrb[0].mxu0 %v3066
        %v3416 = vpop.f32.mrb[0].mxu0
        %v3417 = vadd.f32 0.0, %v3416
        %v3418 = vpop.f32.mrb[0].mxu0
        %v3419 = vpop.f32.mrb[0].mxu0
        %v3420 = vadd.f32 0.0, %v3419
        %v3421 = vpop.f32.mrb[0].mxu0
        %3422 = vdwg.mxu0
        %3423 = vmatprep.subr.bf16.mxu0 0
        %3424 = vmatpush1.bf16.msra.mxu0 %v3214
        %3425 = vmatprep.subr.bf16.mxu0 0
        %3426 = vmatpush1.bf16.msra.mxu0 %v3215
        %3427 = vmatprep.subr.bf16.mxu0 0
        %3428 = vmatpush1.bf16.msra.mxu0 %v3216
        %3429 = vmatprep.subr.bf16.mxu0 0
        %3430 = vmatpush1.bf16.msra.mxu0 %v3217
        %3431 = vmatprep.subr.bf16.mxu0 0
        %3432 = vmatpush1.bf16.msra.mxu0 %v3218
        %3433 = vmatprep.subr.bf16.mxu0 0
        %3434 = vmatpush1.bf16.msra.mxu0 %v3219
        %3435 = vmatprep.subr.bf16.mxu0 0
        %3436 = vmatpush1.bf16.msra.mxu0 %v3220
        %3437 = vmatprep.subr.bf16.mxu0 0
        %3438 = vmatpush1.bf16.msra.mxu0 %v3221
        %3439 = vmatprep.subr.bf16.mxu0 0
        %3440 = vmatpush1.bf16.msra.mxu0 %v3222
        %3441 = vmatprep.subr.bf16.mxu0 0
        %3442 = vmatpush1.bf16.msra.mxu0 %v3223
        %3443 = vmatprep.subr.bf16.mxu0 0
        %3444 = vmatpush1.bf16.msra.mxu0 %v3224
        %3445 = vmatprep.subr.bf16.mxu0 0
        %3446 = vmatpush1.bf16.msra.mxu0 %v3225
        %3447 = vmatprep.subr.bf16.mxu0 0
        %3448 = vmatpush1.bf16.msra.mxu0 %v3226
        %3449 = vmatprep.subr.bf16.mxu0 0
        %3450 = vmatpush1.bf16.msra.mxu0 %v3227
        %3451 = vmatprep.subr.bf16.mxu0 0
        %3452 = vmatpush1.bf16.msra.mxu0 %v3228
        %3453 = vmatprep.subr.bf16.mxu0 0
        %3454 = vmatpush1.bf16.msra.mxu0 %v3229
        %3455 = vmatprep.mubr.bf16.mxu0 %v3009
        %3456 = vmatmul.mubr.bf16.gmra.mrb[0].mxu0 %v3008
        %v3457 = vpop.f32.mrb[0].mxu0
        %v3458 = vadd.f32 %v3297, %v3457
        %v3459 = vpop.f32.mrb[0].mxu0
        %v3460 = vpop.f32.mrb[0].mxu0
        %v3461 = vadd.f32 %v3300, %v3460
        %v3462 = vpop.f32.mrb[0].mxu0
        %3463 = vmatprep.mubr.bf16.mxu0 %v3013
        %3464 = vmatmul.mubr.bf16.gmra.mrb[0].mxu0 %v3012
        %v3465 = vpop.f32.mrb[0].mxu0
        %v3466 = vadd.f32 %v3305, %v3465
        %v3467 = vpop.f32.mrb[0].mxu0
        %v3468 = vpop.f32.mrb[0].mxu0
        %v3469 = vadd.f32 %v3308, %v3468
        %v3470 = vpop.f32.mrb[0].mxu0
        %3471 = vmatprep.mubr.bf16.mxu0 %v3017
        %3472 = vmatmul.mubr.bf16.gmra.mrb[0].mxu0 %v3016
        %v3473 = vpop.f32.mrb[0].mxu0
        %v3474 = vadd.f32 %v3313, %v3473
        %v3475 = vpop.f32.mrb[0].mxu0
        %v3476 = vpop.f32.mrb[0].mxu0
        %v3477 = vadd.f32 %v3316, %v3476
        %v3478 = vpop.f32.mrb[0].mxu0
        %3479 = vmatprep.mubr.bf16.mxu0 %v3021
        %3480 = vmatmul.mubr.bf16.gmra.mrb[0].mxu0 %v3020
        %v3481 = vpop.f32.mrb[0].mxu0
        %v3482 = vadd.f32 %v3321, %v3481
        %v3483 = vpop.f32.mrb[0].mxu0
        %v3484 = vpop.f32.mrb[0].mxu0
        %v3485 = vadd.f32 %v3324, %v3484
        %v3486 = vpop.f32.mrb[0].mxu0
        %3487 = vmatprep.mubr.bf16.mxu0 %v3025
        %3488 = vmatmul.mubr.bf16.gmra.mrb[0].mxu0 %v3024
        %v3489 = vpop.f32.mrb[0].mxu0
        %v3490 = vadd.f32 %v3329, %v3489
        %v3491 = vpop.f32.mrb[0].mxu0
        %v3492 = vpop.f32.mrb[0].mxu0
        %v3493 = vadd.f32 %v3332, %v3492
        %v3494 = vpop.f32.mrb[0].mxu0
        %3495 = vmatprep.mubr.bf16.mxu0 %v3029
        %3496 = vmatmul.mubr.bf16.gmra.mrb[0].mxu0 %v3028
        %v3497 = vpop.f32.mrb[0].mxu0
        %v3498 = vadd.f32 %v3337, %v3497
        %v3499 = vpop.f32.mrb[0].mxu0
        %v3500 = vpop.f32.mrb[0].mxu0
        %v3501 = vadd.f32 %v3340, %v3500
        %v3502 = vpop.f32.mrb[0].mxu0
        %3503 = vmatprep.mubr.bf16.mxu0 %v3033
        %3504 = vmatmul.mubr.bf16.gmra.mrb[0].mxu0 %v3032
        %v3505 = vpop.f32.mrb[0].mxu0
        %v3506 = vadd.f32 %v3345, %v3505
        %v3507 = vpop.f32.mrb[0].mxu0
        %v3508 = vpop.f32.mrb[0].mxu0
        %v3509 = vadd.f32 %v3348, %v3508
        %v3510 = vpop.f32.mrb[0].mxu0
        %3511 = vmatprep.mubr.bf16.mxu0 %v3037
        %3512 = vmatmul.mubr.bf16.gmra.mrb[0].mxu0 %v3036
        %v3513 = vpop.f32.mrb[0].mxu0
        %v3514 = vadd.f32 %v3353, %v3513
        %v3515 = vpop.f32.mrb[0].mxu0
        %v3516 = vpop.f32.mrb[0].mxu0
        %v3517 = vadd.f32 %v3356, %v3516
        %v3518 = vpop.f32.mrb[0].mxu0
        %3519 = vmatprep.mubr.bf16.mxu0 %v3041
        %3520 = vmatmul.mubr.bf16.gmra.mrb[0].mxu0 %v3040
        %v3521 = vpop.f32.mrb[0].mxu0
        %v3522 = vadd.f32 %v3361, %v3521
        %v3523 = vpop.f32.mrb[0].mxu0
        %v3524 = vpop.f32.mrb[0].mxu0
        %v3525 = vadd.f32 %v3364, %v3524
        %v3526 = vpop.f32.mrb[0].mxu0
        %3527 = vmatprep.mubr.bf16.mxu0 %v3045
        %3528 = vmatmul.mubr.bf16.gmra.mrb[0].mxu0 %v3044
        %v3529 = vpop.f32.mrb[0].mxu0
        %v3530 = vadd.f32 %v3369, %v3529
        %v3531 = vpop.f32.mrb[0].mxu0
        %v3532 = vpop.f32.mrb[0].mxu0
        %v3533 = vadd.f32 %v3372, %v3532
        %v3534 = vpop.f32.mrb[0].mxu0
        %3535 = vmatprep.mubr.bf16.mxu0 %v3049
        %3536 = vmatmul.mubr.bf16.gmra.mrb[0].mxu0 %v3048
        %v3537 = vpop.f32.mrb[0].mxu0
        %v3538 = vadd.f32 %v3377, %v3537
        %v3539 = vpop.f32.mrb[0].mxu0
        %v3540 = vpop.f32.mrb[0].mxu0
        %v3541 = vadd.f32 %v3380, %v3540
        %v3542 = vpop.f32.mrb[0].mxu0
        %3543 = vmatprep.mubr.bf16.mxu0 %v3053
        %3544 = vmatmul.mubr.bf16.gmra.mrb[0].mxu0 %v3052
        %v3545 = vpop.f32.mrb[0].mxu0
        %v3546 = vadd.f32 %v3385, %v3545
        %v3547 = vpop.f32.mrb[0].mxu0
        %v3548 = vpop.f32.mrb[0].mxu0
        %v3549 = vadd.f32 %v3388, %v3548
        %v3550 = vpop.f32.mrb[0].mxu0
        %3551 = vmatprep.mubr.bf16.mxu0 %v3057
        %3552 = vmatmul.mubr.bf16.gmra.mrb[0].mxu0 %v3056
        %v3553 = vpop.f32.mrb[0].mxu0
        %v3554 = vadd.f32 %v3393, %v3553
        %v3555 = vpop.f32.mrb[0].mxu0
        %v3556 = vpop.f32.mrb[0].mxu0
        %v3557 = vadd.f32 %v3396, %v3556
        %v3558 = vpop.f32.mrb[0].mxu0
        %3559 = vmatprep.mubr.bf16.mxu0 %v3061
        %3560 = vmatmul.mubr.bf16.gmra.mrb[0].mxu0 %v3060
        %v3561 = vpop.f32.mrb[0].mxu0
        %v3562 = vadd.f32 %v3401, %v3561
        %v3563 = vpop.f32.mrb[0].mxu0
        %v3564 = vpop.f32.mrb[0].mxu0
        %v3565 = vadd.f32 %v3404, %v3564
        %v3566 = vpop.f32.mrb[0].mxu0
        %3567 = vmatprep.mubr.bf16.mxu0 %v3065
        %3568 = vmatmul.mubr.bf16.gmra.mrb[0].mxu0 %v3064
        %v3569 = vpop.f32.mrb[0].mxu0
        %v3570 = vadd.f32 %v3409, %v3569
        %v3571 = vpop.f32.mrb[0].mxu0
        %v3572 = vpop.f32.mrb[0].mxu0
        %v3573 = vadd.f32 %v3412, %v3572
        %v3574 = vpop.f32.mrb[0].mxu0
        %3575 = vmatprep.mubr.bf16.mxu0 %v3069
        %3576 = vmatmul.mubr.bf16.gmra.mrb[0].mxu0 %v3068
        %v3577 = vpop.f32.mrb[0].mxu0
        %v3578 = vadd.f32 %v3417, %v3577
        %v3579 = vpop.f32.mrb[0].mxu0
        %v3580 = vpop.f32.mrb[0].mxu0
        %v3581 = vadd.f32 %v3420, %v3580
        %v3582 = vpop.f32.mrb[0].mxu0
        %3583 = vdwg.mxu0
        %v3584 = vadd.f32 %v2974, %v3458
        %v3585 = vadd.f32 %v2975, %v3461
        %v3586 = vadd.f32 %v2976, %v3466
        %v3587 = vadd.f32 %v2977, %v3469
        %v3588 = vadd.f32 %v2978, %v3474
        %v3589 = vadd.f32 %v2979, %v3477
        %v3590 = vadd.f32 %v2980, %v3482
        %v3591 = vadd.f32 %v2981, %v3485
        %v3592 = vadd.f32 %v2982, %v3490
        %v3593 = vadd.f32 %v2983, %v3493
        %v3594 = vadd.f32 %v2984, %v3498
        %v3595 = vadd.f32 %v2985, %v3501
        %v3596 = vadd.f32 %v2986, %v3506
        %v3597 = vadd.f32 %v2987, %v3509
        %v3598 = vadd.f32 %v2988, %v3514
        %v3599 = vadd.f32 %v2989, %v3517
        %v3600 = vadd.f32 %v2990, %v3522
        %v3601 = vadd.f32 %v2991, %v3525
        %v3602 = vadd.f32 %v2992, %v3530
        %v3603 = vadd.f32 %v2993, %v3533
        %v3604 = vadd.f32 %v2994, %v3538
        %v3605 = vadd.f32 %v2995, %v3541
        %v3606 = vadd.f32 %v2996, %v3546
        %v3607 = vadd.f32 %v2997, %v3549
        %v3608 = vadd.f32 %v2998, %v3554
        %v3609 = vadd.f32 %v2999, %v3557
        %v3610 = vadd.f32 %v3000, %v3562
        %v3611 = vadd.f32 %v3001, %v3565
        %v3612 = vadd.f32 %v3002, %v3570
        %v3613 = vadd.f32 %v3003, %v3573
        %v3614 = vadd.f32 %v3004, %v3578
        %v3615 = vadd.f32 %v3005, %v3581
        %3616 = vst [vmem:[#allocation5] sm:$0xff] %v3584
        %3617 = vst [vmem:[#allocation5 + $0x8] sm:$0xff] %v3585
        %3618 = vst [vmem:[#allocation5 + $0x10] sm:$0xff] %v3586
        %3619 = vst [vmem:[#allocation5 + $0x18] sm:$0xff] %v3587
        %3620 = vst [vmem:[#allocation5 + $0x20] sm:$0xff] %v3588
        %3621 = vst [vmem:[#allocation5 + $0x28] sm:$0xff] %v3589
        %3622 = vst [vmem:[#allocation5 + $0x30] sm:$0xff] %v3590
        %3623 = vst [vmem:[#allocation5 + $0x38] sm:$0xff] %v3591
        %3624 = vst [vmem:[#allocation5 + $0x40] sm:$0xff] %v3592
        %3625 = vst [vmem:[#allocation5 + $0x48] sm:$0xff] %v3593
        %3626 = vst [vmem:[#allocation5 + $0x50] sm:$0xff] %v3594
        %3627 = vst [vmem:[#allocation5 + $0x58] sm:$0xff] %v3595
        %3628 = vst [vmem:[#allocation5 + $0x60] sm:$0xff] %v3596
        %3629 = vst [vmem:[#allocation5 + $0x68] sm:$0xff] %v3597
        %3630 = vst [vmem:[#allocation5 + $0x70] sm:$0xff] %v3598
        %3631 = vst [vmem:[#allocation5 + $0x78] sm:$0xff] %v3599
        %3632 = vst [vmem:[#allocation5 + $0x80] sm:$0xff] %v3600
        %3633 = vst [vmem:[#allocation5 + $0x88] sm:$0xff] %v3601
        %3634 = vst [vmem:[#allocation5 + $0x90] sm:$0xff] %v3602
        %3635 = vst [vmem:[#allocation5 + $0x98] sm:$0xff] %v3603
        %3636 = vst [vmem:[#allocation5 + $0xa0] sm:$0xff] %v3604
        %3637 = vst [vmem:[#allocation5 + $0xa8] sm:$0xff] %v3605
        %3638 = vst [vmem:[#allocation5 + $0xb0] sm:$0xff] %v3606
        %3639 = vst [vmem:[#allocation5 + $0xb8] sm:$0xff] %v3607
        %3640 = vst [vmem:[#allocation5 + $0xc0] sm:$0xff] %v3608
        %3641 = vst [vmem:[#allocation5 + $0xc8] sm:$0xff] %v3609
        %3642 = vst [vmem:[#allocation5 + $0xd0] sm:$0xff] %v3610
        %3643 = vst [vmem:[#allocation5 + $0xd8] sm:$0xff] %v3611
        %3644 = vst [vmem:[#allocation5 + $0xe0] sm:$0xff] %v3612
        %3645 = vst [vmem:[#allocation5 + $0xe8] sm:$0xff] %v3613
        %3646 = vst [vmem:[#allocation5 + $0xf0] sm:$0xff] %v3614
        %3647 = vst [vmem:[#allocation5 + $0xf8] sm:$0xff] %v3615
        %3648 = vst.msk [vmem:[#allocation3] sm:$0xff] %vm2749, %v1821
        %3649 = vst.msk [vmem:[#allocation3 + $0x8] sm:$0xff] %vm2749, %v1822
        %3650 = vst.msk [vmem:[#allocation3 + $0x10] sm:$0xff] %vm2749, %v1823
        %3651 = vst.msk [vmem:[#allocation3 + $0x18] sm:$0xff] %vm2749, %v1824
        %3652 = vst.msk [vmem:[#allocation3 + $0x20] sm:$0xff] %vm2749, %v1825
        %3653 = vst.msk [vmem:[#allocation3 + $0x28] sm:$0xff] %vm2749, %v1826
        %3654 = vst.msk [vmem:[#allocation3 + $0x30] sm:$0xff] %vm2749, %v1827
        %3655 = vst.msk [vmem:[#allocation3 + $0x38] sm:$0xff] %vm2749, %v1828
        %3656 = vst.msk [vmem:[#allocation3 + $0x40] sm:$0xff] %vm2749, %v1829
        %3657 = vst.msk [vmem:[#allocation3 + $0x48] sm:$0xff] %vm2749, %v1830
        %3658 = vst.msk [vmem:[#allocation3 + $0x50] sm:$0xff] %vm2749, %v1831
        %3659 = vst.msk [vmem:[#allocation3 + $0x58] sm:$0xff] %vm2749, %v1832
        %3660 = vst.msk [vmem:[#allocation3 + $0x60] sm:$0xff] %vm2749, %v1833
        %3661 = vst.msk [vmem:[#allocation3 + $0x68] sm:$0xff] %vm2749, %v1834
        %3662 = vst.msk [vmem:[#allocation3 + $0x70] sm:$0xff] %vm2749, %v1835
        %3663 = vst.msk [vmem:[#allocation3 + $0x78] sm:$0xff] %vm2749, %v1836
        %3664 = vst.msk [vmem:[#allocation3 + $0x80] sm:$0xff] %vm2749, %v1837
        %3665 = vst.msk [vmem:[#allocation3 + $0x88] sm:$0xff] %vm2749, %v1838
        %3666 = vst.msk [vmem:[#allocation3 + $0x90] sm:$0xff] %vm2749, %v1839
        %3667 = vst.msk [vmem:[#allocation3 + $0x98] sm:$0xff] %vm2749, %v1840
        %3668 = vst.msk [vmem:[#allocation3 + $0xa0] sm:$0xff] %vm2749, %v1841
        %3669 = vst.msk [vmem:[#allocation3 + $0xa8] sm:$0xff] %vm2749, %v1842
        %3670 = vst.msk [vmem:[#allocation3 + $0xb0] sm:$0xff] %vm2749, %v1843
        %3671 = vst.msk [vmem:[#allocation3 + $0xb8] sm:$0xff] %vm2749, %v1844
        %3672 = vst.msk [vmem:[#allocation3 + $0xc0] sm:$0xff] %vm2749, %v1845
        %3673 = vst.msk [vmem:[#allocation3 + $0xc8] sm:$0xff] %vm2749, %v1846
        %3674 = vst.msk [vmem:[#allocation3 + $0xd0] sm:$0xff] %vm2749, %v1847
        %3675 = vst.msk [vmem:[#allocation3 + $0xd8] sm:$0xff] %vm2749, %v1848
        %3676 = vst.msk [vmem:[#allocation3 + $0xe0] sm:$0xff] %vm2749, %v1849
        %3677 = vst.msk [vmem:[#allocation3 + $0xe8] sm:$0xff] %vm2749, %v1850
        %3678 = vst.msk [vmem:[#allocation3 + $0xf0] sm:$0xff] %vm2749, %v1851
        %3679 = vst.msk [vmem:[#allocation3 + $0xf8] sm:$0xff] %vm2749, %v1852
        // Predicated region
        $region76: #{nl_block_nd_embedded.3} parent=66 // pred_check
          %p3680 = pneg %p423
        $region77: #{nl_block_nd_embedded.3} parent=66 // pred_check_branch
          %3682 = sbr.rel (%p3680) target = $region79
        $region78: #{nl_block_nd_embedded.3} parent=66 // pred_region
          %v3683 = vld [vmem:[#allocation5] sm:$0xff]
          %v3684 = vld [vmem:[#allocation5 + $0x8] sm:$0xff]
          %v3685 = vld [vmem:[#allocation5 + $0x10] sm:$0xff]
          %v3686 = vld [vmem:[#allocation5 + $0x18] sm:$0xff]
          %v3687 = vld [vmem:[#allocation5 + $0x20] sm:$0xff]
          %v3688 = vld [vmem:[#allocation5 + $0x28] sm:$0xff]
          %v3689 = vld [vmem:[#allocation5 + $0x30] sm:$0xff]
          %v3690 = vld [vmem:[#allocation5 + $0x38] sm:$0xff]
          %v3691 = vld [vmem:[#allocation5 + $0x40] sm:$0xff]
          %v3692 = vld [vmem:[#allocation5 + $0x48] sm:$0xff]
          %v3693 = vld [vmem:[#allocation5 + $0x50] sm:$0xff]
          %v3694 = vld [vmem:[#allocation5 + $0x58] sm:$0xff]
          %v3695 = vld [vmem:[#allocation5 + $0x60] sm:$0xff]
          %v3696 = vld [vmem:[#allocation5 + $0x68] sm:$0xff]
          %v3697 = vld [vmem:[#allocation5 + $0x70] sm:$0xff]
          %v3698 = vld [vmem:[#allocation5 + $0x78] sm:$0xff]
          %v3699 = vld [vmem:[#allocation5 + $0x80] sm:$0xff]
          %v3700 = vld [vmem:[#allocation5 + $0x88] sm:$0xff]
          %v3701 = vld [vmem:[#allocation5 + $0x90] sm:$0xff]
          %v3702 = vld [vmem:[#allocation5 + $0x98] sm:$0xff]
          %v3703 = vld [vmem:[#allocation5 + $0xa0] sm:$0xff]
          %v3704 = vld [vmem:[#allocation5 + $0xa8] sm:$0xff]
          %v3705 = vld [vmem:[#allocation5 + $0xb0] sm:$0xff]
          %v3706 = vld [vmem:[#allocation5 + $0xb8] sm:$0xff]
          %v3707 = vld [vmem:[#allocation5 + $0xc0] sm:$0xff]
          %v3708 = vld [vmem:[#allocation5 + $0xc8] sm:$0xff]
          %v3709 = vld [vmem:[#allocation5 + $0xd0] sm:$0xff]
          %v3710 = vld [vmem:[#allocation5 + $0xd8] sm:$0xff]
          %v3711 = vld [vmem:[#allocation5 + $0xe0] sm:$0xff]
          %v3712 = vld [vmem:[#allocation5 + $0xe8] sm:$0xff]
          %v3713 = vld [vmem:[#allocation5 + $0xf0] sm:$0xff]
          %v3714 = vld [vmem:[#allocation5 + $0xf8] sm:$0xff]
          %v3715 = vld [vmem:[#allocation4] sm:$0xff]
          %v3716 = vld [vmem:[#allocation4 + $0x8] sm:$0xff]
          %v3717 = vld [vmem:[#allocation4 + $0x10] sm:$0xff]
          %v3718 = vld [vmem:[#allocation4 + $0x18] sm:$0xff]
          %v3719 = vld [vmem:[#allocation4 + $0x20] sm:$0xff]
          %v3720 = vld [vmem:[#allocation4 + $0x28] sm:$0xff]
          %v3721 = vld [vmem:[#allocation4 + $0x30] sm:$0xff]
          %v3722 = vld [vmem:[#allocation4 + $0x38] sm:$0xff]
          %v3723 = vld [vmem:[#allocation4 + $0x40] sm:$0xff]
          %v3724 = vld [vmem:[#allocation4 + $0x48] sm:$0xff]
          %v3725 = vld [vmem:[#allocation4 + $0x50] sm:$0xff]
          %v3726 = vld [vmem:[#allocation4 + $0x58] sm:$0xff]
          %v3727 = vld [vmem:[#allocation4 + $0x60] sm:$0xff]
          %v3728 = vld [vmem:[#allocation4 + $0x68] sm:$0xff]
          %v3729 = vld [vmem:[#allocation4 + $0x70] sm:$0xff]
          %v3730 = vld [vmem:[#allocation4 + $0x78] sm:$0xff]
          %v3731 = vld [vmem:[#allocation4 + $0x80] sm:$0xff]
          %v3732 = vld [vmem:[#allocation4 + $0x88] sm:$0xff]
          %v3733 = vld [vmem:[#allocation4 + $0x90] sm:$0xff]
          %v3734 = vld [vmem:[#allocation4 + $0x98] sm:$0xff]
          %v3735 = vld [vmem:[#allocation4 + $0xa0] sm:$0xff]
          %v3736 = vld [vmem:[#allocation4 + $0xa8] sm:$0xff]
          %v3737 = vld [vmem:[#allocation4 + $0xb0] sm:$0xff]
          %v3738 = vld [vmem:[#allocation4 + $0xb8] sm:$0xff]
          %v3739 = vld [vmem:[#allocation4 + $0xc0] sm:$0xff]
          %v3740 = vld [vmem:[#allocation4 + $0xc8] sm:$0xff]
          %v3741 = vld [vmem:[#allocation4 + $0xd0] sm:$0xff]
          %v3742 = vld [vmem:[#allocation4 + $0xd8] sm:$0xff]
          %v3743 = vld [vmem:[#allocation4 + $0xe0] sm:$0xff]
          %v3744 = vld [vmem:[#allocation4 + $0xe8] sm:$0xff]
          %v3745 = vld [vmem:[#allocation4 + $0xf0] sm:$0xff]
          %v3746 = vld [vmem:[#allocation4 + $0xf8] sm:$0xff]
          %v3747 = vrcp.pop %v3715
          %v3748 = vrcp.pop %v3716
          %v3749 = vrcp.pop %v3717
          %v3750 = vrcp.pop %v3718
          %v3751 = vrcp.pop %v3719
          %v3752 = vrcp.pop %v3720
          %v3753 = vrcp.pop %v3721
          %v3754 = vrcp.pop %v3722
          %v3755 = vrcp.pop %v3723
          %v3756 = vrcp.pop %v3724
          %v3757 = vrcp.pop %v3725
          %v3758 = vrcp.pop %v3726
          %v3759 = vrcp.pop %v3727
          %v3760 = vrcp.pop %v3728
          %v3761 = vrcp.pop %v3729
          %v3762 = vrcp.pop %v3730
          %v3763 = vrcp.pop %v3731
          %v3764 = vrcp.pop %v3732
          %v3765 = vrcp.pop %v3733
          %v3766 = vrcp.pop %v3734
          %v3767 = vrcp.pop %v3735
          %v3768 = vrcp.pop %v3736
          %v3769 = vrcp.pop %v3737
          %v3770 = vrcp.pop %v3738
          %v3771 = vrcp.pop %v3739
          %v3772 = vrcp.pop %v3740
          %v3773 = vrcp.pop %v3741
          %v3774 = vrcp.pop %v3742
          %v3775 = vrcp.pop %v3743
          %v3776 = vrcp.pop %v3744
          %v3777 = vrcp.pop %v3745
          %v3778 = vrcp.pop %v3746
          %3780 = vset.pattern.permute.xlu0 0
          %3781 = vperm.xlu0 %3780, %v3747
          %v3782 = vpop.permute.xlu0 %3781
          %3785 = vset.pattern.permute.xlu0 0
          %3786 = vperm.xlu0 %3785, %v3748
          %v3787 = vpop.permute.xlu0 %3786
          %3790 = vset.pattern.permute.xlu0 0
          %3791 = vperm.xlu0 %3790, %v3749
          %v3792 = vpop.permute.xlu0 %3791
          %3795 = vset.pattern.permute.xlu0 0
          %3796 = vperm.xlu0 %3795, %v3750
          %v3797 = vpop.permute.xlu0 %3796
          %3800 = vset.pattern.permute.xlu0 0
          %3801 = vperm.xlu0 %3800, %v3751
          %v3802 = vpop.permute.xlu0 %3801
          %3805 = vset.pattern.permute.xlu0 0
          %3806 = vperm.xlu0 %3805, %v3752
          %v3807 = vpop.permute.xlu0 %3806
          %3810 = vset.pattern.permute.xlu0 0
          %3811 = vperm.xlu0 %3810, %v3753
          %v3812 = vpop.permute.xlu0 %3811
          %3815 = vset.pattern.permute.xlu0 0
          %3816 = vperm.xlu0 %3815, %v3754
          %v3817 = vpop.permute.xlu0 %3816
          %3820 = vset.pattern.permute.xlu0 0
          %3821 = vperm.xlu0 %3820, %v3755
          %v3822 = vpop.permute.xlu0 %3821
          %3825 = vset.pattern.permute.xlu0 0
          %3826 = vperm.xlu0 %3825, %v3756
          %v3827 = vpop.permute.xlu0 %3826
          %3830 = vset.pattern.permute.xlu0 0
          %3831 = vperm.xlu0 %3830, %v3757
          %v3832 = vpop.permute.xlu0 %3831
          %3835 = vset.pattern.permute.xlu0 0
          %3836 = vperm.xlu0 %3835, %v3758
          %v3837 = vpop.permute.xlu0 %3836
          %3840 = vset.pattern.permute.xlu0 0
          %3841 = vperm.xlu0 %3840, %v3759
          %v3842 = vpop.permute.xlu0 %3841
          %3845 = vset.pattern.permute.xlu0 0
          %3846 = vperm.xlu0 %3845, %v3760
          %v3847 = vpop.permute.xlu0 %3846
          %3850 = vset.pattern.permute.xlu0 0
          %3851 = vperm.xlu0 %3850, %v3761
          %v3852 = vpop.permute.xlu0 %3851
          %3855 = vset.pattern.permute.xlu0 0
          %3856 = vperm.xlu0 %3855, %v3762
          %v3857 = vpop.permute.xlu0 %3856
          %3860 = vset.pattern.permute.xlu0 0
          %3861 = vperm.xlu0 %3860, %v3763
          %v3862 = vpop.permute.xlu0 %3861
          %3865 = vset.pattern.permute.xlu0 0
          %3866 = vperm.xlu0 %3865, %v3764
          %v3867 = vpop.permute.xlu0 %3866
          %3870 = vset.pattern.permute.xlu0 0
          %3871 = vperm.xlu0 %3870, %v3765
          %v3872 = vpop.permute.xlu0 %3871
          %3875 = vset.pattern.permute.xlu0 0
          %3876 = vperm.xlu0 %3875, %v3766
          %v3877 = vpop.permute.xlu0 %3876
          %3880 = vset.pattern.permute.xlu0 0
          %3881 = vperm.xlu0 %3880, %v3767
          %v3882 = vpop.permute.xlu0 %3881
          %3885 = vset.pattern.permute.xlu0 0
          %3886 = vperm.xlu0 %3885, %v3768
          %v3887 = vpop.permute.xlu0 %3886
          %3890 = vset.pattern.permute.xlu0 0
          %3891 = vperm.xlu0 %3890, %v3769
          %v3892 = vpop.permute.xlu0 %3891
          %3895 = vset.pattern.permute.xlu0 0
          %3896 = vperm.xlu0 %3895, %v3770
          %v3897 = vpop.permute.xlu0 %3896
          %3900 = vset.pattern.permute.xlu0 0
          %3901 = vperm.xlu0 %3900, %v3771
          %v3902 = vpop.permute.xlu0 %3901
          %3905 = vset.pattern.permute.xlu0 0
          %3906 = vperm.xlu0 %3905, %v3772
          %v3907 = vpop.permute.xlu0 %3906
          %3910 = vset.pattern.permute.xlu0 0
          %3911 = vperm.xlu0 %3910, %v3773
          %v3912 = vpop.permute.xlu0 %3911
          %3915 = vset.pattern.permute.xlu0 0
          %3916 = vperm.xlu0 %3915, %v3774
          %v3917 = vpop.permute.xlu0 %3916
          %3920 = vset.pattern.permute.xlu0 0
          %3921 = vperm.xlu0 %3920, %v3775
          %v3922 = vpop.permute.xlu0 %3921
          %3925 = vset.pattern.permute.xlu0 0
          %3926 = vperm.xlu0 %3925, %v3776
          %v3927 = vpop.permute.xlu0 %3926
          %3930 = vset.pattern.permute.xlu0 0
          %3931 = vperm.xlu0 %3930, %v3777
          %v3932 = vpop.permute.xlu0 %3931
          %3935 = vset.pattern.permute.xlu0 0
          %3936 = vperm.xlu0 %3935, %v3778
          %v3937 = vpop.permute.xlu0 %3936
          %v3939 = vmul.f32 %v3683, %v3782
          %v3940 = vmul.f32 %v3684, %v3787
          %v3941 = vmul.f32 %v3685, %v3792
          %v3942 = vmul.f32 %v3686, %v3797
          %v3943 = vmul.f32 %v3687, %v3802
          %v3944 = vmul.f32 %v3688, %v3807
          %v3945 = vmul.f32 %v3689, %v3812
          %v3946 = vmul.f32 %v3690, %v3817
          %v3947 = vmul.f32 %v3691, %v3822
          %v3948 = vmul.f32 %v3692, %v3827
          %v3949 = vmul.f32 %v3693, %v3832
          %v3950 = vmul.f32 %v3694, %v3837
          %v3951 = vmul.f32 %v3695, %v3842
          %v3952 = vmul.f32 %v3696, %v3847
          %v3953 = vmul.f32 %v3697, %v3852
          %v3954 = vmul.f32 %v3698, %v3857
          %v3955 = vmul.f32 %v3699, %v3862
          %v3956 = vmul.f32 %v3700, %v3867
          %v3957 = vmul.f32 %v3701, %v3872
          %v3958 = vmul.f32 %v3702, %v3877
          %v3959 = vmul.f32 %v3703, %v3882
          %v3960 = vmul.f32 %v3704, %v3887
          %v3961 = vmul.f32 %v3705, %v3892
          %v3962 = vmul.f32 %v3706, %v3897
          %v3963 = vmul.f32 %v3707, %v3902
          %v3964 = vmul.f32 %v3708, %v3907
          %v3965 = vmul.f32 %v3709, %v3912
          %v3966 = vmul.f32 %v3710, %v3917
          %v3967 = vmul.f32 %v3711, %v3922
          %v3968 = vmul.f32 %v3712, %v3927
          %v3969 = vmul.f32 %v3713, %v3932
          %v3970 = vmul.f32 %v3714, %v3937
          %v3971 = vld [vmem:[%s5] sm:$0xf]
          %v3972 = vld [vmem:[%s5 + $0x4] sm:$0xf]
          %v3973 = vld [vmem:[%s5 + $0x8] sm:$0xf]
          %v3974 = vld [vmem:[%s5 + $0xc] sm:$0xf]
          %v3975 = vld [vmem:[%s5 + $0x10] sm:$0xf]
          %v3976 = vld [vmem:[%s5 + $0x14] sm:$0xf]
          %v3977 = vld [vmem:[%s5 + $0x18] sm:$0xf]
          %v3978 = vld [vmem:[%s5 + $0x1c] sm:$0xf]
          %v3979 = vld [vmem:[%s5 + $0x20] sm:$0xf]
          %v3980 = vld [vmem:[%s5 + $0x24] sm:$0xf]
          %v3981 = vld [vmem:[%s5 + $0x28] sm:$0xf]
          %v3982 = vld [vmem:[%s5 + $0x2c] sm:$0xf]
          %v3983 = vld [vmem:[%s5 + $0x30] sm:$0xf]
          %v3984 = vld [vmem:[%s5 + $0x34] sm:$0xf]
          %v3985 = vld [vmem:[%s5 + $0x38] sm:$0xf]
          %v3986 = vld [vmem:[%s5 + $0x3c] sm:$0xf]
          %v3987 = vpack.c.bf16 %v3940, %v3939
          %v3988 = vpack.c.bf16 %v3942, %v3941
          %v3989 = vpack.c.bf16 %v3944, %v3943
          %v3990 = vpack.c.bf16 %v3946, %v3945
          %v3991 = vpack.c.bf16 %v3948, %v3947
          %v3992 = vpack.c.bf16 %v3950, %v3949
          %v3993 = vpack.c.bf16 %v3952, %v3951
          %v3994 = vpack.c.bf16 %v3954, %v3953
          %v3995 = vpack.c.bf16 %v3956, %v3955
          %v3996 = vpack.c.bf16 %v3958, %v3957
          %v3997 = vpack.c.bf16 %v3960, %v3959
          %v3998 = vpack.c.bf16 %v3962, %v3961
          %v3999 = vpack.c.bf16 %v3964, %v3963
          %v4000 = vpack.c.bf16 %v3966, %v3965
          %v4001 = vpack.c.bf16 %v3968, %v3967
          %v4002 = vpack.c.bf16 %v3970, %v3969
          %v4003 = vld [vmem:[%s6] sm:$0xff]
          %v4004 = vld [vmem:[%s6 + $0x8] sm:$0xff]
          %v4005 = vld [vmem:[%s6 + $0x10] sm:$0xff]
          %v4006 = vld [vmem:[%s6 + $0x18] sm:$0xff]
          %v4007 = vld [vmem:[%s6 + $0x20] sm:$0xff]
          %v4008 = vld [vmem:[%s6 + $0x28] sm:$0xff]
          %v4009 = vld [vmem:[%s6 + $0x30] sm:$0xff]
          %v4010 = vld [vmem:[%s6 + $0x38] sm:$0xff]
          %v4011 = vld [vmem:[%s6 + $0x40] sm:$0xff]
          %v4012 = vld [vmem:[%s6 + $0x48] sm:$0xff]
          %v4013 = vld [vmem:[%s6 + $0x50] sm:$0xff]
          %v4014 = vld [vmem:[%s6 + $0x58] sm:$0xff]
          %v4015 = vld [vmem:[%s6 + $0x60] sm:$0xff]
          %v4016 = vld [vmem:[%s6 + $0x68] sm:$0xff]
          %v4017 = vld [vmem:[%s6 + $0x70] sm:$0xff]
          %v4018 = vld [vmem:[%s6 + $0x78] sm:$0xff]
          %4020 = vset.pattern.permute.xlu0 0
          %4021 = vperm.xlu0 %4020, %v4003
          %v4022 = vpop.permute.xlu0 %4021
          %4025 = vset.pattern.permute.xlu0 0
          %4026 = vperm.xlu0 %4025, %v4004
          %v4027 = vpop.permute.xlu0 %4026
          %4030 = vset.pattern.permute.xlu0 0
          %4031 = vperm.xlu0 %4030, %v4005
          %v4032 = vpop.permute.xlu0 %4031
          %4035 = vset.pattern.permute.xlu0 0
          %4036 = vperm.xlu0 %4035, %v4006
          %v4037 = vpop.permute.xlu0 %4036
          %4040 = vset.pattern.permute.xlu0 0
          %4041 = vperm.xlu0 %4040, %v4007
          %v4042 = vpop.permute.xlu0 %4041
          %4045 = vset.pattern.permute.xlu0 0
          %4046 = vperm.xlu0 %4045, %v4008
          %v4047 = vpop.permute.xlu0 %4046
          %4050 = vset.pattern.permute.xlu0 0
          %4051 = vperm.xlu0 %4050, %v4009
          %v4052 = vpop.permute.xlu0 %4051
          %4055 = vset.pattern.permute.xlu0 0
          %4056 = vperm.xlu0 %4055, %v4010
          %v4057 = vpop.permute.xlu0 %4056
          %4060 = vset.pattern.permute.xlu0 0
          %4061 = vperm.xlu0 %4060, %v4011
          %v4062 = vpop.permute.xlu0 %4061
          %4065 = vset.pattern.permute.xlu0 0
          %4066 = vperm.xlu0 %4065, %v4012
          %v4067 = vpop.permute.xlu0 %4066
          %4070 = vset.pattern.permute.xlu0 0
          %4071 = vperm.xlu0 %4070, %v4013
          %v4072 = vpop.permute.xlu0 %4071
          %4075 = vset.pattern.permute.xlu0 0
          %4076 = vperm.xlu0 %4075, %v4014
          %v4077 = vpop.permute.xlu0 %4076
          %4080 = vset.pattern.permute.xlu0 0
          %4081 = vperm.xlu0 %4080, %v4015
          %v4082 = vpop.permute.xlu0 %4081
          %4085 = vset.pattern.permute.xlu0 0
          %4086 = vperm.xlu0 %4085, %v4016
          %v4087 = vpop.permute.xlu0 %4086
          %4090 = vset.pattern.permute.xlu0 0
          %4091 = vperm.xlu0 %4090, %v4017
          %v4092 = vpop.permute.xlu0 %4091
          %4095 = vset.pattern.permute.xlu0 0
          %4096 = vperm.xlu0 %4095, %v4018
          %v4097 = vpop.permute.xlu0 %4096
          %v4115 = vunpack.c.l.b16 %v3971
          %v4116 = vunpack.c.l.b16 %v3972
          %v4117 = vunpack.c.l.b16 %v3973
          %v4118 = vunpack.c.l.b16 %v3974
          %v4119 = vunpack.c.l.b16 %v3975
          %v4120 = vunpack.c.l.b16 %v3976
          %v4121 = vunpack.c.l.b16 %v3977
          %v4122 = vunpack.c.l.b16 %v3978
          %v4123 = vunpack.c.l.b16 %v3979
          %v4124 = vunpack.c.l.b16 %v3980
          %v4125 = vunpack.c.l.b16 %v3981
          %v4126 = vunpack.c.l.b16 %v3982
          %v4127 = vunpack.c.l.b16 %v3983
          %v4128 = vunpack.c.l.b16 %v3984
          %v4129 = vunpack.c.l.b16 %v3985
          %v4130 = vunpack.c.l.b16 %v3986
          %v4131 = vpack.c.b16 %v4116, %v4115
          %v4132 = vpack.c.b16 %v4118, %v4117
          %v4133 = vpack.c.b16 %v4120, %v4119
          %v4134 = vpack.c.b16 %v4122, %v4121
          %v4135 = vpack.c.b16 %v4124, %v4123
          %v4136 = vpack.c.b16 %v4126, %v4125
          %v4137 = vpack.c.b16 %v4128, %v4127
          %v4138 = vpack.c.b16 %v4130, %v4129
          %4147 = vmatprep.subr.bf16.mxu0 0
          %4148 = vmatpush1.bf16.xpose.msra.mxu0 %v3987
          %4149 = vmatprep.subr.bf16.mxu0 0
          %4150 = vmatpush1.bf16.xpose.msra.mxu0 %v3988
          %4151 = vmatprep.subr.bf16.mxu0 0
          %4152 = vmatpush1.bf16.xpose.msra.mxu0 %v3989
          %4153 = vmatprep.subr.bf16.mxu0 0
          %4154 = vmatpush1.bf16.xpose.msra.mxu0 %v3990
          %4155 = vmatprep.subr.bf16.mxu0 0
          %4156 = vmatpush1.bf16.xpose.msra.mxu0 %v3991
          %4157 = vmatprep.subr.bf16.mxu0 0
          %4158 = vmatpush1.bf16.xpose.msra.mxu0 %v3992
          %4159 = vmatprep.subr.bf16.mxu0 0
          %4160 = vmatpush1.bf16.xpose.msra.mxu0 %v3993
          %4161 = vmatprep.subr.bf16.mxu0 0
          %4162 = vmatpush1.bf16.xpose.msra.mxu0 %v3994
          %4163 = vmatprep.subr.bf16.mxu0 0
          %4164 = vmatpush1.bf16.xpose.msra.mxu0 %v3995
          %4165 = vmatprep.subr.bf16.mxu0 0
          %4166 = vmatpush1.bf16.xpose.msra.mxu0 %v3996
          %4167 = vmatprep.subr.bf16.mxu0 0
          %4168 = vmatpush1.bf16.xpose.msra.mxu0 %v3997
          %4169 = vmatprep.subr.bf16.mxu0 0
          %4170 = vmatpush1.bf16.xpose.msra.mxu0 %v3998
          %4171 = vmatprep.subr.bf16.mxu0 0
          %4172 = vmatpush1.bf16.xpose.msra.mxu0 %v3999
          %4173 = vmatprep.subr.bf16.mxu0 0
          %4174 = vmatpush1.bf16.xpose.msra.mxu0 %v4000
          %4175 = vmatprep.subr.bf16.mxu0 0
          %4176 = vmatpush1.bf16.xpose.msra.mxu0 %v4001
          %4177 = vmatprep.subr.bf16.mxu0 0
          %4178 = vmatpush1.bf16.xpose.msra.mxu0 %v4002
          %4179 = vmatprep.mubr.bf16.mxu0 0
          %4180 = vmatmul.mubr.bf16.gmra.mrb[0].mxu0 %v4131
          %v4181 = vpop.f32.mrb[0].mxu0
          %v4182 = vadd.f32 %v4022, %v4181
          %v4183 = vpop.f32.mrb[0].mxu0
          %v4184 = vadd.f32 %v4022, %v4183
          %v4185 = vpop.f32.mrb[0].mxu0
          %v4186 = vadd.f32 %v4027, %v4185
          %v4187 = vpop.f32.mrb[0].mxu0
          %v4188 = vadd.f32 %v4027, %v4187
          %4189 = vmatprep.mubr.bf16.mxu0 0
          %4190 = vmatmul.mubr.bf16.gmra.mrb[0].mxu0 %v4132
          %v4191 = vpop.f32.mrb[0].mxu0
          %v4192 = vadd.f32 %v4032, %v4191
          %v4193 = vpop.f32.mrb[0].mxu0
          %v4194 = vadd.f32 %v4032, %v4193
          %v4195 = vpop.f32.mrb[0].mxu0
          %v4196 = vadd.f32 %v4037, %v4195
          %v4197 = vpop.f32.mrb[0].mxu0
          %v4198 = vadd.f32 %v4037, %v4197
          %4199 = vmatprep.mubr.bf16.mxu0 0
          %4200 = vmatmul.mubr.bf16.gmra.mrb[0].mxu0 %v4133
          %v4201 = vpop.f32.mrb[0].mxu0
          %v4202 = vadd.f32 %v4042, %v4201
          %v4203 = vpop.f32.mrb[0].mxu0
          %v4204 = vadd.f32 %v4042, %v4203
          %v4205 = vpop.f32.mrb[0].mxu0
          %v4206 = vadd.f32 %v4047, %v4205
          %v4207 = vpop.f32.mrb[0].mxu0
          %v4208 = vadd.f32 %v4047, %v4207
          %4209 = vmatprep.mubr.bf16.mxu0 0
          %4210 = vmatmul.mubr.bf16.gmra.mrb[0].mxu0 %v4134
          %v4211 = vpop.f32.mrb[0].mxu0
          %v4212 = vadd.f32 %v4052, %v4211
          %v4213 = vpop.f32.mrb[0].mxu0
          %v4214 = vadd.f32 %v4052, %v4213
          %v4215 = vpop.f32.mrb[0].mxu0
          %v4216 = vadd.f32 %v4057, %v4215
          %v4217 = vpop.f32.mrb[0].mxu0
          %v4218 = vadd.f32 %v4057, %v4217
          %4219 = vmatprep.mubr.bf16.mxu0 0
          %4220 = vmatmul.mubr.bf16.gmra.mrb[0].mxu0 %v4135
          %v4221 = vpop.f32.mrb[0].mxu0
          %v4222 = vadd.f32 %v4062, %v4221
          %v4223 = vpop.f32.mrb[0].mxu0
          %v4224 = vadd.f32 %v4062, %v4223
          %v4225 = vpop.f32.mrb[0].mxu0
          %v4226 = vadd.f32 %v4067, %v4225
          %v4227 = vpop.f32.mrb[0].mxu0
          %v4228 = vadd.f32 %v4067, %v4227
          %4229 = vmatprep.mubr.bf16.mxu0 0
          %4230 = vmatmul.mubr.bf16.gmra.mrb[0].mxu0 %v4136
          %v4231 = vpop.f32.mrb[0].mxu0
          %v4232 = vadd.f32 %v4072, %v4231
          %v4233 = vpop.f32.mrb[0].mxu0
          %v4234 = vadd.f32 %v4072, %v4233
          %v4235 = vpop.f32.mrb[0].mxu0
          %v4236 = vadd.f32 %v4077, %v4235
          %v4237 = vpop.f32.mrb[0].mxu0
          %v4238 = vadd.f32 %v4077, %v4237
          %4239 = vmatprep.mubr.bf16.mxu0 0
          %4240 = vmatmul.mubr.bf16.gmra.mrb[0].mxu0 %v4137
          %v4241 = vpop.f32.mrb[0].mxu0
          %v4242 = vadd.f32 %v4082, %v4241
          %v4243 = vpop.f32.mrb[0].mxu0
          %v4244 = vadd.f32 %v4082, %v4243
          %v4245 = vpop.f32.mrb[0].mxu0
          %v4246 = vadd.f32 %v4087, %v4245
          %v4247 = vpop.f32.mrb[0].mxu0
          %v4248 = vadd.f32 %v4087, %v4247
          %4249 = vmatprep.mubr.bf16.mxu0 0
          %4250 = vmatmul.mubr.bf16.gmra.mrb[0].mxu0 %v4138
          %v4251 = vpop.f32.mrb[0].mxu0
          %v4252 = vadd.f32 %v4092, %v4251
          %v4253 = vpop.f32.mrb[0].mxu0
          %v4254 = vadd.f32 %v4092, %v4253
          %v4255 = vpop.f32.mrb[0].mxu0
          %v4256 = vadd.f32 %v4097, %v4255
          %v4257 = vpop.f32.mrb[0].mxu0
          %v4258 = vadd.f32 %v4097, %v4257
          %4259 = vdwg.mxu0
          %v4260 = vld [vmem:[%s372] sm:$0xff]
          %v4261 = vld [vmem:[%s372 + $0x8] sm:$0xff]
          %v4262 = vld [vmem:[%s372 + $0x10] sm:$0xff]
          %v4263 = vld [vmem:[%s372 + $0x18] sm:$0xff]
          %v4264 = vld [vmem:[%s372 + $0x20] sm:$0xff]
          %v4265 = vld [vmem:[%s372 + $0x28] sm:$0xff]
          %v4266 = vld [vmem:[%s372 + $0x30] sm:$0xff]
          %v4267 = vld [vmem:[%s372 + $0x38] sm:$0xff]
          %v4268 = vld [vmem:[%s372 + $0x40] sm:$0xff]
          %v4269 = vld [vmem:[%s372 + $0x48] sm:$0xff]
          %v4270 = vld [vmem:[%s372 + $0x50] sm:$0xff]
          %v4271 = vld [vmem:[%s372 + $0x58] sm:$0xff]
          %v4272 = vld [vmem:[%s372 + $0x60] sm:$0xff]
          %v4273 = vld [vmem:[%s372 + $0x68] sm:$0xff]
          %v4274 = vld [vmem:[%s372 + $0x70] sm:$0xff]
          %v4275 = vld [vmem:[%s372 + $0x78] sm:$0xff]
          %v4276 = vld [vmem:[%s372 + $0x80] sm:$0xff]
          %v4277 = vld [vmem:[%s372 + $0x88] sm:$0xff]
          %v4278 = vld [vmem:[%s372 + $0x90] sm:$0xff]
          %v4279 = vld [vmem:[%s372 + $0x98] sm:$0xff]
          %v4280 = vld [vmem:[%s372 + $0xa0] sm:$0xff]
          %v4281 = vld [vmem:[%s372 + $0xa8] sm:$0xff]
          %v4282 = vld [vmem:[%s372 + $0xb0] sm:$0xff]
          %v4283 = vld [vmem:[%s372 + $0xb8] sm:$0xff]
          %v4284 = vld [vmem:[%s372 + $0xc0] sm:$0xff]
          %v4285 = vld [vmem:[%s372 + $0xc8] sm:$0xff]
          %v4286 = vld [vmem:[%s372 + $0xd0] sm:$0xff]
          %v4287 = vld [vmem:[%s372 + $0xd8] sm:$0xff]
          %v4288 = vld [vmem:[%s372 + $0xe0] sm:$0xff]
          %v4289 = vld [vmem:[%s372 + $0xe8] sm:$0xff]
          %v4290 = vld [vmem:[%s372 + $0xf0] sm:$0xff]
          %v4291 = vld [vmem:[%s372 + $0xf8] sm:$0xff]
          %v4292 = vadd.f32 %v4182, %v4260
          %v4293 = vadd.f32 %v4184, %v4261
          %v4294 = vadd.f32 %v4186, %v4262
          %v4295 = vadd.f32 %v4188, %v4263
          %v4296 = vadd.f32 %v4192, %v4264
          %v4297 = vadd.f32 %v4194, %v4265
          %v4298 = vadd.f32 %v4196, %v4266
          %v4299 = vadd.f32 %v4198, %v4267
          %v4300 = vadd.f32 %v4202, %v4268
          %v4301 = vadd.f32 %v4204, %v4269
          %v4302 = vadd.f32 %v4206, %v4270
          %v4303 = vadd.f32 %v4208, %v4271
          %v4304 = vadd.f32 %v4212, %v4272
          %v4305 = vadd.f32 %v4214, %v4273
          %v4306 = vadd.f32 %v4216, %v4274
          %v4307 = vadd.f32 %v4218, %v4275
          %v4308 = vadd.f32 %v4222, %v4276
          %v4309 = vadd.f32 %v4224, %v4277
          %v4310 = vadd.f32 %v4226, %v4278
          %v4311 = vadd.f32 %v4228, %v4279
          %v4312 = vadd.f32 %v4232, %v4280
          %v4313 = vadd.f32 %v4234, %v4281
          %v4314 = vadd.f32 %v4236, %v4282
          %v4315 = vadd.f32 %v4238, %v4283
          %v4316 = vadd.f32 %v4242, %v4284
          %v4317 = vadd.f32 %v4244, %v4285
          %v4318 = vadd.f32 %v4246, %v4286
          %v4319 = vadd.f32 %v4248, %v4287
          %v4320 = vadd.f32 %v4252, %v4288
          %v4321 = vadd.f32 %v4254, %v4289
          %v4322 = vadd.f32 %v4256, %v4290
          %v4323 = vadd.f32 %v4258, %v4291
          %4324 = vst [vmem:[%s409] sm:$0xff] %v4292
          %4325 = vst [vmem:[%s409 + $0x8] sm:$0xff] %v4293
          %4326 = vst [vmem:[%s409 + $0x10] sm:$0xff] %v4294
          %4327 = vst [vmem:[%s409 + $0x18] sm:$0xff] %v4295
          %4328 = vst [vmem:[%s409 + $0x20] sm:$0xff] %v4296
          %4329 = vst [vmem:[%s409 + $0x28] sm:$0xff] %v4297
          %4330 = vst [vmem:[%s409 + $0x30] sm:$0xff] %v4298
          %4331 = vst [vmem:[%s409 + $0x38] sm:$0xff] %v4299
          %4332 = vst [vmem:[%s409 + $0x40] sm:$0xff] %v4300
          %4333 = vst [vmem:[%s409 + $0x48] sm:$0xff] %v4301
          %4334 = vst [vmem:[%s409 + $0x50] sm:$0xff] %v4302
          %4335 = vst [vmem:[%s409 + $0x58] sm:$0xff] %v4303
          %4336 = vst [vmem:[%s409 + $0x60] sm:$0xff] %v4304
          %4337 = vst [vmem:[%s409 + $0x68] sm:$0xff] %v4305
          %4338 = vst [vmem:[%s409 + $0x70] sm:$0xff] %v4306
          %4339 = vst [vmem:[%s409 + $0x78] sm:$0xff] %v4307
          %4340 = vst [vmem:[%s409 + $0x80] sm:$0xff] %v4308
          %4341 = vst [vmem:[%s409 + $0x88] sm:$0xff] %v4309
          %4342 = vst [vmem:[%s409 + $0x90] sm:$0xff] %v4310
          %4343 = vst [vmem:[%s409 + $0x98] sm:$0xff] %v4311
          %4344 = vst [vmem:[%s409 + $0xa0] sm:$0xff] %v4312
          %4345 = vst [vmem:[%s409 + $0xa8] sm:$0xff] %v4313
          %4346 = vst [vmem:[%s409 + $0xb0] sm:$0xff] %v4314
          %4347 = vst [vmem:[%s409 + $0xb8] sm:$0xff] %v4315
          %4348 = vst [vmem:[%s409 + $0xc0] sm:$0xff] %v4316
          %4349 = vst [vmem:[%s409 + $0xc8] sm:$0xff] %v4317
          %4350 = vst [vmem:[%s409 + $0xd0] sm:$0xff] %v4318
          %4351 = vst [vmem:[%s409 + $0xd8] sm:$0xff] %v4319
          %4352 = vst [vmem:[%s409 + $0xe0] sm:$0xff] %v4320
          %4353 = vst [vmem:[%s409 + $0xe8] sm:$0xff] %v4321
          %4354 = vst [vmem:[%s409 + $0xf0] sm:$0xff] %v4322
          %4355 = vst [vmem:[%s409 + $0xf8] sm:$0xff] %v4323
        $region79: #{nl_block_nd_embedded.3} parent=66 // pred_fallthru
          _
        %s4356 = sand.u32 %s211, 1
        %s4357 = sand.u32 %s211, 1
        %s4358 = smul.addr %s4357, 256
        %s4359 = scalar_lea.vmem [#allocation7], %s4358
        // Predicated region
        $region80: #{nl_block_nd_embedded.3} parent=66 // pred_check
          %p4360 = pneg %p221
        $region81: #{nl_block_nd_embedded.3} parent=66 // pred_check_branch
          %4362 = sbr.rel (%p4360) target = $region83
        $region82: #{nl_block_nd_embedded.3} parent=66 // pred_region
          %s4363 = smul.u32 2, %s24
          %s4364 = smul.addr %s23, 64
          %s4365 = sadd.s32 %s4363, %s4364
          %s4366 = smul.addr %s4365, 8
          %s4367 = scalar_lea.vmem %s7, %s4366
          // Predicated region
          $region84: #{nl_block_nd_embedded.3} parent=82 // pred_check
            _
          $region85: #{nl_block_nd_embedded.3} parent=82 // pred_check_branch
            %4369 = sbr.rel (0) target = $region87
          $region86: #{nl_block_nd_embedded.3} parent=82 // pred_region
            // Predicated region
            $region88: #{nl_block_nd_embedded.3} parent=86 // pred_check
              _
            $region89: #{nl_block_nd_embedded.3} parent=86 // pred_check_branch
              %4371 = sbr.rel (0) target = $region91
            $region90: #{nl_block_nd_embedded.3} parent=86 // pred_region
              loop: start=0, step=1, limit=1
              $region92: #{nl_block_nd_embedded.3} parent=90 // loop_pre_header
                _
              $region93: #{nl_block_nd_embedded.3} parent=90 // loop_header
                %s4373 = sphi 0, %s4377
                %p4374 = scmp.ge.s32.totalorder %s4373, 1
                %s4378 = sphi %s4359, %s4359
                %s4379 = sphi %s4367, %s4367
              $region94: #{nl_block_nd_embedded.3} parent=90 // loop_header_branch
                %4376 = sbr.rel (%p4374) target = $region98
              $region95: #{nl_block_nd_embedded.3} parent=90 // loop_body
                %v4380 = vld [vmem:[%s4378] sm:$0xff]
                %4381 = vst [vmem:[%s4379] sm:$0xff] %v4380
                %v4382 = vld [vmem:[%s4378 + $0x8] sm:$0xff]
                %4383 = vst [vmem:[%s4379 + $0x8] sm:$0xff] %v4382
                %v4384 = vld [vmem:[%s4378 + $0x10] sm:$0xff]
                %4385 = vst [vmem:[%s4379 + $0x20] sm:$0xff] %v4384
                %v4386 = vld [vmem:[%s4378 + $0x18] sm:$0xff]
                %4387 = vst [vmem:[%s4379 + $0x28] sm:$0xff] %v4386
                %v4388 = vld [vmem:[%s4378 + $0x20] sm:$0xff]
                %4389 = vst [vmem:[%s4379 + $0x40] sm:$0xff] %v4388
                %v4390 = vld [vmem:[%s4378 + $0x28] sm:$0xff]
                %4391 = vst [vmem:[%s4379 + $0x48] sm:$0xff] %v4390
                %v4392 = vld [vmem:[%s4378 + $0x30] sm:$0xff]
                %4393 = vst [vmem:[%s4379 + $0x60] sm:$0xff] %v4392
                %v4394 = vld [vmem:[%s4378 + $0x38] sm:$0xff]
                %4395 = vst [vmem:[%s4379 + $0x68] sm:$0xff] %v4394
                %v4396 = vld [vmem:[%s4378 + $0x40] sm:$0xff]
                %4397 = vst [vmem:[%s4379 + $0x80] sm:$0xff] %v4396
                %v4398 = vld [vmem:[%s4378 + $0x48] sm:$0xff]
                %4399 = vst [vmem:[%s4379 + $0x88] sm:$0xff] %v4398
                %v4400 = vld [vmem:[%s4378 + $0x50] sm:$0xff]
                %4401 = vst [vmem:[%s4379 + $0xa0] sm:$0xff] %v4400
                %v4402 = vld [vmem:[%s4378 + $0x58] sm:$0xff]
                %4403 = vst [vmem:[%s4379 + $0xa8] sm:$0xff] %v4402
                %v4404 = vld [vmem:[%s4378 + $0x60] sm:$0xff]
                %4405 = vst [vmem:[%s4379 + $0xc0] sm:$0xff] %v4404
                %v4406 = vld [vmem:[%s4378 + $0x68] sm:$0xff]
                %4407 = vst [vmem:[%s4379 + $0xc8] sm:$0xff] %v4406
                %v4408 = vld [vmem:[%s4378 + $0x70] sm:$0xff]
                %4409 = vst [vmem:[%s4379 + $0xe0] sm:$0xff] %v4408
                %v4410 = vld [vmem:[%s4378 + $0x78] sm:$0xff]
                %4411 = vst [vmem:[%s4379 + $0xe8] sm:$0xff] %v4410
                %v4412 = vld [vmem:[%s4378 + $0x80] sm:$0xff]
                %4413 = vst [vmem:[%s4379 + $0x100] sm:$0xff] %v4412
                %v4414 = vld [vmem:[%s4378 + $0x88] sm:$0xff]
                %4415 = vst [vmem:[%s4379 + $0x108] sm:$0xff] %v4414
                %v4416 = vld [vmem:[%s4378 + $0x90] sm:$0xff]
                %4417 = vst [vmem:[%s4379 + $0x120] sm:$0xff] %v4416
                %v4418 = vld [vmem:[%s4378 + $0x98] sm:$0xff]
                %4419 = vst [vmem:[%s4379 + $0x128] sm:$0xff] %v4418
                %v4420 = vld [vmem:[%s4378 + $0xa0] sm:$0xff]
                %4421 = vst [vmem:[%s4379 + $0x140] sm:$0xff] %v4420
                %v4422 = vld [vmem:[%s4378 + $0xa8] sm:$0xff]
                %4423 = vst [vmem:[%s4379 + $0x148] sm:$0xff] %v4422
                %v4424 = vld [vmem:[%s4378 + $0xb0] sm:$0xff]
                %4425 = vst [vmem:[%s4379 + $0x160] sm:$0xff] %v4424
                %v4426 = vld [vmem:[%s4378 + $0xb8] sm:$0xff]
                %4427 = vst [vmem:[%s4379 + $0x168] sm:$0xff] %v4426
                %v4428 = vld [vmem:[%s4378 + $0xc0] sm:$0xff]
                %4429 = vst [vmem:[%s4379 + $0x180] sm:$0xff] %v4428
                %v4430 = vld [vmem:[%s4378 + $0xc8] sm:$0xff]
                %4431 = vst [vmem:[%s4379 + $0x188] sm:$0xff] %v4430
                %v4432 = vld [vmem:[%s4378 + $0xd0] sm:$0xff]
                %4433 = vst [vmem:[%s4379 + $0x1a0] sm:$0xff] %v4432
                %v4434 = vld [vmem:[%s4378 + $0xd8] sm:$0xff]
                %4435 = vst [vmem:[%s4379 + $0x1a8] sm:$0xff] %v4434
                %v4436 = vld [vmem:[%s4378 + $0xe0] sm:$0xff]
                %4437 = vst [vmem:[%s4379 + $0x1c0] sm:$0xff] %v4436
                %v4438 = vld [vmem:[%s4378 + $0xe8] sm:$0xff]
                %4439 = vst [vmem:[%s4379 + $0x1c8] sm:$0xff] %v4438
                %v4440 = vld [vmem:[%s4378 + $0xf0] sm:$0xff]
                %4441 = vst [vmem:[%s4379 + $0x1e0] sm:$0xff] %v4440
                %v4442 = vld [vmem:[%s4378 + $0xf8] sm:$0xff]
                %4443 = vst [vmem:[%s4379 + $0x1e8] sm:$0xff] %v4442
              $region96: #{nl_block_nd_embedded.3} parent=90 // loop_footer
                %s4377 = sadd.s32 1, %s4373
              $region97: #{nl_block_nd_embedded.3} parent=90 // loop_footer_branch
                %4372 = sbr.rel target = $region93
              $region98: #{nl_block_nd_embedded.3} parent=90 // loop_exit
                _
            $region91: #{nl_block_nd_embedded.3} parent=86 // pred_fallthru
              _
            // Predicated region
            $region99: #{nl_block_nd_embedded.3} parent=86 // pred_check
              _
            $region100: #{nl_block_nd_embedded.3} parent=86 // pred_check_branch
              %4445 = sbr.rel target = $region102
            $region101: #{nl_block_nd_embedded.3} parent=86 // pred_region
              _
            $region102: #{nl_block_nd_embedded.3} parent=86 // pred_fallthru
              _
          $region87: #{nl_block_nd_embedded.3} parent=82 // pred_fallthru
            _
          %4446 = vnop
        $region83: #{nl_block_nd_embedded.3} parent=66 // pred_fallthru
          _
      $region67: #{nl_block_nd_embedded.3} parent=5 // pred_fallthru
        _
      %p4447 = scmp.le.s32.totalorder 2, %s13
      // Predicated region
      $region103: #{nl_block_nd_embedded.3} parent=5 // pred_check
        %p4448 = pneg %p4447
      $region104: #{nl_block_nd_embedded.3} parent=5 // pred_check_branch
        %4450 = sbr.rel (%p4448) target = $region106
      $region105: #{nl_block_nd_embedded.3} parent=5 // pred_region
        %s4451 = ssub.s32 %s13, 2
        // Predicated region
        $region107: #{nl_block_nd_embedded.3} parent=105 // pred_check
          %p4452 = pneg %p227
        $region108: #{nl_block_nd_embedded.3} parent=105 // pred_check_branch
          %4454 = sbr.rel (%p4452) target = $region110
        $region109: #{nl_block_nd_embedded.3} parent=105 // pred_region
          %s4455 = sand.u32 %s212, 1
          %s4456 = sand.u32 %s212, 1
          %s4457 = smul.addr %s4456, 256
          %s4458 = scalar_lea.vmem [#allocation7], %s4457
        $region110: #{nl_block_nd_embedded.3} parent=105 // pred_fallthru
          _
      $region106: #{nl_block_nd_embedded.3} parent=5 // pred_fallthru
        _
    $region6: #{nl_block_nd_embedded.3} parent=1 // loop_footer
      %s17 = sadd.s32 1, %s13
    $region7: #{nl_block_nd_embedded.3} parent=1 // loop_footer_branch
      %12 = sbr.rel target = $region3
    $region8: #{nl_block_nd_embedded.3} parent=1 // loop_exit
      _

</llo_original>
